<compile_context>
chip_gen: v6e
topology: v6e:2x2x1
jax: 0.10.0
libtpu: 0.0.40
codegen_flags: <defaults>
</compile_context>

<pallas_src>
import numpy as np
import jax
import jax.numpy as jnp
from jax.experimental import pallas as pl
from jax.experimental.pallas import tpu as pltpu

GROUP_SIZE = 8  # p4m: 4 rotations x 2 mirrors


# --------------------- p4m group utilities (init-time glue) ---------------------

def _compose(g1, g2):
    # element g = 4*m + r  <->  M^m R_r  (rotate by 90*r, then mirror if m)
    m1, r1 = divmod(g1, 4)
    m2, r2 = divmod(g2, 4)
    m = (m1 + m2) % 2
    r = ((-1) ** m2 * r1 + r2) % 4
    return 4 * m + r


def _inverse(g):
    m, r = divmod(g, 4)
    return 4 * m + (r if m == 1 else (-r) % 4)


def _transform_kernel(w, g):
    # Spatial action of group element g on a (..., k, k) filter.
    m, r = divmod(g, 4)
    out = jnp.rot90(w, k=r, axes=(-2, -1))
    if m:
        out = jnp.flip(out, axis=-1)
    return out


def build_lifting_weight(w):
    # ConvRnG weight (Cout, Cin, k, k) -> (Cout*8, Cin, k, k)
    ws = [_transform_kernel(w, g) for g in range(GROUP_SIZE)]
    wbig = jnp.stack(ws, axis=1)  # (Cout, 8, Cin, k, k)
    cout, cin, k, _ = w.shape
    return wbig.reshape(cout * GROUP_SIZE, cin, k, k)


def build_gconv_weight(w):
    # ConvGG weight (Cout, Cin, 8, k, k) -> (Cout*8, Cin*8, k, k)
    # out[o, g] = sum_{i,h} x[i, h] * T_g( W[o, i, g^{-1} h] )
    cout, cin, G, k, _ = w.shape
    ws = []
    for g in range(G):
        perm = np.array([_compose(_inverse(g), h) for h in range(G)])
        wg = w[:, :, perm, :, :]
        wg = _transform_kernel(wg, g)
        ws.append(wg)
    wbig = jnp.stack(ws, axis=1)  # (Cout, 8_out, Cin, 8_in, k, k)
    return wbig.reshape(cout * G, cin * G, k, k)


def _to_matmul_layout(wbig, dtype):
    # (CoutG, CinG_or_Cin, k, k) -> (k*k*Cin*, CoutG) matching im2col column
    # order (kh, kw, cin*g) used below.
    coutg, cin_, k, _ = wbig.shape
    return wbig.transpose(2, 3, 1, 0).reshape(k * k * cin_, coutg).astype(dtype)


# ------------------------------ tiling helpers ------------------------------

def _row_tile(n, cap=256):
    """Largest multiple-of-8 divisor of n that is <= cap (or n itself)."""
    if n % 8 != 0:
        return n                      # full-extent block is always legal
    t = min(cap, n)
    t -= t % 8
    while n % t:
        t -= 8
    return t


# --------------------------- Pallas matmul kernel ---------------------------
# Single K tile (K is full-extent), bf16 inputs, f32 MXU accumulation, 1-D grid
# over M row tiles.  No scratch accumulator, no pl.when.

def _matmul_kernel(a_ref, b_ref, o_ref):
    o_ref[...] = jnp.dot(a_ref[...], b_ref[...],
                         preferred_element_type=jnp.float32).astype(o_ref.dtype)


def matmul_pallas(a, b, out_dtype=jnp.float32, tm_cap=256):
    M, K = a.shape
    K2, N = b.shape
    assert K == K2
    if M < 8:
        # Tiny problems (e.g. classifier head): let XLA do it unpadded.
        return jnp.dot(a.astype(jnp.float32), b.astype(jnp.float32)).astype(out_dtype)
    tm = _row_tile(M, tm_cap)
    return pl.pallas_call(
        _matmul_kernel,
        out_shape=jax.ShapeDtypeStruct((M, N), out_dtype),
        grid_spec=pltpu.PrefetchScalarGridSpec(
            num_scalar_prefetch=0,
            grid=(M // tm,),
            in_specs=[pl.BlockSpec((tm, K), lambda i: (i, 0)),
                      pl.BlockSpec((K, N), lambda i: (0, 0))],
            out_specs=pl.BlockSpec((tm, N), lambda i: (i, 0)),
        ),
        compiler_params=pltpu.CompilerParams(
            dimension_semantics=("parallel",)),
    )(a, b)


# ----------------------- Pallas BatchNorm3d + ReLU kernel -----------------------
# x viewed as (B*H, W*C*G): per-row-tile blocks, lane-dense last dim, scale and
# shift are per-column constants broadcast over rows.  Output in bf16 so the
# downstream im2col/matmul reads half the bytes.

def _scale_shift_relu_kernel(x_ref, s_ref, t_ref, o_ref):
    o_ref[...] = jnp.maximum(x_ref[...] * s_ref[...] + t_ref[...],
                             0.0).astype(o_ref.dtype)


def bn_relu_pallas(x, gamma, beta, eps=2e-5, out_dtype=jnp.bfloat16):
    # x: (B, H, W, C*G) channel-last.  BatchNorm3d statistics are per channel C
    # over (B, G, H, W) in training mode (batch stats); stats reduction is XLA
    # glue, normalize+ReLU is the Pallas kernel.
    # TODO(synk): eval-mode running mean/var is not modelled (training-mode stats).
    B, H, W, CG = x.shape
    C = gamma.shape[0]
    G = CG // C
    xs = x.reshape(B, H, W, C, G)
    mean = jnp.mean(xs, axis=(0, 1, 2, 4))
    var = jnp.var(xs, axis=(0, 1, 2, 4))
    scale_c = gamma * jax.lax.rsqrt(var + eps)
    shift_c = beta - mean * scale_c
    # expand per-channel -> per (w, c, g) column of the (B*H, W*CG) view
    scale_row = jnp.tile(jnp.repeat(scale_c, G), W)[None, :]
    shift_row = jnp.tile(jnp.repeat(shift_c, G), W)[None, :]

    rows, cols = B * H, W * CG
    x2 = x.reshape(rows, cols)
    tr = _row_tile(rows, 256)
    out = pl.pallas_call(
        _scale_shift_relu_kernel,
        out_shape=jax.ShapeDtypeStruct((rows, cols), out_dtype),
        grid_spec=pltpu.PrefetchScalarGridSpec(
            num_scalar_prefetch=0,
            grid=(rows // tr,),
            in_specs=[pl.BlockSpec((tr, cols), lambda i: (i, 0)),
                      pl.BlockSpec((1, cols), lambda i: (0, 0)),
                      pl.BlockSpec((1, cols), lambda i: (0, 0))],
            out_specs=pl.BlockSpec((tr, cols), lambda i: (i, 0)),
        ),
        compiler_params=pltpu.CompilerParams(
            dimension_semantics=("parallel",)),
    )(x2, scale_row, shift_row)
    return out.reshape(B, H, W, CG)


# ----------------------------- conv via im2col + matmul -----------------------------

def conv_im2col(x, wmat, k, padding, use_pallas=True):
    # x: (B, H, W, CinG) channel-last, stride 1, cross-correlation.
    # wmat: (k*k*CinG, CoutG), pre-expanded & pre-laid-out at init.
    B, H, W, CG = x.shape
    if padding:
        x = jnp.pad(x, ((0, 0), (padding, padding), (padding, padding), (0, 0)))
    Ho = H + 2 * padding - k + 1
    Wo = W + 2 * padding - k + 1
    if k == 1:
        cols = x.reshape(B * Ho * Wo, CG)
    else:
        patches = [x[:, di:di + Ho, dj:dj + Wo, :]
                   for di in range(k) for dj in range(k)]
        cols = jnp.stack(patches, axis=3).reshape(B * Ho * Wo, k * k * CG)
    cols = cols.astype(wmat.dtype)
    if use_pallas:
        out = matmul_pallas(cols, wmat, out_dtype=jnp.float32)
    else:
        out = jnp.dot(cols.astype(jnp.float32), wmat.astype(jnp.float32))
    return out.reshape(B, Ho, Wo, wmat.shape[1])


def max_pool_2x2(x):
    # spatial 2x2 / stride 2 max pool on (B, H, W, CG)
    B, H, W, CG = x.shape
    return jnp.max(x.reshape(B, H // 2, 2, W // 2, 2, CG), axis=(2, 4))


# ------------------------------- model definition -------------------------------

def res_block(p, x, really_equivariant):
    # x: (B, H, W, Cin*8) float32
    h = bn_relu_pallas(x, p['bn1_gamma'], p['bn1_beta'])          # bf16
    h = conv_im2col(h, p['c1_wmat'], k=3, padding=1)              # f32
    if really_equivariant:
        h = max_pool_2x2(h)
    h = bn_relu_pallas(h, p['bn2_gamma'], p['bn2_beta'])
    h = conv_im2col(h, p['c2_wmat'], k=3, padding=1)
    if 'fiber_wmat' in p:
        hx = conv_im2col(x.astype(jnp.bfloat16), p['fiber_wmat'], k=1, padding=0)
    else:
        hx = x
    if really_equivariant:
        hx = max_pool_2x2(hx)
    return hx + h


def p4m_resnet_forward(params, x):
    # x: (B, 3, H, W) NCHW (module interface); convert to channel-last once.
    x = jnp.transpose(x, (0, 2, 3, 1))                            # (B, H, W, 3)
    # lifting conv: tiny K (=27) -> plain XLA GEMM, no padded MXU tiles.
    h = conv_im2col(x, params['c1_wmat'], k=3, padding=1, use_pallas=False)
    for p in params['stage32']:
        h = res_block(p, h, really_equivariant=False)
    for i, p in enumerate(params['stage16']):
        h = res_block(p, h, really_equivariant=(i == 0))
    for i, p in enumerate(params['stage8']):
        h = res_block(p, h, really_equivariant=(i == 0))
    h = bn_relu_pallas(h, params['bn_out_gamma'], params['bn_out_beta'],
                       out_dtype=jnp.float32)
    feat = jnp.mean(h, axis=(1, 2))                               # global avg pool
    # classifier 1x1 ConvGG on pooled features: M=B -> plain XLA GEMM
    logits = jnp.dot(feat, params['c_out_wmat'])                  # (B, 10*8)
    logits = logits.reshape(feat.shape[0], 10, GROUP_SIZE).mean(axis=2)
    return logits


def init_params(key, num_blocks=1, nc32=8, nc16=8, nc8=8):
    # All group-weight expansion / matmul-layout reshaping / bf16 casting is
    # done HERE, once, outside the jitted forward.
    keys = iter(jax.random.split(key, 256))
    wscale = float(np.sqrt(2.0))

    def conv_w(shape):
        fan_in = int(np.prod(shape[1:]))
        return jax.random.normal(next(keys), shape, jnp.float32) * (wscale / np.sqrt(fan_in))

    def gg_wmat(shape, dtype=jnp.bfloat16):
        w = conv_w(shape)                        # (Cout, Cin, 8, k, k)
        return _to_matmul_layout(build_gconv_weight(w), dtype)

    def block_params(cin, cout, fiber):
        p = {'bn1_gamma': jnp.ones((cin,), jnp.float32),
             'bn1_beta': jnp.zeros((cin,), jnp.float32),
             'c1_wmat': gg_wmat((cout, cin, GROUP_SIZE, 3, 3)),
             'bn2_gamma': jnp.ones((cout,), jnp.float32),
             'bn2_beta': jnp.zeros((cout,), jnp.float32),
             'c2_wmat': gg_wmat((cout, cout, GROUP_SIZE, 3, 3))}
        if fiber == 'linear':
            p['fiber_wmat'] = gg_wmat((cout, cin, GROUP_SIZE, 1, 1))
        return p

    params = {'c1_wmat': _to_matmul_layout(
        build_lifting_weight(conv_w((nc32, 3, 3, 3))), jnp.float32)}
    params['stage32'] = [block_params(nc32, nc32, 'id') for _ in range(num_blocks)]
    params['stage16'] = [block_params(nc32 if i == 0 else nc16, nc16,
                                      'linear' if i == 0 else 'id')
                         for i in range(num_blocks)]
    params['stage8'] = [block_params(nc16 if i == 0 else nc8, nc8,
                                     'linear' if i == 0 else 'id')
                        for i in range(num_blocks)]
    params['bn_out_gamma'] = jnp.ones((nc8,), jnp.float32)
    params['bn_out_beta'] = jnp.zeros((nc8,), jnp.float32)
    params['c_out_wmat'] = gg_wmat((10, nc8, GROUP_SIZE, 1, 1), dtype=jnp.float32)
    # TODO(synk): attgconv's exact weight-init distribution is not replicated; we use
    # a deterministic He-style init scaled by wscale (shapes match the module).
    return params


if __name__ == "__main__":
    key = jax.random.PRNGKey(0)
    pkey, xkey = jax.random.split(key)
    # small config consistent with the module structure (3 stages, 2x downsampling each)
    num_blocks, nc32, nc16, nc8 = 1, 8, 8, 8
    params = init_params(pkey, num_blocks=num_blocks, nc32=nc32, nc16=nc16, nc8=nc8)
    x = jax.random.normal(xkey, (2, 3, 16, 16), jnp.float32)  # NCHW, RGB input

    fwd = jax.jit(p4m_resnet_forward)
    out = jax.block_until_ready(fwd(params, x))
    assert out.shape == (2, 10) and out.dtype == jnp.float32
    print("KERNEL_OK")
</pallas_src>

<mosaic_0001>
module attributes {stable_mosaic.version = 11 : i64} {
  func.func @_scale_shift_relu_kernel(%arg0: i32, %arg1: memref<32x1024xf32, #tpu.memory_space<vmem>>, %arg2: memref<1x1024xf32, #tpu.memory_space<vmem>>, %arg3: memref<1x1024xf32, #tpu.memory_space<vmem>>, %arg4: memref<32x1024xbf16, #tpu.memory_space<vmem>>) attributes {dimension_semantics = [#tpu.dimension_semantics<parallel>], iteration_bounds = array<i64: 1>, scalar_prefetch = 0 : i64, scratch_operands = 0 : i64, tpu.core_type = #tpu.core_type<tc>, window_params = [{transform_indices = @transform_0, window_bounds = array<i64: 32, 1024>}, {pipeline_mode = #tpu.pipeline_mode<synchronous>, transform_indices = @transform_1, window_bounds = array<i64: 1, 1024>}, {pipeline_mode = #tpu.pipeline_mode<synchronous>, transform_indices = @transform_2, window_bounds = array<i64: 1, 1024>}, {transform_indices = @transform_3, window_bounds = array<i64: 32, 1024>}]} {
    %c0 = arith.constant 0 : index
    %c0_0 = arith.constant 0 : index
    %0 = vector.load %arg1[%c0, %c0_0] : memref<32x1024xf32, #tpu.memory_space<vmem>>, vector<32x1024xf32>
    %c0_1 = arith.constant 0 : index
    %c0_2 = arith.constant 0 : index
    %1 = vector.load %arg2[%c0_1, %c0_2] : memref<1x1024xf32, #tpu.memory_space<vmem>>, vector<1x1024xf32>
    %2 = vector.broadcast %1 : vector<1x1024xf32> to vector<32x1024xf32>
    %3 = arith.mulf %0, %2 : vector<32x1024xf32>
    %c0_3 = arith.constant 0 : index
    %c0_4 = arith.constant 0 : index
    %4 = vector.load %arg3[%c0_3, %c0_4] : memref<1x1024xf32, #tpu.memory_space<vmem>>, vector<1x1024xf32>
    %5 = vector.broadcast %4 : vector<1x1024xf32> to vector<32x1024xf32>
    %6 = arith.addf %3, %5 : vector<32x1024xf32>
    %cst = arith.constant 0.000000e+00 : f32
    %7 = vector.broadcast %cst : f32 to vector<32x1024xf32>
    %8 = arith.maximumf %6, %7 : vector<32x1024xf32>
    %9 = arith.truncf %8 : vector<32x1024xf32> to vector<32x1024xbf16>
    %c0_5 = arith.constant 0 : index
    %c0_6 = arith.constant 0 : index
    %10 = vector.load %arg4[%c0_5, %c0_6] : memref<32x1024xbf16, #tpu.memory_space<vmem>>, vector<32x1024xbf16>
    tpu.vector_store %arg4[%c0_5, %c0_6], %9 {strides = array<i32>} : memref<32x1024xbf16, #tpu.memory_space<vmem>>, vector<32x1024xbf16>,
    return
  }
  func.func @transform_0(%arg0: i32) -> (i32, i32) {
    %c0_i32 = arith.constant 0 : i32
    %c0_i32_0 = arith.constant 0 : i32
    return %arg0, %c0_i32 : i32, i32
  }
  func.func @transform_1(%arg0: i32) -> (i32, i32) {
    %c0_i32 = arith.constant 0 : i32
    %c0_i32_0 = arith.constant 0 : i32
    %c0_i32_1 = arith.constant 0 : i32
    return %c0_i32, %c0_i32_0 : i32, i32
  }
  func.func @transform_2(%arg0: i32) -> (i32, i32) {
    %c0_i32 = arith.constant 0 : i32
    %c0_i32_0 = arith.constant 0 : i32
    %c0_i32_1 = arith.constant 0 : i32
    return %c0_i32, %c0_i32_0 : i32, i32
  }
  func.func @transform_3(%arg0: i32) -> (i32, i32) {
    %c0_i32 = arith.constant 0 : i32
    %c0_i32_0 = arith.constant 0 : i32
    return %arg0, %c0_i32 : i32, i32
  }
}

module attributes {stable_mosaic.version = 11 : i64} {
  func.func @_matmul_kernel(%arg0: i32, %arg1: memref<256x576xbf16, #tpu.memory_space<vmem>>, %arg2: memref<576x64xbf16, #tpu.memory_space<vmem>>, %arg3: memref<256x64xf32, #tpu.memory_space<vmem>>) attributes {dimension_semantics = [#tpu.dimension_semantics<parallel>], iteration_bounds = array<i64: 2>, scalar_prefetch = 0 : i64, scratch_operands = 0 : i64, tpu.core_type = #tpu.core_type<tc>, window_params = [{transform_indices = @transform_0, window_bounds = array<i64: 256, 576>}, {pipeline_mode = #tpu.pipeline_mode<synchronous>, transform_indices = @transform_1, window_bounds = array<i64: 576, 64>}, {transform_indices = @transform_2, window_bounds = array<i64: 256, 64>}]} {
    %c0 = arith.constant 0 : index
    %c0_0 = arith.constant 0 : index
    %0 = vector.load %arg1[%c0, %c0_0] : memref<256x576xbf16, #tpu.memory_space<vmem>>, vector<256x576xbf16>
    %c0_1 = arith.constant 0 : index
    %c0_2 = arith.constant 0 : index
    %1 = vector.load %arg2[%c0_1, %c0_2] : memref<576x64xbf16, #tpu.memory_space<vmem>>, vector<576x64xbf16>
    %cst = arith.constant dense<0.000000e+00> : vector<256x64xf32>
    %2 = tpu.matmul %0, %1, %cst {dimension_numbers = #tpu.dot_dimension_numbers<[1], [0], [0], [1], [0, 0, 1, 1], [], []>} : vector<256x576xbf16>, vector<576x64xbf16>, vector<256x64xf32> -> vector<256x64xf32>
    %c0_3 = arith.constant 0 : index
    %c0_4 = arith.constant 0 : index
    %3 = vector.load %arg3[%c0_3, %c0_4] : memref<256x64xf32, #tpu.memory_space<vmem>>, vector<256x64xf32>
    tpu.vector_store %arg3[%c0_3, %c0_4], %2 {strides = array<i32>} : memref<256x64xf32, #tpu.memory_space<vmem>>, vector<256x64xf32>,
    return
  }
  func.func @transform_0(%arg0: i32) -> (i32, i32) {
    %c0_i32 = arith.constant 0 : i32
    %c0_i32_0 = arith.constant 0 : i32
    return %arg0, %c0_i32 : i32, i32
  }
  func.func @transform_1(%arg0: i32) -> (i32, i32) {
    %c0_i32 = arith.constant 0 : i32
    %c0_i32_0 = arith.constant 0 : i32
    %c0_i32_1 = arith.constant 0 : i32
    return %c0_i32, %c0_i32_0 : i32, i32
  }
  func.func @transform_2(%arg0: i32) -> (i32, i32) {
    %c0_i32 = arith.constant 0 : i32
    %c0_i32_0 = arith.constant 0 : i32
    return %arg0, %c0_i32 : i32, i32
  }
}

module attributes {stable_mosaic.version = 11 : i64} {
  func.func @_scale_shift_relu_kernel(%arg0: i32, %arg1: memref<16x512xf32, #tpu.memory_space<vmem>>, %arg2: memref<1x512xf32, #tpu.memory_space<vmem>>, %arg3: memref<1x512xf32, #tpu.memory_space<vmem>>, %arg4: memref<16x512xbf16, #tpu.memory_space<vmem>>) attributes {dimension_semantics = [#tpu.dimension_semantics<parallel>], iteration_bounds = array<i64: 1>, scalar_prefetch = 0 : i64, scratch_operands = 0 : i64, tpu.core_type = #tpu.core_type<tc>, window_params = [{transform_indices = @transform_0, window_bounds = array<i64: 16, 512>}, {pipeline_mode = #tpu.pipeline_mode<synchronous>, transform_indices = @transform_1, window_bounds = array<i64: 1, 512>}, {pipeline_mode = #tpu.pipeline_mode<synchronous>, transform_indices = @transform_2, window_bounds = array<i64: 1, 512>}, {transform_indices = @transform_3, window_bounds = array<i64: 16, 512>}]} {
    %c0 = arith.constant 0 : index
    %c0_0 = arith.constant 0 : index
    %0 = vector.load %arg1[%c0, %c0_0] : memref<16x512xf32, #tpu.memory_space<vmem>>, vector<16x512xf32>
    %c0_1 = arith.constant 0 : index
    %c0_2 = arith.constant 0 : index
    %1 = vector.load %arg2[%c0_1, %c0_2] : memref<1x512xf32, #tpu.memory_space<vmem>>, vector<1x512xf32>
    %2 = vector.broadcast %1 : vector<1x512xf32> to vector<16x512xf32>
    %3 = arith.mulf %0, %2 : vector<16x512xf32>
    %c0_3 = arith.constant 0 : index
    %c0_4 = arith.constant 0 : index
    %4 = vector.load %arg3[%c0_3, %c0_4] : memref<1x512xf32, #tpu.memory_space<vmem>>, vector<1x512xf32>
    %5 = vector.broadcast %4 : vector<1x512xf32> to vector<16x512xf32>
    %6 = arith.addf %3, %5 : vector<16x512xf32>
    %cst = arith.constant 0.000000e+00 : f32
    %7 = vector.broadcast %cst : f32 to vector<16x512xf32>
    %8 = arith.maximumf %6, %7 : vector<16x512xf32>
    %9 = arith.truncf %8 : vector<16x512xf32> to vector<16x512xbf16>
    %c0_5 = arith.constant 0 : index
    %c0_6 = arith.constant 0 : index
    %10 = vector.load %arg4[%c0_5, %c0_6] : memref<16x512xbf16, #tpu.memory_space<vmem>>, vector<16x512xbf16>
    tpu.vector_store %arg4[%c0_5, %c0_6], %9 {strides = array<i32>} : memref<16x512xbf16, #tpu.memory_space<vmem>>, vector<16x512xbf16>,
    return
  }
  func.func @transform_0(%arg0: i32) -> (i32, i32) {
    %c0_i32 = arith.constant 0 : i32
    %c0_i32_0 = arith.constant 0 : i32
    return %arg0, %c0_i32 : i32, i32
  }
  func.func @transform_1(%arg0: i32) -> (i32, i32) {
    %c0_i32 = arith.constant 0 : i32
    %c0_i32_0 = arith.constant 0 : i32
    %c0_i32_1 = arith.constant 0 : i32
    return %c0_i32, %c0_i32_0 : i32, i32
  }
  func.func @transform_2(%arg0: i32) -> (i32, i32) {
    %c0_i32 = arith.constant 0 : i32
    %c0_i32_0 = arith.constant 0 : i32
    %c0_i32_1 = arith.constant 0 : i32
    return %c0_i32, %c0_i32_0 : i32, i32
  }
  func.func @transform_3(%arg0: i32) -> (i32, i32) {
    %c0_i32 = arith.constant 0 : i32
    %c0_i32_0 = arith.constant 0 : i32
    return %arg0, %c0_i32 : i32, i32
  }
}

module attributes {stable_mosaic.version = 11 : i64} {
  func.func @_matmul_kernel(%arg0: i32, %arg1: memref<128x576xbf16, #tpu.memory_space<vmem>>, %arg2: memref<576x64xbf16, #tpu.memory_space<vmem>>, %arg3: memref<128x64xf32, #tpu.memory_space<vmem>>) attributes {dimension_semantics = [#tpu.dimension_semantics<parallel>], iteration_bounds = array<i64: 1>, scalar_prefetch = 0 : i64, scratch_operands = 0 : i64, tpu.core_type = #tpu.core_type<tc>, window_params = [{transform_indices = @transform_0, window_bounds = array<i64: 128, 576>}, {pipeline_mode = #tpu.pipeline_mode<synchronous>, transform_indices = @transform_1, window_bounds = array<i64: 576, 64>}, {transform_indices = @transform_2, window_bounds = array<i64: 128, 64>}]} {
    %c0 = arith.constant 0 : index
    %c0_0 = arith.constant 0 : index
    %0 = vector.load %arg1[%c0, %c0_0] : memref<128x576xbf16, #tpu.memory_space<vmem>>, vector<128x576xbf16>
    %c0_1 = arith.constant 0 : index
    %c0_2 = arith.constant 0 : index
    %1 = vector.load %arg2[%c0_1, %c0_2] : memref<576x64xbf16, #tpu.memory_space<vmem>>, vector<576x64xbf16>
    %cst = arith.constant dense<0.000000e+00> : vector<128x64xf32>
    %2 = tpu.matmul %0, %1, %cst {dimension_numbers = #tpu.dot_dimension_numbers<[1], [0], [0], [1], [0, 0, 1, 1], [], []>} : vector<128x576xbf16>, vector<576x64xbf16>, vector<128x64xf32> -> vector<128x64xf32>
    %c0_3 = arith.constant 0 : index
    %c0_4 = arith.constant 0 : index
    %3 = vector.load %arg3[%c0_3, %c0_4] : memref<128x64xf32, #tpu.memory_space<vmem>>, vector<128x64xf32>
    tpu.vector_store %arg3[%c0_3, %c0_4], %2 {strides = array<i32>} : memref<128x64xf32, #tpu.memory_space<vmem>>, vector<128x64xf32>,
    return
  }
  func.func @transform_0(%arg0: i32) -> (i32, i32) {
    %c0_i32 = arith.constant 0 : i32
    %c0_i32_0 = arith.constant 0 : i32
    return %arg0, %c0_i32 : i32, i32
  }
  func.func @transform_1(%arg0: i32) -> (i32, i32) {
    %c0_i32 = arith.constant 0 : i32
    %c0_i32_0 = arith.constant 0 : i32
    %c0_i32_1 = arith.constant 0 : i32
    return %c0_i32, %c0_i32_0 : i32, i32
  }
  func.func @transform_2(%arg0: i32) -> (i32, i32) {
    %c0_i32 = arith.constant 0 : i32
    %c0_i32_0 = arith.constant 0 : i32
    return %arg0, %c0_i32 : i32, i32
  }
}

module attributes {stable_mosaic.version = 11 : i64} {
  func.func @_matmul_kernel(%arg0: i32, %arg1: memref<256x64xbf16, #tpu.memory_space<vmem>>, %arg2: memref<64x64xbf16, #tpu.memory_space<vmem>>, %arg3: memref<256x64xf32, #tpu.memory_space<vmem>>) attributes {dimension_semantics = [#tpu.dimension_semantics<parallel>], iteration_bounds = array<i64: 2>, scalar_prefetch = 0 : i64, scratch_operands = 0 : i64, tpu.core_type = #tpu.core_type<tc>, window_params = [{transform_indices = @transform_0, window_bounds = array<i64: 256, 64>}, {pipeline_mode = #tpu.pipeline_mode<synchronous>, transform_indices = @transform_1, window_bounds = array<i64: 64, 64>}, {transform_indices = @transform_2, window_bounds = array<i64: 256, 64>}]} {
    %c0 = arith.constant 0 : index
    %c0_0 = arith.constant 0 : index
    %0 = vector.load %arg1[%c0, %c0_0] : memref<256x64xbf16, #tpu.memory_space<vmem>>, vector<256x64xbf16>
    %c0_1 = arith.constant 0 : index
    %c0_2 = arith.constant 0 : index
    %1 = vector.load %arg2[%c0_1, %c0_2] : memref<64x64xbf16, #tpu.memory_space<vmem>>, vector<64x64xbf16>
    %cst = arith.constant dense<0.000000e+00> : vector<256x64xf32>
    %2 = tpu.matmul %0, %1, %cst {dimension_numbers = #tpu.dot_dimension_numbers<[1], [0], [0], [1], [0, 0, 1, 1], [], []>} : vector<256x64xbf16>, vector<64x64xbf16>, vector<256x64xf32> -> vector<256x64xf32>
    %c0_3 = arith.constant 0 : index
    %c0_4 = arith.constant 0 : index
    %3 = vector.load %arg3[%c0_3, %c0_4] : memref<256x64xf32, #tpu.memory_space<vmem>>, vector<256x64xf32>
    tpu.vector_store %arg3[%c0_3, %c0_4], %2 {strides = array<i32>} : memref<256x64xf32, #tpu.memory_space<vmem>>, vector<256x64xf32>,
    return
  }
  func.func @transform_0(%arg0: i32) -> (i32, i32) {
    %c0_i32 = arith.constant 0 : i32
    %c0_i32_0 = arith.constant 0 : i32
    return %arg0, %c0_i32 : i32, i32
  }
  func.func @transform_1(%arg0: i32) -> (i32, i32) {
    %c0_i32 = arith.constant 0 : i32
    %c0_i32_0 = arith.constant 0 : i32
    %c0_i32_1 = arith.constant 0 : i32
    return %c0_i32, %c0_i32_0 : i32, i32
  }
  func.func @transform_2(%arg0: i32) -> (i32, i32) {
    %c0_i32 = arith.constant 0 : i32
    %c0_i32_0 = arith.constant 0 : i32
    return %arg0, %c0_i32 : i32, i32
  }
}

module attributes {stable_mosaic.version = 11 : i64} {
  func.func @_scale_shift_relu_kernel(%arg0: i32, %arg1: memref<8x256xf32, #tpu.memory_space<vmem>>, %arg2: memref<1x256xf32, #tpu.memory_space<vmem>>, %arg3: memref<1x256xf32, #tpu.memory_space<vmem>>, %arg4: memref<8x256xbf16, #tpu.memory_space<vmem>>) attributes {dimension_semantics = [#tpu.dimension_semantics<parallel>], iteration_bounds = array<i64: 1>, scalar_prefetch = 0 : i64, scratch_operands = 0 : i64, tpu.core_type = #tpu.core_type<tc>, window_params = [{transform_indices = @transform_0, window_bounds = array<i64: 8, 256>}, {pipeline_mode = #tpu.pipeline_mode<synchronous>, transform_indices = @transform_1, window_bounds = array<i64: 1, 256>}, {pipeline_mode = #tpu.pipeline_mode<synchronous>, transform_indices = @transform_2, window_bounds = array<i64: 1, 256>}, {transform_indices = @transform_3, window_bounds = array<i64: 8, 256>}]} {
    %c0 = arith.constant 0 : index
    %c0_0 = arith.constant 0 : index
    %0 = vector.load %arg1[%c0, %c0_0] : memref<8x256xf32, #tpu.memory_space<vmem>>, vector<8x256xf32>
    %c0_1 = arith.constant 0 : index
    %c0_2 = arith.constant 0 : index
    %1 = vector.load %arg2[%c0_1, %c0_2] : memref<1x256xf32, #tpu.memory_space<vmem>>, vector<1x256xf32>
    %2 = vector.broadcast %1 : vector<1x256xf32> to vector<8x256xf32>
    %3 = arith.mulf %0, %2 : vector<8x256xf32>
    %c0_3 = arith.constant 0 : index
    %c0_4 = arith.constant 0 : index
    %4 = vector.load %arg3[%c0_3, %c0_4] : memref<1x256xf32, #tpu.memory_space<vmem>>, vector<1x256xf32>
    %5 = vector.broadcast %4 : vector<1x256xf32> to vector<8x256xf32>
    %6 = arith.addf %3, %5 : vector<8x256xf32>
    %cst = arith.constant 0.000000e+00 : f32
    %7 = vector.broadcast %cst : f32 to vector<8x256xf32>
    %8 = arith.maximumf %6, %7 : vector<8x256xf32>
    %9 = arith.truncf %8 : vector<8x256xf32> to vector<8x256xbf16>
    %c0_5 = arith.constant 0 : index
    %c0_6 = arith.constant 0 : index
    %10 = vector.load %arg4[%c0_5, %c0_6] : memref<8x256xbf16, #tpu.memory_space<vmem>>, vector<8x256xbf16>
    tpu.vector_store %arg4[%c0_5, %c0_6], %9 {strides = array<i32>} : memref<8x256xbf16, #tpu.memory_space<vmem>>, vector<8x256xbf16>,
    return
  }
  func.func @transform_0(%arg0: i32) -> (i32, i32) {
    %c0_i32 = arith.constant 0 : i32
    %c0_i32_0 = arith.constant 0 : i32
    return %arg0, %c0_i32 : i32, i32
  }
  func.func @transform_1(%arg0: i32) -> (i32, i32) {
    %c0_i32 = arith.constant 0 : i32
    %c0_i32_0 = arith.constant 0 : i32
    %c0_i32_1 = arith.constant 0 : i32
    return %c0_i32, %c0_i32_0 : i32, i32
  }
  func.func @transform_2(%arg0: i32) -> (i32, i32) {
    %c0_i32 = arith.constant 0 : i32
    %c0_i32_0 = arith.constant 0 : i32
    %c0_i32_1 = arith.constant 0 : i32
    return %c0_i32, %c0_i32_0 : i32, i32
  }
  func.func @transform_3(%arg0: i32) -> (i32, i32) {
    %c0_i32 = arith.constant 0 : i32
    %c0_i32_0 = arith.constant 0 : i32
    return %arg0, %c0_i32 : i32, i32
  }
}

module attributes {stable_mosaic.version = 11 : i64} {
  func.func @_matmul_kernel(%arg0: i32, %arg1: memref<32x576xbf16, #tpu.memory_space<vmem>>, %arg2: memref<576x64xbf16, #tpu.memory_space<vmem>>, %arg3: memref<32x64xf32, #tpu.memory_space<vmem>>) attributes {dimension_semantics = [#tpu.dimension_semantics<parallel>], iteration_bounds = array<i64: 1>, scalar_prefetch = 0 : i64, scratch_operands = 0 : i64, tpu.core_type = #tpu.core_type<tc>, window_params = [{transform_indices = @transform_0, window_bounds = array<i64: 32, 576>}, {pipeline_mode = #tpu.pipeline_mode<synchronous>, transform_indices = @transform_1, window_bounds = array<i64: 576, 64>}, {transform_indices = @transform_2, window_bounds = array<i64: 32, 64>}]} {
    %c0 = arith.constant 0 : index
    %c0_0 = arith.constant 0 : index
    %0 = vector.load %arg1[%c0, %c0_0] : memref<32x576xbf16, #tpu.memory_space<vmem>>, vector<32x576xbf16>
    %c0_1 = arith.constant 0 : index
    %c0_2 = arith.constant 0 : index
    %1 = vector.load %arg2[%c0_1, %c0_2] : memref<576x64xbf16, #tpu.memory_space<vmem>>, vector<576x64xbf16>
    %cst = arith.constant dense<0.000000e+00> : vector<32x64xf32>
    %2 = tpu.matmul %0, %1, %cst {dimension_numbers = #tpu.dot_dimension_numbers<[1], [0], [0], [1], [0, 0, 1, 1], [], []>} : vector<32x576xbf16>, vector<576x64xbf16>, vector<32x64xf32> -> vector<32x64xf32>
    %c0_3 = arith.constant 0 : index
    %c0_4 = arith.constant 0 : index
    %3 = vector.load %arg3[%c0_3, %c0_4] : memref<32x64xf32, #tpu.memory_space<vmem>>, vector<32x64xf32>
    tpu.vector_store %arg3[%c0_3, %c0_4], %2 {strides = array<i32>} : memref<32x64xf32, #tpu.memory_space<vmem>>, vector<32x64xf32>,
    return
  }
  func.func @transform_0(%arg0: i32) -> (i32, i32) {
    %c0_i32 = arith.constant 0 : i32
    %c0_i32_0 = arith.constant 0 : i32
    return %arg0, %c0_i32 : i32, i32
  }
  func.func @transform_1(%arg0: i32) -> (i32, i32) {
    %c0_i32 = arith.constant 0 : i32
    %c0_i32_0 = arith.constant 0 : i32
    %c0_i32_1 = arith.constant 0 : i32
    return %c0_i32, %c0_i32_0 : i32, i32
  }
  func.func @transform_2(%arg0: i32) -> (i32, i32) {
    %c0_i32 = arith.constant 0 : i32
    %c0_i32_0 = arith.constant 0 : i32
    return %arg0, %c0_i32 : i32, i32
  }
}

module attributes {stable_mosaic.version = 11 : i64} {
  func.func @_matmul_kernel(%arg0: i32, %arg1: memref<128x64xbf16, #tpu.memory_space<vmem>>, %arg2: memref<64x64xbf16, #tpu.memory_space<vmem>>, %arg3: memref<128x64xf32, #tpu.memory_space<vmem>>) attributes {dimension_semantics = [#tpu.dimension_semantics<parallel>], iteration_bounds = array<i64: 1>, scalar_prefetch = 0 : i64, scratch_operands = 0 : i64, tpu.core_type = #tpu.core_type<tc>, window_params = [{transform_indices = @transform_0, window_bounds = array<i64: 128, 64>}, {pipeline_mode = #tpu.pipeline_mode<synchronous>, transform_indices = @transform_1, window_bounds = array<i64: 64, 64>}, {transform_indices = @transform_2, window_bounds = array<i64: 128, 64>}]} {
    %c0 = arith.constant 0 : index
    %c0_0 = arith.constant 0 : index
    %0 = vector.load %arg1[%c0, %c0_0] : memref<128x64xbf16, #tpu.memory_space<vmem>>, vector<128x64xbf16>
    %c0_1 = arith.constant 0 : index
    %c0_2 = arith.constant 0 : index
    %1 = vector.load %arg2[%c0_1, %c0_2] : memref<64x64xbf16, #tpu.memory_space<vmem>>, vector<64x64xbf16>
    %cst = arith.constant dense<0.000000e+00> : vector<128x64xf32>
    %2 = tpu.matmul %0, %1, %cst {dimension_numbers = #tpu.dot_dimension_numbers<[1], [0], [0], [1], [0, 0, 1, 1], [], []>} : vector<128x64xbf16>, vector<64x64xbf16>, vector<128x64xf32> -> vector<128x64xf32>
    %c0_3 = arith.constant 0 : index
    %c0_4 = arith.constant 0 : index
    %3 = vector.load %arg3[%c0_3, %c0_4] : memref<128x64xf32, #tpu.memory_space<vmem>>, vector<128x64xf32>
    tpu.vector_store %arg3[%c0_3, %c0_4], %2 {strides = array<i32>} : memref<128x64xf32, #tpu.memory_space<vmem>>, vector<128x64xf32>,
    return
  }
  func.func @transform_0(%arg0: i32) -> (i32, i32) {
    %c0_i32 = arith.constant 0 : i32
    %c0_i32_0 = arith.constant 0 : i32
    return %arg0, %c0_i32 : i32, i32
  }
  func.func @transform_1(%arg0: i32) -> (i32, i32) {
    %c0_i32 = arith.constant 0 : i32
    %c0_i32_0 = arith.constant 0 : i32
    %c0_i32_1 = arith.constant 0 : i32
    return %c0_i32, %c0_i32_0 : i32, i32
  }
  func.func @transform_2(%arg0: i32) -> (i32, i32) {
    %c0_i32 = arith.constant 0 : i32
    %c0_i32_0 = arith.constant 0 : i32
    return %arg0, %c0_i32 : i32, i32
  }
}

module attributes {stable_mosaic.version = 11 : i64} {
  func.func @_scale_shift_relu_kernel(%arg0: i32, %arg1: memref<8x256xf32, #tpu.memory_space<vmem>>, %arg2: memref<1x256xf32, #tpu.memory_space<vmem>>, %arg3: memref<1x256xf32, #tpu.memory_space<vmem>>, %arg4: memref<8x256xf32, #tpu.memory_space<vmem>>) attributes {dimension_semantics = [#tpu.dimension_semantics<parallel>], iteration_bounds = array<i64: 1>, scalar_prefetch = 0 : i64, scratch_operands = 0 : i64, tpu.core_type = #tpu.core_type<tc>, window_params = [{transform_indices = @transform_0, window_bounds = array<i64: 8, 256>}, {pipeline_mode = #tpu.pipeline_mode<synchronous>, transform_indices = @transform_1, window_bounds = array<i64: 1, 256>}, {pipeline_mode = #tpu.pipeline_mode<synchronous>, transform_indices = @transform_2, window_bounds = array<i64: 1, 256>}, {transform_indices = @transform_3, window_bounds = array<i64: 8, 256>}]} {
    %c0 = arith.constant 0 : index
    %c0_0 = arith.constant 0 : index
    %0 = vector.load %arg1[%c0, %c0_0] : memref<8x256xf32, #tpu.memory_space<vmem>>, vector<8x256xf32>
    %c0_1 = arith.constant 0 : index
    %c0_2 = arith.constant 0 : index
    %1 = vector.load %arg2[%c0_1, %c0_2] : memref<1x256xf32, #tpu.memory_space<vmem>>, vector<1x256xf32>
    %2 = vector.broadcast %1 : vector<1x256xf32> to vector<8x256xf32>
    %3 = arith.mulf %0, %2 : vector<8x256xf32>
    %c0_3 = arith.constant 0 : index
    %c0_4 = arith.constant 0 : index
    %4 = vector.load %arg3[%c0_3, %c0_4] : memref<1x256xf32, #tpu.memory_space<vmem>>, vector<1x256xf32>
    %5 = vector.broadcast %4 : vector<1x256xf32> to vector<8x256xf32>
    %6 = arith.addf %3, %5 : vector<8x256xf32>
    %cst = arith.constant 0.000000e+00 : f32
    %7 = vector.broadcast %cst : f32 to vector<8x256xf32>
    %8 = arith.maximumf %6, %7 : vector<8x256xf32>
    %c0_5 = arith.constant 0 : index
    %c0_6 = arith.constant 0 : index
    %9 = vector.load %arg4[%c0_5, %c0_6] : memref<8x256xf32, #tpu.memory_space<vmem>>, vector<8x256xf32>
    tpu.vector_store %arg4[%c0_5, %c0_6], %8 {strides = array<i32>} : memref<8x256xf32, #tpu.memory_space<vmem>>, vector<8x256xf32>,
    return
  }
  func.func @transform_0(%arg0: i32) -> (i32, i32) {
    %c0_i32 = arith.constant 0 : i32
    %c0_i32_0 = arith.constant 0 : i32
    return %arg0, %c0_i32 : i32, i32
  }
  func.func @transform_1(%arg0: i32) -> (i32, i32) {
    %c0_i32 = arith.constant 0 : i32
    %c0_i32_0 = arith.constant 0 : i32
    %c0_i32_1 = arith.constant 0 : i32
    return %c0_i32, %c0_i32_0 : i32, i32
  }
  func.func @transform_2(%arg0: i32) -> (i32, i32) {
    %c0_i32 = arith.constant 0 : i32
    %c0_i32_0 = arith.constant 0 : i32
    %c0_i32_1 = arith.constant 0 : i32
    return %c0_i32, %c0_i32_0 : i32, i32
  }
  func.func @transform_3(%arg0: i32) -> (i32, i32) {
    %c0_i32 = arith.constant 0 : i32
    %c0_i32_0 = arith.constant 0 : i32
    return %arg0, %c0_i32 : i32, i32
  }
}

</mosaic_0001>

<llo_original>
// kernel: tile.57
$region0: #{tile.57}
  %s0 = inlined_call_operand.vmem [shape: f32[8,8], index: 0, kind: input, shape index: {}]
  %s1 = inlined_call_operand.vmem [shape: f32[64], index: 1, kind: output, shape index: {}]
  $region1: #{tile.57} parent=0
    #allocation0 [shape = 'u8[4096]{0}', space=vmem, size = 0x1000, scoped, tag = 'scoped mem for output reshape']
    %v2 = vld [vmem:[%s0] sm:$0x1]
    %vm3 = vcmask 64512
    %4 = vst.msk [vmem:[#allocation0] sm:$0x1] %vm3, %v2
    %s5 = scalar_lea.vmem %s0, 7
    %v6 = vld [vmem:[%s5] sm:$0x1]
    %7 = vrot.lane.b32.xlu0 %v6, 56
    %v8 = vpop.permute.xlu0 %7
    %vm9 = vcmask 523712
    %10 = vst.msk [vmem:[#allocation0] sm:$0x1] %vm9, %v8
    %s11 = scalar_lea.vmem %s0, 6
    %v12 = vld [vmem:[%s11] sm:$0x1]
    %13 = vrot.lane.b32.xlu0 %v12, 48
    %v14 = vpop.permute.xlu0 %13
    %vm15 = vcmask 458112
    %16 = vst.msk [vmem:[#allocation0] sm:$0x1] %vm15, %v14
    %s17 = scalar_lea.vmem %s0, 5
    %v18 = vld [vmem:[%s17] sm:$0x1]
    %19 = vrot.lane.b32.xlu0 %v18, 40
    %v20 = vpop.permute.xlu0 %19
    %vm21 = vcmask 392512
    %22 = vst.msk [vmem:[#allocation0] sm:$0x1] %vm21, %v20
    %s23 = scalar_lea.vmem %s0, 4
    %v24 = vld [vmem:[%s23] sm:$0x1]
    %25 = vrot.lane.b32.xlu0 %v24, 32
    %v26 = vpop.permute.xlu0 %25
    %vm27 = vcmask 326912
    %28 = vst.msk [vmem:[#allocation0] sm:$0x1] %vm27, %v26
    %s29 = scalar_lea.vmem %s0, 3
    %v30 = vld [vmem:[%s29] sm:$0x1]
    %31 = vrot.lane.b32.xlu0 %v30, 24
    %v32 = vpop.permute.xlu0 %31
    %vm33 = vcmask 261312
    %34 = vst.msk [vmem:[#allocation0] sm:$0x1] %vm33, %v32
    %s35 = scalar_lea.vmem %s0, 2
    %v36 = vld [vmem:[%s35] sm:$0x1]
    %37 = vrot.lane.b32.xlu0 %v36, 16
    %v38 = vpop.permute.xlu0 %37
    %vm39 = vcmask 195712
    %40 = vst.msk [vmem:[#allocation0] sm:$0x1] %vm39, %v38
    %s41 = scalar_lea.vmem %s0, 1
    %v42 = vld [vmem:[%s41] sm:$0x1]
    %43 = vrot.lane.b32.xlu0 %v42, 8
    %v44 = vpop.permute.xlu0 %43
    %vm45 = vcmask 130112
    %46 = vst.msk [vmem:[#allocation0] sm:$0x1] %vm45, %v44
    %s48 = sshll.u32 1, 1
    %s49 = ssub.s32 %s48, 1
    %v51 = vld [vmem:[#allocation0] sm:%s49]
    %s52 = sshll.u32 1, 1
    %s53 = ssub.s32 %s52, 1
    %54 = vst [vmem:[%s1] sm:%s53] %v51

// kernel: tile.58
$region0: #{tile.58}
  #allocation0 [shape = 's32[1]{0}', space=sflag, size = 0x4, scoped, tag = 'scoped memory for tile.58']
  %s0 = inlined_call_operand.vmem [shape: f32[64], index: 0, kind: input, shape index: {}]
  %s1 = inlined_call_operand.vmem [shape: f32[16,64], index: 1, kind: output, shape index: {}]
  // Predicated region
  $region2: #{tile.58} parent=0 // pred_check
    _
  $region3: #{tile.58} parent=0 // pred_check_branch
    %3 = sbr.rel (0) target = $region5
  $region4: #{tile.58} parent=0 // pred_region
    _
  $region5: #{tile.58} parent=0 // pred_fallthru
    _
  %v4 = vld [vmem:[%s0] ss:$0 sm:$0xff]
  %5 = vst [vmem:[%s1] sm:$0xff] %v4
  %s6 = scalar_lea.vmem %s1, 8
  %7 = vst [vmem:[%s6] sm:$0xff] %v4

// kernel: tile.59
$region0: #{tile.59}
  %s0 = inlined_call_operand.vmem [shape: f32[16,64], index: 0, kind: input, shape index: {}]
  %s1 = inlined_call_operand.vmem [shape: f32[1,1024], index: 1, kind: output, shape index: {}]
  $region1: #{tile.59} parent=0
    #allocation0 [shape = 'u8[32768]{0}', space=vmem, size = 0x8000, scoped, tag = 'scoped mem for output reshape']
    %v2 = vld [vmem:[%s0] ss:$2 sm:$0xff]
    %vm3 = vcmask 523264
    %4 = vst.msk [vmem:[#allocation0] ss:$8 sm:$0xf] %vm3, %v2
    %5 = vst.msk [vmem:[#allocation0] ss:$8 sm:$0xf0] %vm3, %v2
    %s6 = scalar_lea.vmem %s0, 1
    %v7 = vld [vmem:[%s6] ss:$2 sm:$0xff]
    %8 = vrot.lane.b32.xlu0 %v7, 64
    %v9 = vpop.permute.xlu0 %8
    %vm10 = vcmask 1048064
    %11 = vst.msk [vmem:[#allocation0] ss:$8 sm:$0xf] %vm10, %v9
    %12 = vst.msk [vmem:[#allocation0] ss:$8 sm:$0xf0] %vm10, %v9
    %s14 = sshll.u32 1, 1
    %s15 = ssub.s32 %s14, 1
    %v17 = vld [vmem:[#allocation0] sm:%s15]
    %s18 = sshll.u32 1, 1
    %s19 = ssub.s32 %s18, 1
    %20 = vst [vmem:[%s1] sm:%s19] %v17
    %s21 = scalar_lea.vmem [#allocation0], 8
    %v22 = vld [vmem:[%s21] sm:%s15]
    %s23 = sshll.u32 1, 1
    %s24 = ssub.s32 %s23, 1
    %s25 = scalar_lea.vmem %s1, 1
    %26 = vst [vmem:[%s25] sm:%s24] %v22
    %s27 = scalar_lea.vmem [#allocation0], 16
    %v28 = vld [vmem:[%s27] sm:%s15]
    %s29 = sshll.u32 1, 1
    %s30 = ssub.s32 %s29, 1
    %s31 = smul.addr 1, 2
    %s32 = scalar_lea.vmem %s1, %s31
    %33 = vst [vmem:[%s32] sm:%s30] %v28
    %s34 = scalar_lea.vmem [#allocation0], 24
    %v35 = vld [vmem:[%s34] sm:%s15]
    %s36 = sshll.u32 1, 1
    %s37 = ssub.s32 %s36, 1
    %s38 = smul.addr 1, 3
    %s39 = scalar_lea.vmem %s1, %s38
    %40 = vst [vmem:[%s39] sm:%s37] %v35
    %s41 = scalar_lea.vmem [#allocation0], 32
    %v42 = vld [vmem:[%s41] sm:%s15]
    %s43 = sshll.u32 1, 1
    %s44 = ssub.s32 %s43, 1
    %s45 = smul.addr 1, 4
    %s46 = scalar_lea.vmem %s1, %s45
    %47 = vst [vmem:[%s46] sm:%s44] %v42
    %s48 = scalar_lea.vmem [#allocation0], 40
    %v49 = vld [vmem:[%s48] sm:%s15]
    %s50 = sshll.u32 1, 1
    %s51 = ssub.s32 %s50, 1
    %s52 = smul.addr 1, 5
    %s53 = scalar_lea.vmem %s1, %s52
    %54 = vst [vmem:[%s53] sm:%s51] %v49
    %s55 = scalar_lea.vmem [#allocation0], 48
    %v56 = vld [vmem:[%s55] sm:%s15]
    %s57 = sshll.u32 1, 1
    %s58 = ssub.s32 %s57, 1
    %s59 = smul.addr 1, 6
    %s60 = scalar_lea.vmem %s1, %s59
    %61 = vst [vmem:[%s60] sm:%s58] %v56
    %s62 = scalar_lea.vmem [#allocation0], 56
    %v63 = vld [vmem:[%s62] sm:%s15]
    %s64 = sshll.u32 1, 1
    %s65 = ssub.s32 %s64, 1
    %s66 = smul.addr 1, 7
    %s67 = scalar_lea.vmem %s1, %s66
    %68 = vst [vmem:[%s67] sm:%s65] %v63

// kernel: p4m_resnet_forward.15
$region0: #{p4m_resnet_forward.15}
  #allocation0 [shape = 'u32[]', space=smem, size = 0x4, offset = 0x4, fixed_abs, tag = 'smem constant byte address 0x4 - core index']
  #allocation1 [shape = 'u32[144,128]{1,0:T(1,128)}', space=vmem, size = 0x12000, scoped, tag = 'internal scratch']
  %s0 = inlined_call_operand.vmem [shape: f32[32,1024], index: 0, kind: input, shape index: {}]
  %s1 = inlined_call_operand.vmem [shape: f32[1,1024], index: 1, kind: input, shape index: {}]
  %s2 = inlined_call_operand.vmem [shape: f32[1,1024], index: 2, kind: input, shape index: {}]
  %s3 = inlined_call_operand.vmem [shape: bf16[32,1024], index: 3, kind: output, shape index: {}]
  %s4 = sld [smem:[#allocation0]]
  $region22: #{p4m_resnet_forward.15} parent=0
    _
  %s6 = ssub.s32 1, %s4
  %s7 = scalar_select 0, %s6, %s4
  // Predicated region
  $region2: #{p4m_resnet_forward.15} parent=0 // pred_check
    _
  $region3: #{p4m_resnet_forward.15} parent=0 // pred_check_branch
    %9 = sbr.rel (0) target = $region5
  $region4: #{p4m_resnet_forward.15} parent=0 // pred_region
    _
  $region5: #{p4m_resnet_forward.15} parent=0 // pred_fallthru
    _
  // Predicated region
  $region6: #{p4m_resnet_forward.15} parent=0 // pred_check
    _
  $region7: #{p4m_resnet_forward.15} parent=0 // pred_check_branch
    %11 = sbr.rel (0) target = $region9
  $region8: #{p4m_resnet_forward.15} parent=0 // pred_region
    _
  $region9: #{p4m_resnet_forward.15} parent=0 // pred_fallthru
    _
  // Predicated region
  $region10: #{p4m_resnet_forward.15} parent=0 // pred_check
    _
  $region11: #{p4m_resnet_forward.15} parent=0 // pred_check_branch
    %13 = sbr.rel (0) target = $region13
  $region12: #{p4m_resnet_forward.15} parent=0 // pred_region
    _
  $region13: #{p4m_resnet_forward.15} parent=0 // pred_fallthru
    _
  %v14 = vld [vmem:[%s0] sm:$0xff]
  %v15 = vld [vmem:[%s0 + $0x8] sm:$0xff]
  %v16 = vld [vmem:[%s0 + $0x10] sm:$0xff]
  %v17 = vld [vmem:[%s0 + $0x18] sm:$0xff]
  %v18 = vld [vmem:[%s0 + $0x20] sm:$0xff]
  %v19 = vld [vmem:[%s0 + $0x28] sm:$0xff]
  %v20 = vld [vmem:[%s0 + $0x30] sm:$0xff]
  %v21 = vld [vmem:[%s0 + $0x38] sm:$0xff]
  %v22 = vld [vmem:[%s0 + $0x40] sm:$0xff]
  %v23 = vld [vmem:[%s0 + $0x48] sm:$0xff]
  %v24 = vld [vmem:[%s0 + $0x50] sm:$0xff]
  %v25 = vld [vmem:[%s0 + $0x58] sm:$0xff]
  %v26 = vld [vmem:[%s0 + $0x60] sm:$0xff]
  %v27 = vld [vmem:[%s0 + $0x68] sm:$0xff]
  %v28 = vld [vmem:[%s0 + $0x70] sm:$0xff]
  %v29 = vld [vmem:[%s0 + $0x78] sm:$0xff]
  %v30 = vld [vmem:[%s0 + $0x80] sm:$0xff]
  %v31 = vld [vmem:[%s0 + $0x88] sm:$0xff]
  %v32 = vld [vmem:[%s0 + $0x90] sm:$0xff]
  %v33 = vld [vmem:[%s0 + $0x98] sm:$0xff]
  %v34 = vld [vmem:[%s0 + $0xa0] sm:$0xff]
  %v35 = vld [vmem:[%s0 + $0xa8] sm:$0xff]
  %v36 = vld [vmem:[%s0 + $0xb0] sm:$0xff]
  %v37 = vld [vmem:[%s0 + $0xb8] sm:$0xff]
  %v38 = vld [vmem:[%s0 + $0xc0] sm:$0xff]
  %v39 = vld [vmem:[%s0 + $0xc8] sm:$0xff]
  %v40 = vld [vmem:[%s0 + $0xd0] sm:$0xff]
  %v41 = vld [vmem:[%s0 + $0xd8] sm:$0xff]
  %v42 = vld [vmem:[%s0 + $0xe0] sm:$0xff]
  %v43 = vld [vmem:[%s0 + $0xe8] sm:$0xff]
  %v44 = vld [vmem:[%s0 + $0xf0] sm:$0xff]
  %v45 = vld [vmem:[%s0 + $0xf8] sm:$0xff]
  %v46 = vld [vmem:[%s1] sm:$0xff]
  %v48 = vlaneseq
  %v49 = vshrl.u32 %v48, 7
  %v50 = vsub.s32 0, %v49
  %v51 = vrot.slane %v46, %v50
  %v52 = vlaneseq
  %v53 = vshrl.u32 %v52, 7
  %v54 = vsub.s32 1, %v53
  %v55 = vrot.slane %v46, %v54
  %v56 = vlaneseq
  %v57 = vshrl.u32 %v56, 7
  %v58 = vsub.s32 2, %v57
  %v59 = vrot.slane %v46, %v58
  %v60 = vlaneseq
  %v61 = vshrl.u32 %v60, 7
  %v62 = vsub.s32 3, %v61
  %v63 = vrot.slane %v46, %v62
  %v64 = vlaneseq
  %v65 = vshrl.u32 %v64, 7
  %v66 = vsub.s32 4, %v65
  %v67 = vrot.slane %v46, %v66
  %v68 = vlaneseq
  %v69 = vshrl.u32 %v68, 7
  %v70 = vsub.s32 5, %v69
  %v71 = vrot.slane %v46, %v70
  %v72 = vlaneseq
  %v73 = vshrl.u32 %v72, 7
  %v74 = vsub.s32 6, %v73
  %v75 = vrot.slane %v46, %v74
  %v76 = vlaneseq
  %v77 = vshrl.u32 %v76, 7
  %v78 = vsub.s32 7, %v77
  %v79 = vrot.slane %v46, %v78
  %v88 = vmul.f32 %v14, %v51
  %v89 = vmul.f32 %v15, %v55
  %v90 = vmul.f32 %v16, %v59
  %v91 = vmul.f32 %v17, %v63
  %v92 = vmul.f32 %v18, %v67
  %v93 = vmul.f32 %v19, %v71
  %v94 = vmul.f32 %v20, %v75
  %v95 = vmul.f32 %v21, %v79
  %v96 = vmul.f32 %v22, %v51
  %v97 = vmul.f32 %v23, %v55
  %v98 = vmul.f32 %v24, %v59
  %v99 = vmul.f32 %v25, %v63
  %v100 = vmul.f32 %v26, %v67
  %v101 = vmul.f32 %v27, %v71
  %v102 = vmul.f32 %v28, %v75
  %v103 = vmul.f32 %v29, %v79
  %v104 = vmul.f32 %v30, %v51
  %v105 = vmul.f32 %v31, %v55
  %v106 = vmul.f32 %v32, %v59
  %v107 = vmul.f32 %v33, %v63
  %v108 = vmul.f32 %v34, %v67
  %v109 = vmul.f32 %v35, %v71
  %v110 = vmul.f32 %v36, %v75
  %v111 = vmul.f32 %v37, %v79
  %v112 = vmul.f32 %v38, %v51
  %v113 = vmul.f32 %v39, %v55
  %v114 = vmul.f32 %v40, %v59
  %v115 = vmul.f32 %v41, %v63
  %v116 = vmul.f32 %v42, %v67
  %v117 = vmul.f32 %v43, %v71
  %v118 = vmul.f32 %v44, %v75
  %v119 = vmul.f32 %v45, %v79
  %v120 = vld [vmem:[%s2] sm:$0xff]
  %v122 = vlaneseq
  %v123 = vshrl.u32 %v122, 7
  %v124 = vsub.s32 0, %v123
  %v125 = vrot.slane %v120, %v124
  %v126 = vlaneseq
  %v127 = vshrl.u32 %v126, 7
  %v128 = vsub.s32 1, %v127
  %v129 = vrot.slane %v120, %v128
  %v130 = vlaneseq
  %v131 = vshrl.u32 %v130, 7
  %v132 = vsub.s32 2, %v131
  %v133 = vrot.slane %v120, %v132
  %v134 = vlaneseq
  %v135 = vshrl.u32 %v134, 7
  %v136 = vsub.s32 3, %v135
  %v137 = vrot.slane %v120, %v136
  %v138 = vlaneseq
  %v139 = vshrl.u32 %v138, 7
  %v140 = vsub.s32 4, %v139
  %v141 = vrot.slane %v120, %v140
  %v142 = vlaneseq
  %v143 = vshrl.u32 %v142, 7
  %v144 = vsub.s32 5, %v143
  %v145 = vrot.slane %v120, %v144
  %v146 = vlaneseq
  %v147 = vshrl.u32 %v146, 7
  %v148 = vsub.s32 6, %v147
  %v149 = vrot.slane %v120, %v148
  %v150 = vlaneseq
  %v151 = vshrl.u32 %v150, 7
  %v152 = vsub.s32 7, %v151
  %v153 = vrot.slane %v120, %v152
  %v162 = vadd.f32 %v88, %v125
  %v163 = vadd.f32 %v89, %v129
  %v164 = vadd.f32 %v90, %v133
  %v165 = vadd.f32 %v91, %v137
  %v166 = vadd.f32 %v92, %v141
  %v167 = vadd.f32 %v93, %v145
  %v168 = vadd.f32 %v94, %v149
  %v169 = vadd.f32 %v95, %v153
  %v170 = vadd.f32 %v96, %v125
  %v171 = vadd.f32 %v97, %v129
  %v172 = vadd.f32 %v98, %v133
  %v173 = vadd.f32 %v99, %v137
  %v174 = vadd.f32 %v100, %v141
  %v175 = vadd.f32 %v101, %v145
  %v176 = vadd.f32 %v102, %v149
  %v177 = vadd.f32 %v103, %v153
  %v178 = vadd.f32 %v104, %v125
  %v179 = vadd.f32 %v105, %v129
  %v180 = vadd.f32 %v106, %v133
  %v181 = vadd.f32 %v107, %v137
  %v182 = vadd.f32 %v108, %v141
  %v183 = vadd.f32 %v109, %v145
  %v184 = vadd.f32 %v110, %v149
  %v185 = vadd.f32 %v111, %v153
  %v186 = vadd.f32 %v112, %v125
  %v187 = vadd.f32 %v113, %v129
  %v188 = vadd.f32 %v114, %v133
  %v189 = vadd.f32 %v115, %v137
  %v190 = vadd.f32 %v116, %v141
  %v191 = vadd.f32 %v117, %v145
  %v192 = vadd.f32 %v118, %v149
  %v193 = vadd.f32 %v119, %v153
  %v194 = vmax.f32 %v162, 0.0
  %v195 = vmax.f32 %v163, 0.0
  %v196 = vmax.f32 %v164, 0.0
  %v197 = vmax.f32 %v165, 0.0
  %v198 = vmax.f32 %v166, 0.0
  %v199 = vmax.f32 %v167, 0.0
  %v200 = vmax.f32 %v168, 0.0
  %v201 = vmax.f32 %v169, 0.0
  %v202 = vmax.f32 %v170, 0.0
  %v203 = vmax.f32 %v171, 0.0
  %v204 = vmax.f32 %v172, 0.0
  %v205 = vmax.f32 %v173, 0.0
  %v206 = vmax.f32 %v174, 0.0
  %v207 = vmax.f32 %v175, 0.0
  %v208 = vmax.f32 %v176, 0.0
  %v209 = vmax.f32 %v177, 0.0
  %v210 = vmax.f32 %v178, 0.0
  %v211 = vmax.f32 %v179, 0.0
  %v212 = vmax.f32 %v180, 0.0
  %v213 = vmax.f32 %v181, 0.0
  %v214 = vmax.f32 %v182, 0.0
  %v215 = vmax.f32 %v183, 0.0
  %v216 = vmax.f32 %v184, 0.0
  %v217 = vmax.f32 %v185, 0.0
  %v218 = vmax.f32 %v186, 0.0
  %v219 = vmax.f32 %v187, 0.0
  %v220 = vmax.f32 %v188, 0.0
  %v221 = vmax.f32 %v189, 0.0
  %v222 = vmax.f32 %v190, 0.0
  %v223 = vmax.f32 %v191, 0.0
  %v224 = vmax.f32 %v192, 0.0
  %v225 = vmax.f32 %v193, 0.0
  %v226 = vpack.c.bf16 %v202, %v194
  %v227 = vpack.c.bf16 %v203, %v195
  %v228 = vpack.c.bf16 %v204, %v196
  %v229 = vpack.c.bf16 %v205, %v197
  %v230 = vpack.c.bf16 %v206, %v198
  %v231 = vpack.c.bf16 %v207, %v199
  %v232 = vpack.c.bf16 %v208, %v200
  %v233 = vpack.c.bf16 %v209, %v201
  %v234 = vpack.c.bf16 %v218, %v210
  %v235 = vpack.c.bf16 %v219, %v211
  %v236 = vpack.c.bf16 %v220, %v212
  %v237 = vpack.c.bf16 %v221, %v213
  %v238 = vpack.c.bf16 %v222, %v214
  %v239 = vpack.c.bf16 %v223, %v215
  %v240 = vpack.c.bf16 %v224, %v216
  %v241 = vpack.c.bf16 %v225, %v217
  %v258 = vunpack.c.l.b16 %v226
  %v259 = vunpack.c.l.b16 %v227
  %v260 = vunpack.c.l.b16 %v228
  %v261 = vunpack.c.l.b16 %v229
  %v262 = vunpack.c.l.b16 %v230
  %v263 = vunpack.c.l.b16 %v231
  %v264 = vunpack.c.l.b16 %v232
  %v265 = vunpack.c.l.b16 %v233
  %v266 = vunpack.c.h.b16 %v226
  %v267 = vunpack.c.h.b16 %v227
  %v268 = vunpack.c.h.b16 %v228
  %v269 = vunpack.c.h.b16 %v229
  %v270 = vunpack.c.h.b16 %v230
  %v271 = vunpack.c.h.b16 %v231
  %v272 = vunpack.c.h.b16 %v232
  %v273 = vunpack.c.h.b16 %v233
  %v274 = vunpack.c.l.b16 %v234
  %v275 = vunpack.c.l.b16 %v235
  %v276 = vunpack.c.l.b16 %v236
  %v277 = vunpack.c.l.b16 %v237
  %v278 = vunpack.c.l.b16 %v238
  %v279 = vunpack.c.l.b16 %v239
  %v280 = vunpack.c.l.b16 %v240
  %v281 = vunpack.c.l.b16 %v241
  %v282 = vunpack.c.h.b16 %v234
  %v283 = vunpack.c.h.b16 %v235
  %v284 = vunpack.c.h.b16 %v236
  %v285 = vunpack.c.h.b16 %v237
  %v286 = vunpack.c.h.b16 %v238
  %v287 = vunpack.c.h.b16 %v239
  %v288 = vunpack.c.h.b16 %v240
  %v289 = vunpack.c.h.b16 %v241
  %v290 = vpack.c.b16 %v259, %v258
  %v291 = vpack.c.b16 %v261, %v260
  %v292 = vpack.c.b16 %v263, %v262
  %v293 = vpack.c.b16 %v265, %v264
  %v294 = vpack.c.b16 %v267, %v266
  %v295 = vpack.c.b16 %v269, %v268
  %v296 = vpack.c.b16 %v271, %v270
  %v297 = vpack.c.b16 %v273, %v272
  %v298 = vpack.c.b16 %v275, %v274
  %v299 = vpack.c.b16 %v277, %v276
  %v300 = vpack.c.b16 %v279, %v278
  %v301 = vpack.c.b16 %v281, %v280
  %v302 = vpack.c.b16 %v283, %v282
  %v303 = vpack.c.b16 %v285, %v284
  %v304 = vpack.c.b16 %v287, %v286
  %v305 = vpack.c.b16 %v289, %v288
  %322 = vst [vmem:[%s3] sm:$0xff] %v290
  %323 = vst [vmem:[%s3 + $0x8] sm:$0xff] %v291
  %324 = vst [vmem:[%s3 + $0x10] sm:$0xff] %v292
  %325 = vst [vmem:[%s3 + $0x18] sm:$0xff] %v293
  %326 = vst [vmem:[%s3 + $0x20] sm:$0xff] %v294
  %327 = vst [vmem:[%s3 + $0x28] sm:$0xff] %v295
  %328 = vst [vmem:[%s3 + $0x30] sm:$0xff] %v296
  %329 = vst [vmem:[%s3 + $0x38] sm:$0xff] %v297
  %330 = vst [vmem:[%s3 + $0x40] sm:$0xff] %v298
  %331 = vst [vmem:[%s3 + $0x48] sm:$0xff] %v299
  %332 = vst [vmem:[%s3 + $0x50] sm:$0xff] %v300
  %333 = vst [vmem:[%s3 + $0x58] sm:$0xff] %v301
  %334 = vst [vmem:[%s3 + $0x60] sm:$0xff] %v302
  %335 = vst [vmem:[%s3 + $0x68] sm:$0xff] %v303
  %336 = vst [vmem:[%s3 + $0x70] sm:$0xff] %v304
  %337 = vst [vmem:[%s3 + $0x78] sm:$0xff] %v305
  // Predicated region
  $region14: #{p4m_resnet_forward.15} parent=0 // pred_check
    _
  $region15: #{p4m_resnet_forward.15} parent=0 // pred_check_branch
    %339 = sbr.rel (0) target = $region17
  $region16: #{p4m_resnet_forward.15} parent=0 // pred_region
    _
  $region17: #{p4m_resnet_forward.15} parent=0 // pred_fallthru
    _
  // Predicated region
  $region18: #{p4m_resnet_forward.15} parent=0 // pred_check
    _
  $region19: #{p4m_resnet_forward.15} parent=0 // pred_check_branch
    %341 = sbr.rel (0) target = $region21
  $region20: #{p4m_resnet_forward.15} parent=0 // pred_region
    _
  $region21: #{p4m_resnet_forward.15} parent=0 // pred_fallthru
    _

// kernel: p4m_resnet_forward.16
$region0: #{p4m_resnet_forward.16}
  #allocation0 [shape = 'u32[]', space=smem, size = 0x4, offset = 0x4, fixed_abs, tag = 'smem constant byte address 0x4 - core index']
  #allocation1 [shape = 'u32[144,128]{1,0:T(1,128)}', space=vmem, size = 0x12000, scoped, tag = 'internal scratch']
  %s0 = inlined_call_operand.vmem [shape: bf16[512,576], index: 0, kind: input, shape index: {}]
  %s1 = inlined_call_operand.vmem [shape: bf16[576,64], index: 1, kind: input, shape index: {}]
  %s2 = inlined_call_operand.vmem [shape: f32[512,64], index: 2, kind: output, shape index: {}]
  %s3 = sld [smem:[#allocation0]]
  $region41: #{p4m_resnet_forward.16} parent=0
    _
  %s5 = ssub.s32 1, %s3
  %s6 = scalar_select 0, %s5, %s3
  loop: start=0, step=1, limit=4
  $region2: #{p4m_resnet_forward.16} parent=0 // loop_pre_header
    _
  $region3: #{p4m_resnet_forward.16} parent=0 // loop_header
    %s8 = sphi 0, %s12
    %p9 = scmp.ge.s32.totalorder %s8, 4
    %s18 = sphi 0, %s20
    %s21 = sphi 0, %s18
    %s22 = sphi 0, %s21
    %s38 = sphi 0, %s22
    %s42 = sphi 0, %s42
    %s44 = sphi 0, %s42
    %s45 = sphi 0, %s44
    %s59 = sphi 0, %s45
    %s65 = sphi 0, %s67
    %s68 = sphi 0, %s65
    %s69 = sphi 0, %s68
    %s85 = sphi 0, %s69
  $region4: #{p4m_resnet_forward.16} parent=0 // loop_header_branch
    %11 = sbr.rel (%p9) target = $region8
  $region5: #{p4m_resnet_forward.16} parent=0 // loop_body
    %s13 = ssub.s32 %s8, 1
    %s14 = ssub.s32 %s8, 2
    %s15 = sadd.s32 %s8, 1
    %s16 = ssub.s32 %s8, %s15
    %p17 = scmp.eq.s32.totalorder %s16, 0
    %s19 = sadd.s32 %s18, 1
    %s20 = scalar_select %p17, %s18, %s19
    %p23 = pneg %p17
    %p24 = scmp.eq.s32.totalorder %s8, 1
    %p25 = por %p23, %p24
    %p26 = scmp.ne.s32.totalorder %s18, %s21
    %p27 = scmp.eq.s32.totalorder %s8, 0
    %p28 = por %p26, %p27
    %p29 = scmp.ne.s32.totalorder %s18, %s21
    %p30 = scmp.eq.s32.totalorder %s13, 1
    %p31 = por %p29, %p30
    %p32 = scmp.ne.s32.totalorder %s21, %s22
    %p33 = scmp.eq.s32.totalorder %s13, 0
    %p34 = por %p32, %p33
    %p35 = scmp.ne.s32.totalorder %s21, %s22
    %p36 = scmp.eq.s32.totalorder %s14, 1
    %p37 = por %p35, %p36
    %p39 = scmp.ne.s32.totalorder %s22, %s38
    %p40 = scmp.eq.s32.totalorder %s14, 0
    %p41 = por %p39, %p40
    %s43 = sadd.s32 %s42, 1
    %p46 = scmp.eq.s32.totalorder %s8, 1
    %p47 = scmp.ne.s32.totalorder %s42, %s44
    %p48 = scmp.eq.s32.totalorder %s8, 0
    %p49 = por %p47, %p48
    %p50 = scmp.ne.s32.totalorder %s42, %s44
    %p51 = scmp.eq.s32.totalorder %s13, 1
    %p52 = por %p50, %p51
    %p53 = scmp.ne.s32.totalorder %s44, %s45
    %p54 = scmp.eq.s32.totalorder %s13, 0
    %p55 = por %p53, %p54
    %p56 = scmp.ne.s32.totalorder %s44, %s45
    %p57 = scmp.eq.s32.totalorder %s14, 1
    %p58 = por %p56, %p57
    %p60 = scmp.ne.s32.totalorder %s45, %s59
    %p61 = scmp.eq.s32.totalorder %s14, 0
    %p62 = por %p60, %p61
    %s63 = ssub.s32 %s8, %s15
    %p64 = scmp.eq.s32.totalorder %s63, 0
    %s66 = sadd.s32 %s65, 1
    %s67 = scalar_select %p64, %s65, %s66
    %p70 = pneg %p64
    %p71 = scmp.eq.s32.totalorder %s8, 1
    %p72 = por %p70, %p71
    %p73 = scmp.ne.s32.totalorder %s65, %s68
    %p74 = scmp.eq.s32.totalorder %s8, 0
    %p75 = por %p73, %p74
    %p76 = scmp.ne.s32.totalorder %s65, %s68
    %p77 = scmp.eq.s32.totalorder %s13, 1
    %p78 = por %p76, %p77
    %p79 = scmp.ne.s32.totalorder %s68, %s69
    %p80 = scmp.eq.s32.totalorder %s13, 0
    %p81 = por %p79, %p80
    %p82 = scmp.ne.s32.totalorder %s68, %s69
    %p83 = scmp.eq.s32.totalorder %s14, 1
    %p84 = por %p82, %p83
    %p86 = scmp.ne.s32.totalorder %s69, %s85
    %p87 = scmp.eq.s32.totalorder %s14, 0
    %p88 = por %p86, %p87
    %p89 = scmp.le.s32.totalorder 1, %s8
    %p90 = scmp.lt.s32.totalorder %s8, 3
    %p91 = pnand %p89, %p90
    %p92 = pneg %p91
    // Predicated region
    $region9: #{p4m_resnet_forward.16} parent=5 // pred_check
      _
    $region10: #{p4m_resnet_forward.16} parent=5 // pred_check_branch
      %94 = sbr.rel (%p91) target = $region12
    $region11: #{p4m_resnet_forward.16} parent=5 // pred_region
      %s95 = ssub.s32 %s8, 1
      // Predicated region
      $region13: #{p4m_resnet_forward.16} parent=11 // pred_check
        %p96 = pneg %p55
      $region14: #{p4m_resnet_forward.16} parent=11 // pred_check_branch
        %98 = sbr.rel (%p96) target = $region16
      $region15: #{p4m_resnet_forward.16} parent=11 // pred_region
        _
      $region16: #{p4m_resnet_forward.16} parent=11 // pred_fallthru
        _
    $region12: #{p4m_resnet_forward.16} parent=5 // pred_fallthru
      _
    %p99 = scmp.lt.s32.totalorder %s8, 2
    // Predicated region
    $region17: #{p4m_resnet_forward.16} parent=5 // pred_check
      %p100 = pneg %p99
    $region18: #{p4m_resnet_forward.16} parent=5 // pred_check_branch
      %102 = sbr.rel (%p100) target = $region20
    $region19: #{p4m_resnet_forward.16} parent=5 // pred_region
      // Predicated region
      $region21: #{p4m_resnet_forward.16} parent=19 // pred_check
        %p103 = pneg %p28
      $region22: #{p4m_resnet_forward.16} parent=19 // pred_check_branch
        %105 = sbr.rel (%p103) target = $region24
      $region23: #{p4m_resnet_forward.16} parent=19 // pred_region
        %s106 = smul.u32 32, %s8
        %p107 = scmp.lt.s32.totalorder %s106, 63
        %s108 = scalar_select %p107, %s106, 63
        %s109 = smul.addr %s108, 5
        %s110 = smul.addr %s109, 4
        %s111 = scalar_lea.vmem %s0, %s110
        %s112 = smul.u32 32, %s8
      $region24: #{p4m_resnet_forward.16} parent=19 // pred_fallthru
        _
    $region20: #{p4m_resnet_forward.16} parent=5 // pred_fallthru
      _
    %p113 = scmp.le.s32.totalorder 1, %s8
    %p114 = scmp.lt.s32.totalorder %s8, 3
    %p115 = pnand %p113, %p114
    %p116 = pneg %p115
    // Predicated region
    $region25: #{p4m_resnet_forward.16} parent=5 // pred_check
      _
    $region26: #{p4m_resnet_forward.16} parent=5 // pred_check_branch
      %118 = sbr.rel (%p115) target = $region28
    $region27: #{p4m_resnet_forward.16} parent=5 // pred_region
      %s119 = ssub.s32 %s8, 1
      %s120 = smul.u32 32, %s13
      %p121 = scmp.lt.s32.totalorder %s120, 63
      %s122 = scalar_select %p121, %s120, 63
      %s123 = smul.addr %s122, 5
      %s124 = smul.addr %s123, 4
      %s125 = scalar_lea.vmem %s0, %s124
      %p126 = pneg %p34
      %p127 = pneg %p31
      %p128 = pneg %p55
      %p129 = pneg %p52
      %p130 = pneg %p81
      %p131 = pneg %p78
      %s132 = smul.u32 32, %s13
      %p133 = scmp.lt.s32.totalorder %s132, 63
      %s134 = scalar_select %p133, %s132, 63
      %s135 = smul.addr %s134, 8
      %s136 = scalar_lea.vmem %s2, %s135
      %s137 = smul.u32 32, %s13
      %p138 = scmp.lt.s32.totalorder %s137, 63
      %s139 = scalar_select %p138, %s137, 63
      %s140 = smul.addr %s139, 5
      %s141 = smul.addr %s140, 4
      %s142 = scalar_lea.vmem %s0, %s141
      %s143 = smul.u32 32, %s13
      %s144 = smul.u32 32, %s13
      %p145 = scmp.lt.s32.totalorder %s144, 63
      %s146 = scalar_select %p145, %s144, 63
      %s147 = smul.addr %s146, 8
      %s148 = scalar_lea.vmem %s2, %s147
      %s149 = smul.u32 32, %s13
      %v151 = vld [vmem:[%s142] sm:$0xff]
      %v152 = vld [vmem:[%s142 + $0x8] sm:$0xff]
      %v153 = vld [vmem:[%s142 + $0x10] sm:$0xf]
      %v154 = vld [vmem:[%s142 + $0x14] sm:$0xff]
      %v155 = vld [vmem:[%s142 + $0x1c] sm:$0xff]
      %v156 = vld [vmem:[%s142 + $0x24] sm:$0xf]
      %v157 = vld [vmem:[%s142 + $0x28] sm:$0xff]
      %v158 = vld [vmem:[%s142 + $0x30] sm:$0xff]
      %v159 = vld [vmem:[%s142 + $0x38] sm:$0xf]
      %v160 = vld [vmem:[%s142 + $0x3c] sm:$0xff]
      %v161 = vld [vmem:[%s142 + $0x44] sm:$0xff]
      %v162 = vld [vmem:[%s142 + $0x4c] sm:$0xf]
      %v163 = vld [vmem:[%s142 + $0x50] sm:$0xff]
      %v164 = vld [vmem:[%s142 + $0x58] sm:$0xff]
      %v165 = vld [vmem:[%s142 + $0x60] sm:$0xf]
      %v166 = vld [vmem:[%s142 + $0x64] sm:$0xff]
      %v167 = vld [vmem:[%s142 + $0x6c] sm:$0xff]
      %v168 = vld [vmem:[%s142 + $0x74] sm:$0xf]
      %v169 = vld [vmem:[%s142 + $0x78] sm:$0xff]
      %v170 = vld [vmem:[%s142 + $0x80] sm:$0xff]
      %v171 = vld [vmem:[%s142 + $0x88] sm:$0xf]
      %v172 = vld [vmem:[%s142 + $0x8c] sm:$0xff]
      %v173 = vld [vmem:[%s142 + $0x94] sm:$0xff]
      %v174 = vld [vmem:[%s142 + $0x9c] sm:$0xf]
      %v175 = vld [vmem:[%s142 + $0xa0] sm:$0xff]
      %v176 = vld [vmem:[%s142 + $0xa8] sm:$0xff]
      %v177 = vld [vmem:[%s142 + $0xb0] sm:$0xf]
      %v178 = vld [vmem:[%s142 + $0xb4] sm:$0xff]
      %v179 = vld [vmem:[%s142 + $0xbc] sm:$0xff]
      %v180 = vld [vmem:[%s142 + $0xc4] sm:$0xf]
      %v181 = vld [vmem:[%s142 + $0xc8] sm:$0xff]
      %v182 = vld [vmem:[%s142 + $0xd0] sm:$0xff]
      %v183 = vld [vmem:[%s142 + $0xd8] sm:$0xf]
      %v184 = vld [vmem:[%s142 + $0xdc] sm:$0xff]
      %v185 = vld [vmem:[%s142 + $0xe4] sm:$0xff]
      %v186 = vld [vmem:[%s142 + $0xec] sm:$0xf]
      %v187 = vld [vmem:[%s142 + $0xf0] sm:$0xff]
      %v188 = vld [vmem:[%s142 + $0xf8] sm:$0xff]
      %v189 = vld [vmem:[%s142 + $0x100] sm:$0xf]
      %v190 = vld [vmem:[%s142 + $0x104] sm:$0xff]
      %v191 = vld [vmem:[%s142 + $0x10c] sm:$0xff]
      %v192 = vld [vmem:[%s142 + $0x114] sm:$0xf]
      %v193 = vld [vmem:[%s142 + $0x118] sm:$0xff]
      %v194 = vld [vmem:[%s142 + $0x120] sm:$0xff]
      %v195 = vld [vmem:[%s142 + $0x128] sm:$0xf]
      %v196 = vld [vmem:[%s142 + $0x12c] sm:$0xff]
      %v197 = vld [vmem:[%s142 + $0x134] sm:$0xff]
      %v198 = vld [vmem:[%s142 + $0x13c] sm:$0xf]
      %v199 = vld [vmem:[%s142 + $0x140] sm:$0xff]
      %v200 = vld [vmem:[%s142 + $0x148] sm:$0xff]
      %v201 = vld [vmem:[%s142 + $0x150] sm:$0xf]
      %v202 = vld [vmem:[%s142 + $0x154] sm:$0xff]
      %v203 = vld [vmem:[%s142 + $0x15c] sm:$0xff]
      %v204 = vld [vmem:[%s142 + $0x164] sm:$0xf]
      %v205 = vld [vmem:[%s142 + $0x168] sm:$0xff]
      %v206 = vld [vmem:[%s142 + $0x170] sm:$0xff]
      %v207 = vld [vmem:[%s142 + $0x178] sm:$0xf]
      %v208 = vld [vmem:[%s142 + $0x17c] sm:$0xff]
      %v209 = vld [vmem:[%s142 + $0x184] sm:$0xff]
      %v210 = vld [vmem:[%s142 + $0x18c] sm:$0xf]
      %v211 = vld [vmem:[%s142 + $0x190] sm:$0xff]
      %v212 = vld [vmem:[%s142 + $0x198] sm:$0xff]
      %v213 = vld [vmem:[%s142 + $0x1a0] sm:$0xf]
      %v214 = vld [vmem:[%s142 + $0x1a4] sm:$0xff]
      %v215 = vld [vmem:[%s142 + $0x1ac] sm:$0xff]
      %v216 = vld [vmem:[%s142 + $0x1b4] sm:$0xf]
      %v217 = vld [vmem:[%s142 + $0x1b8] sm:$0xff]
      %v218 = vld [vmem:[%s142 + $0x1c0] sm:$0xff]
      %v219 = vld [vmem:[%s142 + $0x1c8] sm:$0xf]
      %v220 = vld [vmem:[%s142 + $0x1cc] sm:$0xff]
      %v221 = vld [vmem:[%s142 + $0x1d4] sm:$0xff]
      %v222 = vld [vmem:[%s142 + $0x1dc] sm:$0xf]
      %v223 = vld [vmem:[%s142 + $0x1e0] sm:$0xff]
      %v224 = vld [vmem:[%s142 + $0x1e8] sm:$0xff]
      %v225 = vld [vmem:[%s142 + $0x1f0] sm:$0xf]
      %v226 = vld [vmem:[%s142 + $0x1f4] sm:$0xff]
      %v227 = vld [vmem:[%s142 + $0x1fc] sm:$0xff]
      %v228 = vld [vmem:[%s142 + $0x204] sm:$0xf]
      %v229 = vld [vmem:[%s142 + $0x208] sm:$0xff]
      %v230 = vld [vmem:[%s142 + $0x210] sm:$0xff]
      %v231 = vld [vmem:[%s142 + $0x218] sm:$0xf]
      %v232 = vld [vmem:[%s142 + $0x21c] sm:$0xff]
      %v233 = vld [vmem:[%s142 + $0x224] sm:$0xff]
      %v234 = vld [vmem:[%s142 + $0x22c] sm:$0xf]
      %v235 = vld [vmem:[%s142 + $0x230] sm:$0xff]
      %v236 = vld [vmem:[%s142 + $0x238] sm:$0xff]
      %v237 = vld [vmem:[%s142 + $0x240] sm:$0xf]
      %v238 = vld [vmem:[%s142 + $0x244] sm:$0xff]
      %v239 = vld [vmem:[%s142 + $0x24c] sm:$0xff]
      %v240 = vld [vmem:[%s142 + $0x254] sm:$0xf]
      %v241 = vld [vmem:[%s142 + $0x258] sm:$0xff]
      %v242 = vld [vmem:[%s142 + $0x260] sm:$0xff]
      %v243 = vld [vmem:[%s142 + $0x268] sm:$0xf]
      %v244 = vld [vmem:[%s142 + $0x26c] sm:$0xff]
      %v245 = vld [vmem:[%s142 + $0x274] sm:$0xff]
      %v246 = vld [vmem:[%s142 + $0x27c] sm:$0xf]
      %v247 = vld [vmem:[%s1] sm:$0xf]
      %v248 = vld [vmem:[%s1 + $0x4] sm:$0xf]
      %v249 = vld [vmem:[%s1 + $0x8] sm:$0xf]
      %v250 = vld [vmem:[%s1 + $0xc] sm:$0xf]
      %v251 = vld [vmem:[%s1 + $0x10] sm:$0xf]
      %v252 = vld [vmem:[%s1 + $0x14] sm:$0xf]
      %v253 = vld [vmem:[%s1 + $0x18] sm:$0xf]
      %v254 = vld [vmem:[%s1 + $0x1c] sm:$0xf]
      %v255 = vld [vmem:[%s1 + $0x20] sm:$0xf]
      %v256 = vld [vmem:[%s1 + $0x24] sm:$0xf]
      %v257 = vld [vmem:[%s1 + $0x28] sm:$0xf]
      %v258 = vld [vmem:[%s1 + $0x2c] sm:$0xf]
      %v259 = vld [vmem:[%s1 + $0x30] sm:$0xf]
      %v260 = vld [vmem:[%s1 + $0x34] sm:$0xf]
      %v261 = vld [vmem:[%s1 + $0x38] sm:$0xf]
      %v262 = vld [vmem:[%s1 + $0x3c] sm:$0xf]
      %v263 = vld [vmem:[%s1 + $0x40] sm:$0xf]
      %v264 = vld [vmem:[%s1 + $0x44] sm:$0xf]
      %v265 = vld [vmem:[%s1 + $0x48] sm:$0xf]
      %v266 = vld [vmem:[%s1 + $0x4c] sm:$0xf]
      %v267 = vld [vmem:[%s1 + $0x50] sm:$0xf]
      %v268 = vld [vmem:[%s1 + $0x54] sm:$0xf]
      %v269 = vld [vmem:[%s1 + $0x58] sm:$0xf]
      %v270 = vld [vmem:[%s1 + $0x5c] sm:$0xf]
      %v271 = vld [vmem:[%s1 + $0x60] sm:$0xf]
      %v272 = vld [vmem:[%s1 + $0x64] sm:$0xf]
      %v273 = vld [vmem:[%s1 + $0x68] sm:$0xf]
      %v274 = vld [vmem:[%s1 + $0x6c] sm:$0xf]
      %v275 = vld [vmem:[%s1 + $0x70] sm:$0xf]
      %v276 = vld [vmem:[%s1 + $0x74] sm:$0xf]
      %v277 = vld [vmem:[%s1 + $0x78] sm:$0xf]
      %v278 = vld [vmem:[%s1 + $0x7c] sm:$0xf]
      %v279 = vld [vmem:[%s1 + $0x80] sm:$0xf]
      %v280 = vld [vmem:[%s1 + $0x84] sm:$0xf]
      %v281 = vld [vmem:[%s1 + $0x88] sm:$0xf]
      %v282 = vld [vmem:[%s1 + $0x8c] sm:$0xf]
      %v283 = vld [vmem:[%s1 + $0x90] sm:$0xf]
      %v284 = vld [vmem:[%s1 + $0x94] sm:$0xf]
      %v285 = vld [vmem:[%s1 + $0x98] sm:$0xf]
      %v286 = vld [vmem:[%s1 + $0x9c] sm:$0xf]
      %v287 = vld [vmem:[%s1 + $0xa0] sm:$0xf]
      %v288 = vld [vmem:[%s1 + $0xa4] sm:$0xf]
      %v289 = vld [vmem:[%s1 + $0xa8] sm:$0xf]
      %v290 = vld [vmem:[%s1 + $0xac] sm:$0xf]
      %v291 = vld [vmem:[%s1 + $0xb0] sm:$0xf]
      %v292 = vld [vmem:[%s1 + $0xb4] sm:$0xf]
      %v293 = vld [vmem:[%s1 + $0xb8] sm:$0xf]
      %v294 = vld [vmem:[%s1 + $0xbc] sm:$0xf]
      %v295 = vld [vmem:[%s1 + $0xc0] sm:$0xf]
      %v296 = vld [vmem:[%s1 + $0xc4] sm:$0xf]
      %v297 = vld [vmem:[%s1 + $0xc8] sm:$0xf]
      %v298 = vld [vmem:[%s1 + $0xcc] sm:$0xf]
      %v299 = vld [vmem:[%s1 + $0xd0] sm:$0xf]
      %v300 = vld [vmem:[%s1 + $0xd4] sm:$0xf]
      %v301 = vld [vmem:[%s1 + $0xd8] sm:$0xf]
      %v302 = vld [vmem:[%s1 + $0xdc] sm:$0xf]
      %v303 = vld [vmem:[%s1 + $0xe0] sm:$0xf]
      %v304 = vld [vmem:[%s1 + $0xe4] sm:$0xf]
      %v305 = vld [vmem:[%s1 + $0xe8] sm:$0xf]
      %v306 = vld [vmem:[%s1 + $0xec] sm:$0xf]
      %v307 = vld [vmem:[%s1 + $0xf0] sm:$0xf]
      %v308 = vld [vmem:[%s1 + $0xf4] sm:$0xf]
      %v309 = vld [vmem:[%s1 + $0xf8] sm:$0xf]
      %v310 = vld [vmem:[%s1 + $0xfc] sm:$0xf]
      %v311 = vld [vmem:[%s1 + $0x100] sm:$0xf]
      %v312 = vld [vmem:[%s1 + $0x104] sm:$0xf]
      %v313 = vld [vmem:[%s1 + $0x108] sm:$0xf]
      %v314 = vld [vmem:[%s1 + $0x10c] sm:$0xf]
      %v315 = vld [vmem:[%s1 + $0x110] sm:$0xf]
      %v316 = vld [vmem:[%s1 + $0x114] sm:$0xf]
      %v317 = vld [vmem:[%s1 + $0x118] sm:$0xf]
      %v318 = vld [vmem:[%s1 + $0x11c] sm:$0xf]
      %v415 = vunpack.c.l.b16 %v151
      %v416 = vunpack.c.h.b16 %v151
      %v417 = vunpack.c.l.b16 %v152
      %v418 = vunpack.c.h.b16 %v152
      %v419 = vunpack.c.l.b16 %v153
      %v420 = vunpack.c.l.b16 %v154
      %v421 = vunpack.c.h.b16 %v154
      %v422 = vunpack.c.l.b16 %v155
      %v423 = vunpack.c.h.b16 %v155
      %v424 = vunpack.c.l.b16 %v156
      %v425 = vunpack.c.l.b16 %v157
      %v426 = vunpack.c.h.b16 %v157
      %v427 = vunpack.c.l.b16 %v158
      %v428 = vunpack.c.h.b16 %v158
      %v429 = vunpack.c.l.b16 %v159
      %v430 = vunpack.c.l.b16 %v160
      %v431 = vunpack.c.h.b16 %v160
      %v432 = vunpack.c.l.b16 %v161
      %v433 = vunpack.c.h.b16 %v161
      %v434 = vunpack.c.l.b16 %v162
      %v435 = vunpack.c.l.b16 %v163
      %v436 = vunpack.c.h.b16 %v163
      %v437 = vunpack.c.l.b16 %v164
      %v438 = vunpack.c.h.b16 %v164
      %v439 = vunpack.c.l.b16 %v165
      %v440 = vunpack.c.l.b16 %v166
      %v441 = vunpack.c.h.b16 %v166
      %v442 = vunpack.c.l.b16 %v167
      %v443 = vunpack.c.h.b16 %v167
      %v444 = vunpack.c.l.b16 %v168
      %v445 = vunpack.c.l.b16 %v169
      %v446 = vunpack.c.h.b16 %v169
      %v447 = vunpack.c.l.b16 %v170
      %v448 = vunpack.c.h.b16 %v170
      %v449 = vunpack.c.l.b16 %v171
      %v450 = vunpack.c.l.b16 %v172
      %v451 = vunpack.c.h.b16 %v172
      %v452 = vunpack.c.l.b16 %v173
      %v453 = vunpack.c.h.b16 %v173
      %v454 = vunpack.c.l.b16 %v174
      %v455 = vunpack.c.l.b16 %v175
      %v456 = vunpack.c.h.b16 %v175
      %v457 = vunpack.c.l.b16 %v176
      %v458 = vunpack.c.h.b16 %v176
      %v459 = vunpack.c.l.b16 %v177
      %v460 = vunpack.c.l.b16 %v178
      %v461 = vunpack.c.h.b16 %v178
      %v462 = vunpack.c.l.b16 %v179
      %v463 = vunpack.c.h.b16 %v179
      %v464 = vunpack.c.l.b16 %v180
      %v465 = vunpack.c.l.b16 %v181
      %v466 = vunpack.c.h.b16 %v181
      %v467 = vunpack.c.l.b16 %v182
      %v468 = vunpack.c.h.b16 %v182
      %v469 = vunpack.c.l.b16 %v183
      %v470 = vunpack.c.l.b16 %v184
      %v471 = vunpack.c.h.b16 %v184
      %v472 = vunpack.c.l.b16 %v185
      %v473 = vunpack.c.h.b16 %v185
      %v474 = vunpack.c.l.b16 %v186
      %v475 = vunpack.c.l.b16 %v187
      %v476 = vunpack.c.h.b16 %v187
      %v477 = vunpack.c.l.b16 %v188
      %v478 = vunpack.c.h.b16 %v188
      %v479 = vunpack.c.l.b16 %v189
      %v480 = vunpack.c.l.b16 %v190
      %v481 = vunpack.c.h.b16 %v190
      %v482 = vunpack.c.l.b16 %v191
      %v483 = vunpack.c.h.b16 %v191
      %v484 = vunpack.c.l.b16 %v192
      %v485 = vunpack.c.l.b16 %v193
      %v486 = vunpack.c.h.b16 %v193
      %v487 = vunpack.c.l.b16 %v194
      %v488 = vunpack.c.h.b16 %v194
      %v489 = vunpack.c.l.b16 %v195
      %v490 = vunpack.c.l.b16 %v196
      %v491 = vunpack.c.h.b16 %v196
      %v492 = vunpack.c.l.b16 %v197
      %v493 = vunpack.c.h.b16 %v197
      %v494 = vunpack.c.l.b16 %v198
      %v495 = vunpack.c.l.b16 %v199
      %v496 = vunpack.c.h.b16 %v199
      %v497 = vunpack.c.l.b16 %v200
      %v498 = vunpack.c.h.b16 %v200
      %v499 = vunpack.c.l.b16 %v201
      %v500 = vunpack.c.l.b16 %v202
      %v501 = vunpack.c.h.b16 %v202
      %v502 = vunpack.c.l.b16 %v203
      %v503 = vunpack.c.h.b16 %v203
      %v504 = vunpack.c.l.b16 %v204
      %v505 = vunpack.c.l.b16 %v205
      %v506 = vunpack.c.h.b16 %v205
      %v507 = vunpack.c.l.b16 %v206
      %v508 = vunpack.c.h.b16 %v206
      %v509 = vunpack.c.l.b16 %v207
      %v510 = vunpack.c.l.b16 %v208
      %v511 = vunpack.c.h.b16 %v208
      %v512 = vunpack.c.l.b16 %v209
      %v513 = vunpack.c.h.b16 %v209
      %v514 = vunpack.c.l.b16 %v210
      %v515 = vunpack.c.l.b16 %v211
      %v516 = vunpack.c.h.b16 %v211
      %v517 = vunpack.c.l.b16 %v212
      %v518 = vunpack.c.h.b16 %v212
      %v519 = vunpack.c.l.b16 %v213
      %v520 = vunpack.c.l.b16 %v214
      %v521 = vunpack.c.h.b16 %v214
      %v522 = vunpack.c.l.b16 %v215
      %v523 = vunpack.c.h.b16 %v215
      %v524 = vunpack.c.l.b16 %v216
      %v525 = vunpack.c.l.b16 %v217
      %v526 = vunpack.c.h.b16 %v217
      %v527 = vunpack.c.l.b16 %v218
      %v528 = vunpack.c.h.b16 %v218
      %v529 = vunpack.c.l.b16 %v219
      %v530 = vunpack.c.l.b16 %v220
      %v531 = vunpack.c.h.b16 %v220
      %v532 = vunpack.c.l.b16 %v221
      %v533 = vunpack.c.h.b16 %v221
      %v534 = vunpack.c.l.b16 %v222
      %v535 = vunpack.c.l.b16 %v223
      %v536 = vunpack.c.h.b16 %v223
      %v537 = vunpack.c.l.b16 %v224
      %v538 = vunpack.c.h.b16 %v224
      %v539 = vunpack.c.l.b16 %v225
      %v540 = vunpack.c.l.b16 %v226
      %v541 = vunpack.c.h.b16 %v226
      %v542 = vunpack.c.l.b16 %v227
      %v543 = vunpack.c.h.b16 %v227
      %v544 = vunpack.c.l.b16 %v228
      %v545 = vunpack.c.l.b16 %v229
      %v546 = vunpack.c.h.b16 %v229
      %v547 = vunpack.c.l.b16 %v230
      %v548 = vunpack.c.h.b16 %v230
      %v549 = vunpack.c.l.b16 %v231
      %v550 = vunpack.c.l.b16 %v232
      %v551 = vunpack.c.h.b16 %v232
      %v552 = vunpack.c.l.b16 %v233
      %v553 = vunpack.c.h.b16 %v233
      %v554 = vunpack.c.l.b16 %v234
      %v555 = vunpack.c.l.b16 %v235
      %v556 = vunpack.c.h.b16 %v235
      %v557 = vunpack.c.l.b16 %v236
      %v558 = vunpack.c.h.b16 %v236
      %v559 = vunpack.c.l.b16 %v237
      %v560 = vunpack.c.l.b16 %v238
      %v561 = vunpack.c.h.b16 %v238
      %v562 = vunpack.c.l.b16 %v239
      %v563 = vunpack.c.h.b16 %v239
      %v564 = vunpack.c.l.b16 %v240
      %v565 = vunpack.c.l.b16 %v241
      %v566 = vunpack.c.h.b16 %v241
      %v567 = vunpack.c.l.b16 %v242
      %v568 = vunpack.c.h.b16 %v242
      %v569 = vunpack.c.l.b16 %v243
      %v570 = vunpack.c.l.b16 %v244
      %v571 = vunpack.c.h.b16 %v244
      %v572 = vunpack.c.l.b16 %v245
      %v573 = vunpack.c.h.b16 %v245
      %v574 = vunpack.c.l.b16 %v246
      %v575 = vpack.c.b16 %v420, %v415
      %v576 = vpack.c.b16 %v421, %v416
      %v577 = vpack.c.b16 %v422, %v417
      %v578 = vpack.c.b16 %v423, %v418
      %v579 = vpack.c.b16 %v424, %v419
      %v580 = vpack.c.b16 %v430, %v425
      %v581 = vpack.c.b16 %v431, %v426
      %v582 = vpack.c.b16 %v432, %v427
      %v583 = vpack.c.b16 %v433, %v428
      %v584 = vpack.c.b16 %v434, %v429
      %v585 = vpack.c.b16 %v440, %v435
      %v586 = vpack.c.b16 %v441, %v436
      %v587 = vpack.c.b16 %v442, %v437
      %v588 = vpack.c.b16 %v443, %v438
      %v589 = vpack.c.b16 %v444, %v439
      %v590 = vpack.c.b16 %v450, %v445
      %v591 = vpack.c.b16 %v451, %v446
      %v592 = vpack.c.b16 %v452, %v447
      %v593 = vpack.c.b16 %v453, %v448
      %v594 = vpack.c.b16 %v454, %v449
      %v595 = vpack.c.b16 %v460, %v455
      %v596 = vpack.c.b16 %v461, %v456
      %v597 = vpack.c.b16 %v462, %v457
      %v598 = vpack.c.b16 %v463, %v458
      %v599 = vpack.c.b16 %v464, %v459
      %v600 = vpack.c.b16 %v470, %v465
      %v601 = vpack.c.b16 %v471, %v466
      %v602 = vpack.c.b16 %v472, %v467
      %v603 = vpack.c.b16 %v473, %v468
      %v604 = vpack.c.b16 %v474, %v469
      %v605 = vpack.c.b16 %v480, %v475
      %v606 = vpack.c.b16 %v481, %v476
      %v607 = vpack.c.b16 %v482, %v477
      %v608 = vpack.c.b16 %v483, %v478
      %v609 = vpack.c.b16 %v484, %v479
      %v610 = vpack.c.b16 %v490, %v485
      %v611 = vpack.c.b16 %v491, %v486
      %v612 = vpack.c.b16 %v492, %v487
      %v613 = vpack.c.b16 %v493, %v488
      %v614 = vpack.c.b16 %v494, %v489
      %v615 = vpack.c.b16 %v500, %v495
      %v616 = vpack.c.b16 %v501, %v496
      %v617 = vpack.c.b16 %v502, %v497
      %v618 = vpack.c.b16 %v503, %v498
      %v619 = vpack.c.b16 %v504, %v499
      %v620 = vpack.c.b16 %v510, %v505
      %v621 = vpack.c.b16 %v511, %v506
      %v622 = vpack.c.b16 %v512, %v507
      %v623 = vpack.c.b16 %v513, %v508
      %v624 = vpack.c.b16 %v514, %v509
      %v625 = vpack.c.b16 %v520, %v515
      %v626 = vpack.c.b16 %v521, %v516
      %v627 = vpack.c.b16 %v522, %v517
      %v628 = vpack.c.b16 %v523, %v518
      %v629 = vpack.c.b16 %v524, %v519
      %v630 = vpack.c.b16 %v530, %v525
      %v631 = vpack.c.b16 %v531, %v526
      %v632 = vpack.c.b16 %v532, %v527
      %v633 = vpack.c.b16 %v533, %v528
      %v634 = vpack.c.b16 %v534, %v529
      %v635 = vpack.c.b16 %v540, %v535
      %v636 = vpack.c.b16 %v541, %v536
      %v637 = vpack.c.b16 %v542, %v537
      %v638 = vpack.c.b16 %v543, %v538
      %v639 = vpack.c.b16 %v544, %v539
      %v640 = vpack.c.b16 %v550, %v545
      %v641 = vpack.c.b16 %v551, %v546
      %v642 = vpack.c.b16 %v552, %v547
      %v643 = vpack.c.b16 %v553, %v548
      %v644 = vpack.c.b16 %v554, %v549
      %v645 = vpack.c.b16 %v560, %v555
      %v646 = vpack.c.b16 %v561, %v556
      %v647 = vpack.c.b16 %v562, %v557
      %v648 = vpack.c.b16 %v563, %v558
      %v649 = vpack.c.b16 %v564, %v559
      %v650 = vpack.c.b16 %v570, %v565
      %v651 = vpack.c.b16 %v571, %v566
      %v652 = vpack.c.b16 %v572, %v567
      %v653 = vpack.c.b16 %v573, %v568
      %v654 = vpack.c.b16 %v574, %v569
      %v791 = vunpack.c.l.b16 %v247
      %v792 = vunpack.c.l.b16 %v248
      %v793 = vunpack.c.l.b16 %v249
      %v794 = vunpack.c.l.b16 %v250
      %v795 = vunpack.c.l.b16 %v251
      %v796 = vunpack.c.l.b16 %v252
      %v797 = vunpack.c.l.b16 %v253
      %v798 = vunpack.c.l.b16 %v254
      %v799 = vunpack.c.l.b16 %v255
      %v800 = vunpack.c.l.b16 %v256
      %v801 = vunpack.c.l.b16 %v257
      %v802 = vunpack.c.l.b16 %v258
      %v803 = vunpack.c.l.b16 %v259
      %v804 = vunpack.c.l.b16 %v260
      %v805 = vunpack.c.l.b16 %v261
      %v806 = vunpack.c.l.b16 %v262
      %v807 = vunpack.c.l.b16 %v263
      %v808 = vunpack.c.l.b16 %v264
      %v809 = vunpack.c.l.b16 %v265
      %v810 = vunpack.c.l.b16 %v266
      %v811 = vunpack.c.l.b16 %v267
      %v812 = vunpack.c.l.b16 %v268
      %v813 = vunpack.c.l.b16 %v269
      %v814 = vunpack.c.l.b16 %v270
      %v815 = vunpack.c.l.b16 %v271
      %v816 = vunpack.c.l.b16 %v272
      %v817 = vunpack.c.l.b16 %v273
      %v818 = vunpack.c.l.b16 %v274
      %v819 = vunpack.c.l.b16 %v275
      %v820 = vunpack.c.l.b16 %v276
      %v821 = vunpack.c.l.b16 %v277
      %v822 = vunpack.c.l.b16 %v278
      %v823 = vunpack.c.l.b16 %v279
      %v824 = vunpack.c.l.b16 %v280
      %v825 = vunpack.c.l.b16 %v281
      %v826 = vunpack.c.l.b16 %v282
      %v827 = vunpack.c.l.b16 %v283
      %v828 = vunpack.c.l.b16 %v284
      %v829 = vunpack.c.l.b16 %v285
      %v830 = vunpack.c.l.b16 %v286
      %v831 = vunpack.c.l.b16 %v287
      %v832 = vunpack.c.l.b16 %v288
      %v833 = vunpack.c.l.b16 %v289
      %v834 = vunpack.c.l.b16 %v290
      %v835 = vunpack.c.l.b16 %v291
      %v836 = vunpack.c.l.b16 %v292
      %v837 = vunpack.c.l.b16 %v293
      %v838 = vunpack.c.l.b16 %v294
      %v839 = vunpack.c.l.b16 %v295
      %v840 = vunpack.c.l.b16 %v296
      %v841 = vunpack.c.l.b16 %v297
      %v842 = vunpack.c.l.b16 %v298
      %v843 = vunpack.c.l.b16 %v299
      %v844 = vunpack.c.l.b16 %v300
      %v845 = vunpack.c.l.b16 %v301
      %v846 = vunpack.c.l.b16 %v302
      %v847 = vunpack.c.l.b16 %v303
      %v848 = vunpack.c.l.b16 %v304
      %v849 = vunpack.c.l.b16 %v305
      %v850 = vunpack.c.l.b16 %v306
      %v851 = vunpack.c.l.b16 %v307
      %v852 = vunpack.c.l.b16 %v308
      %v853 = vunpack.c.l.b16 %v309
      %v854 = vunpack.c.l.b16 %v310
      %v855 = vunpack.c.l.b16 %v311
      %v856 = vunpack.c.l.b16 %v312
      %v857 = vunpack.c.l.b16 %v313
      %v858 = vunpack.c.l.b16 %v314
      %v859 = vunpack.c.l.b16 %v315
      %v860 = vunpack.c.l.b16 %v316
      %v861 = vunpack.c.l.b16 %v317
      %v862 = vunpack.c.l.b16 %v318
      %v863 = vpack.c.b16 %v792, %v791
      %v864 = vpack.c.b16 %v794, %v793
      %v865 = vpack.c.b16 %v796, %v795
      %v866 = vpack.c.b16 %v798, %v797
      %v867 = vpack.c.b16 %v800, %v799
      %v868 = vpack.c.b16 %v802, %v801
      %v869 = vpack.c.b16 %v804, %v803
      %v870 = vpack.c.b16 %v806, %v805
      %v871 = vpack.c.b16 %v808, %v807
      %v872 = vpack.c.b16 %v810, %v809
      %v873 = vpack.c.b16 %v812, %v811
      %v874 = vpack.c.b16 %v814, %v813
      %v875 = vpack.c.b16 %v816, %v815
      %v876 = vpack.c.b16 %v818, %v817
      %v877 = vpack.c.b16 %v820, %v819
      %v878 = vpack.c.b16 %v822, %v821
      %v879 = vpack.c.b16 %v824, %v823
      %v880 = vpack.c.b16 %v826, %v825
      %v881 = vpack.c.b16 %v828, %v827
      %v882 = vpack.c.b16 %v830, %v829
      %v883 = vpack.c.b16 %v832, %v831
      %v884 = vpack.c.b16 %v834, %v833
      %v885 = vpack.c.b16 %v836, %v835
      %v886 = vpack.c.b16 %v838, %v837
      %v887 = vpack.c.b16 %v840, %v839
      %v888 = vpack.c.b16 %v842, %v841
      %v889 = vpack.c.b16 %v844, %v843
      %v890 = vpack.c.b16 %v846, %v845
      %v891 = vpack.c.b16 %v848, %v847
      %v892 = vpack.c.b16 %v850, %v849
      %v893 = vpack.c.b16 %v852, %v851
      %v894 = vpack.c.b16 %v854, %v853
      %v895 = vpack.c.b16 %v856, %v855
      %v896 = vpack.c.b16 %v858, %v857
      %v897 = vpack.c.b16 %v860, %v859
      %v898 = vpack.c.b16 %v862, %v861
      %vm935 = vcmask 523264
      %v937 = vsel %vm935, %v579, 0
      %v940 = vsel %vm935, %v584, 0
      %v943 = vsel %vm935, %v589, 0
      %v946 = vsel %vm935, %v594, 0
      %v949 = vsel %vm935, %v599, 0
      %v952 = vsel %vm935, %v604, 0
      %v955 = vsel %vm935, %v609, 0
      %v958 = vsel %vm935, %v614, 0
      %v961 = vsel %vm935, %v619, 0
      %v964 = vsel %vm935, %v624, 0
      %v967 = vsel %vm935, %v629, 0
      %v970 = vsel %vm935, %v634, 0
      %v973 = vsel %vm935, %v639, 0
      %v976 = vsel %vm935, %v644, 0
      %v979 = vsel %vm935, %v649, 0
      %v982 = vsel %vm935, %v654, 0
      %984 = vmatprep.subr.bf16.mxu0 0
      %985 = vmatpush1.bf16.msra.mxu0 %v870
      %986 = vmatprep.subr.bf16.mxu0 0
      %987 = vmatpush1.bf16.msra.mxu0 %v869
      %988 = vmatprep.subr.bf16.mxu0 0
      %989 = vmatpush1.bf16.msra.mxu0 %v868
      %990 = vmatprep.subr.bf16.mxu0 0
      %991 = vmatpush1.bf16.msra.mxu0 %v867
      %992 = vmatprep.subr.bf16.mxu0 0
      %993 = vmatpush1.bf16.msra.mxu0 %v866
      %994 = vmatprep.subr.bf16.mxu0 0
      %995 = vmatpush1.bf16.msra.mxu0 %v865
      %996 = vmatprep.subr.bf16.mxu0 0
      %997 = vmatpush1.bf16.msra.mxu0 %v864
      %998 = vmatprep.subr.bf16.mxu0 0
      %999 = vmatpush1.bf16.msra.mxu0 %v863
      %1000 = vmatprep.subr.bf16.mxu0 0
      %1001 = vmatpush2.bf16.msra.mxu0 %v878
      %1002 = vmatprep.subr.bf16.mxu0 0
      %1003 = vmatpush2.bf16.msra.mxu0 %v877
      %1004 = vmatprep.subr.bf16.mxu0 0
      %1005 = vmatpush2.bf16.msra.mxu0 %v876
      %1006 = vmatprep.subr.bf16.mxu0 0
      %1007 = vmatpush2.bf16.msra.mxu0 %v875
      %1008 = vmatprep.subr.bf16.mxu0 0
      %1009 = vmatpush2.bf16.msra.mxu0 %v874
      %1010 = vmatprep.subr.bf16.mxu0 0
      %1011 = vmatpush2.bf16.msra.mxu0 %v873
      %1012 = vmatprep.subr.bf16.mxu0 0
      %1013 = vmatpush2.bf16.msra.mxu0 %v872
      %1014 = vmatprep.subr.bf16.mxu0 0
      %1015 = vmatpush2.bf16.msra.mxu0 %v871
      %1016 = vmatprep.mubr.bf16.mxu0 %v576
      %1017 = vmatmul.mubr.bf16.gmra.mxu0 %v575
      %v1018 = vpop.f32.mrf.mxu0
      %v1019 = vadd.f32 0.0, %v1018
      %v1020 = vpop.f32.mrf.mxu0
      %v1021 = vpop.f32.mrf.mxu0
      %v1022 = vadd.f32 0.0, %v1021
      %v1023 = vpop.f32.mrf.mxu0
      %1024 = vmatprep.mubr.bf16.mxu0 %v581
      %1025 = vmatmul.mubr.bf16.gmra.mxu0 %v580
      %v1026 = vpop.f32.mrf.mxu0
      %v1027 = vadd.f32 0.0, %v1026
      %v1028 = vpop.f32.mrf.mxu0
      %v1029 = vpop.f32.mrf.mxu0
      %v1030 = vadd.f32 0.0, %v1029
      %v1031 = vpop.f32.mrf.mxu0
      %1032 = vmatprep.mubr.bf16.mxu0 %v586
      %1033 = vmatmul.mubr.bf16.gmra.mxu0 %v585
      %v1034 = vpop.f32.mrf.mxu0
      %v1035 = vadd.f32 0.0, %v1034
      %v1036 = vpop.f32.mrf.mxu0
      %v1037 = vpop.f32.mrf.mxu0
      %v1038 = vadd.f32 0.0, %v1037
      %v1039 = vpop.f32.mrf.mxu0
      %1040 = vmatprep.mubr.bf16.mxu0 %v591
      %1041 = vmatmul.mubr.bf16.gmra.mxu0 %v590
      %v1042 = vpop.f32.mrf.mxu0
      %v1043 = vadd.f32 0.0, %v1042
      %v1044 = vpop.f32.mrf.mxu0
      %v1045 = vpop.f32.mrf.mxu0
      %v1046 = vadd.f32 0.0, %v1045
      %v1047 = vpop.f32.mrf.mxu0
      %1048 = vmatprep.mubr.bf16.mxu0 %v596
      %1049 = vmatmul.mubr.bf16.gmra.mxu0 %v595
      %v1050 = vpop.f32.mrf.mxu0
      %v1051 = vadd.f32 0.0, %v1050
      %v1052 = vpop.f32.mrf.mxu0
      %v1053 = vpop.f32.mrf.mxu0
      %v1054 = vadd.f32 0.0, %v1053
      %v1055 = vpop.f32.mrf.mxu0
      %1056 = vmatprep.mubr.bf16.mxu0 %v601
      %1057 = vmatmul.mubr.bf16.gmra.mxu0 %v600
      %v1058 = vpop.f32.mrf.mxu0
      %v1059 = vadd.f32 0.0, %v1058
      %v1060 = vpop.f32.mrf.mxu0
      %v1061 = vpop.f32.mrf.mxu0
      %v1062 = vadd.f32 0.0, %v1061
      %v1063 = vpop.f32.mrf.mxu0
      %1064 = vmatprep.mubr.bf16.mxu0 %v606
      %1065 = vmatmul.mubr.bf16.gmra.mxu0 %v605
      %v1066 = vpop.f32.mrf.mxu0
      %v1067 = vadd.f32 0.0, %v1066
      %v1068 = vpop.f32.mrf.mxu0
      %v1069 = vpop.f32.mrf.mxu0
      %v1070 = vadd.f32 0.0, %v1069
      %v1071 = vpop.f32.mrf.mxu0
      %1072 = vmatprep.mubr.bf16.mxu0 %v611
      %1073 = vmatmul.mubr.bf16.gmra.mxu0 %v610
      %v1074 = vpop.f32.mrf.mxu0
      %v1075 = vadd.f32 0.0, %v1074
      %v1076 = vpop.f32.mrf.mxu0
      %v1077 = vpop.f32.mrf.mxu0
      %v1078 = vadd.f32 0.0, %v1077
      %v1079 = vpop.f32.mrf.mxu0
      %1080 = vmatprep.mubr.bf16.mxu0 %v616
      %1081 = vmatmul.mubr.bf16.gmra.mxu0 %v615
      %v1082 = vpop.f32.mrf.mxu0
      %v1083 = vadd.f32 0.0, %v1082
      %v1084 = vpop.f32.mrf.mxu0
      %v1085 = vpop.f32.mrf.mxu0
      %v1086 = vadd.f32 0.0, %v1085
      %v1087 = vpop.f32.mrf.mxu0
      %1088 = vmatprep.mubr.bf16.mxu0 %v621
      %1089 = vmatmul.mubr.bf16.gmra.mxu0 %v620
      %v1090 = vpop.f32.mrf.mxu0
      %v1091 = vadd.f32 0.0, %v1090
      %v1092 = vpop.f32.mrf.mxu0
      %v1093 = vpop.f32.mrf.mxu0
      %v1094 = vadd.f32 0.0, %v1093
      %v1095 = vpop.f32.mrf.mxu0
      %1096 = vmatprep.mubr.bf16.mxu0 %v626
      %1097 = vmatmul.mubr.bf16.gmra.mxu0 %v625
      %v1098 = vpop.f32.mrf.mxu0
      %v1099 = vadd.f32 0.0, %v1098
      %v1100 = vpop.f32.mrf.mxu0
      %v1101 = vpop.f32.mrf.mxu0
      %v1102 = vadd.f32 0.0, %v1101
      %v1103 = vpop.f32.mrf.mxu0
      %1104 = vmatprep.mubr.bf16.mxu0 %v631
      %1105 = vmatmul.mubr.bf16.gmra.mxu0 %v630
      %v1106 = vpop.f32.mrf.mxu0
      %v1107 = vadd.f32 0.0, %v1106
      %v1108 = vpop.f32.mrf.mxu0
      %v1109 = vpop.f32.mrf.mxu0
      %v1110 = vadd.f32 0.0, %v1109
      %v1111 = vpop.f32.mrf.mxu0
      %1112 = vmatprep.mubr.bf16.mxu0 %v636
      %1113 = vmatmul.mubr.bf16.gmra.mxu0 %v635
      %v1114 = vpop.f32.mrf.mxu0
      %v1115 = vadd.f32 0.0, %v1114
      %v1116 = vpop.f32.mrf.mxu0
      %v1117 = vpop.f32.mrf.mxu0
      %v1118 = vadd.f32 0.0, %v1117
      %v1119 = vpop.f32.mrf.mxu0
      %1120 = vmatprep.mubr.bf16.mxu0 %v641
      %1121 = vmatmul.mubr.bf16.gmra.mxu0 %v640
      %v1122 = vpop.f32.mrf.mxu0
      %v1123 = vadd.f32 0.0, %v1122
      %v1124 = vpop.f32.mrf.mxu0
      %v1125 = vpop.f32.mrf.mxu0
      %v1126 = vadd.f32 0.0, %v1125
      %v1127 = vpop.f32.mrf.mxu0
      %1128 = vmatprep.mubr.bf16.mxu0 %v646
      %1129 = vmatmul.mubr.bf16.gmra.mxu0 %v645
      %v1130 = vpop.f32.mrf.mxu0
      %v1131 = vadd.f32 0.0, %v1130
      %v1132 = vpop.f32.mrf.mxu0
      %v1133 = vpop.f32.mrf.mxu0
      %v1134 = vadd.f32 0.0, %v1133
      %v1135 = vpop.f32.mrf.mxu0
      %1136 = vmatprep.mubr.bf16.mxu0 %v651
      %1137 = vmatmul.mubr.bf16.gmra.mxu0 %v650
      %v1138 = vpop.f32.mrf.mxu0
      %v1139 = vadd.f32 0.0, %v1138
      %v1140 = vpop.f32.mrf.mxu0
      %v1141 = vpop.f32.mrf.mxu0
      %v1142 = vadd.f32 0.0, %v1141
      %v1143 = vpop.f32.mrf.mxu0
      %1144 = vdwg.mxu0
      %1145 = vmatprep.subr.bf16.mxu0 0
      %1146 = vmatpush1.bf16.msra.mxu0 %v886
      %1147 = vmatprep.subr.bf16.mxu0 0
      %1148 = vmatpush1.bf16.msra.mxu0 %v885
      %1149 = vmatprep.subr.bf16.mxu0 0
      %1150 = vmatpush1.bf16.msra.mxu0 %v884
      %1151 = vmatprep.subr.bf16.mxu0 0
      %1152 = vmatpush1.bf16.msra.mxu0 %v883
      %1153 = vmatprep.subr.bf16.mxu0 0
      %1154 = vmatpush1.bf16.msra.mxu0 %v882
      %1155 = vmatprep.subr.bf16.mxu0 0
      %1156 = vmatpush1.bf16.msra.mxu0 %v881
      %1157 = vmatprep.subr.bf16.mxu0 0
      %1158 = vmatpush1.bf16.msra.mxu0 %v880
      %1159 = vmatprep.subr.bf16.mxu0 0
      %1160 = vmatpush1.bf16.msra.mxu0 %v879
      %1161 = vmatprep.subr.bf16.mxu0 0
      %1162 = vmatpush2.bf16.msra.mxu0 %v894
      %1163 = vmatprep.subr.bf16.mxu0 0
      %1164 = vmatpush2.bf16.msra.mxu0 %v893
      %1165 = vmatprep.subr.bf16.mxu0 0
      %1166 = vmatpush2.bf16.msra.mxu0 %v892
      %1167 = vmatprep.subr.bf16.mxu0 0
      %1168 = vmatpush2.bf16.msra.mxu0 %v891
      %1169 = vmatprep.subr.bf16.mxu0 0
      %1170 = vmatpush2.bf16.msra.mxu0 %v890
      %1171 = vmatprep.subr.bf16.mxu0 0
      %1172 = vmatpush2.bf16.msra.mxu0 %v889
      %1173 = vmatprep.subr.bf16.mxu0 0
      %1174 = vmatpush2.bf16.msra.mxu0 %v888
      %1175 = vmatprep.subr.bf16.mxu0 0
      %1176 = vmatpush2.bf16.msra.mxu0 %v887
      %1177 = vmatprep.mubr.bf16.mxu0 %v578
      %1178 = vmatmul.mubr.bf16.gmra.mxu0 %v577
      %v1179 = vpop.f32.mrf.mxu0
      %v1180 = vadd.f32 %v1019, %v1179
      %v1181 = vpop.f32.mrf.mxu0
      %v1182 = vpop.f32.mrf.mxu0
      %v1183 = vadd.f32 %v1022, %v1182
      %v1184 = vpop.f32.mrf.mxu0
      %1185 = vmatprep.mubr.bf16.mxu0 %v583
      %1186 = vmatmul.mubr.bf16.gmra.mxu0 %v582
      %v1187 = vpop.f32.mrf.mxu0
      %v1188 = vadd.f32 %v1027, %v1187
      %v1189 = vpop.f32.mrf.mxu0
      %v1190 = vpop.f32.mrf.mxu0
      %v1191 = vadd.f32 %v1030, %v1190
      %v1192 = vpop.f32.mrf.mxu0
      %1193 = vmatprep.mubr.bf16.mxu0 %v588
      %1194 = vmatmul.mubr.bf16.gmra.mxu0 %v587
      %v1195 = vpop.f32.mrf.mxu0
      %v1196 = vadd.f32 %v1035, %v1195
      %v1197 = vpop.f32.mrf.mxu0
      %v1198 = vpop.f32.mrf.mxu0
      %v1199 = vadd.f32 %v1038, %v1198
      %v1200 = vpop.f32.mrf.mxu0
      %1201 = vmatprep.mubr.bf16.mxu0 %v593
      %1202 = vmatmul.mubr.bf16.gmra.mxu0 %v592
      %v1203 = vpop.f32.mrf.mxu0
      %v1204 = vadd.f32 %v1043, %v1203
      %v1205 = vpop.f32.mrf.mxu0
      %v1206 = vpop.f32.mrf.mxu0
      %v1207 = vadd.f32 %v1046, %v1206
      %v1208 = vpop.f32.mrf.mxu0
      %1209 = vmatprep.mubr.bf16.mxu0 %v598
      %1210 = vmatmul.mubr.bf16.gmra.mxu0 %v597
      %v1211 = vpop.f32.mrf.mxu0
      %v1212 = vadd.f32 %v1051, %v1211
      %v1213 = vpop.f32.mrf.mxu0
      %v1214 = vpop.f32.mrf.mxu0
      %v1215 = vadd.f32 %v1054, %v1214
      %v1216 = vpop.f32.mrf.mxu0
      %1217 = vmatprep.mubr.bf16.mxu0 %v603
      %1218 = vmatmul.mubr.bf16.gmra.mxu0 %v602
      %v1219 = vpop.f32.mrf.mxu0
      %v1220 = vadd.f32 %v1059, %v1219
      %v1221 = vpop.f32.mrf.mxu0
      %v1222 = vpop.f32.mrf.mxu0
      %v1223 = vadd.f32 %v1062, %v1222
      %v1224 = vpop.f32.mrf.mxu0
      %1225 = vmatprep.mubr.bf16.mxu0 %v608
      %1226 = vmatmul.mubr.bf16.gmra.mxu0 %v607
      %v1227 = vpop.f32.mrf.mxu0
      %v1228 = vadd.f32 %v1067, %v1227
      %v1229 = vpop.f32.mrf.mxu0
      %v1230 = vpop.f32.mrf.mxu0
      %v1231 = vadd.f32 %v1070, %v1230
      %v1232 = vpop.f32.mrf.mxu0
      %1233 = vmatprep.mubr.bf16.mxu0 %v613
      %1234 = vmatmul.mubr.bf16.gmra.mxu0 %v612
      %v1235 = vpop.f32.mrf.mxu0
      %v1236 = vadd.f32 %v1075, %v1235
      %v1237 = vpop.f32.mrf.mxu0
      %v1238 = vpop.f32.mrf.mxu0
      %v1239 = vadd.f32 %v1078, %v1238
      %v1240 = vpop.f32.mrf.mxu0
      %1241 = vmatprep.mubr.bf16.mxu0 %v618
      %1242 = vmatmul.mubr.bf16.gmra.mxu0 %v617
      %v1243 = vpop.f32.mrf.mxu0
      %v1244 = vadd.f32 %v1083, %v1243
      %v1245 = vpop.f32.mrf.mxu0
      %v1246 = vpop.f32.mrf.mxu0
      %v1247 = vadd.f32 %v1086, %v1246
      %v1248 = vpop.f32.mrf.mxu0
      %1249 = vmatprep.mubr.bf16.mxu0 %v623
      %1250 = vmatmul.mubr.bf16.gmra.mxu0 %v622
      %v1251 = vpop.f32.mrf.mxu0
      %v1252 = vadd.f32 %v1091, %v1251
      %v1253 = vpop.f32.mrf.mxu0
      %v1254 = vpop.f32.mrf.mxu0
      %v1255 = vadd.f32 %v1094, %v1254
      %v1256 = vpop.f32.mrf.mxu0
      %1257 = vmatprep.mubr.bf16.mxu0 %v628
      %1258 = vmatmul.mubr.bf16.gmra.mxu0 %v627
      %v1259 = vpop.f32.mrf.mxu0
      %v1260 = vadd.f32 %v1099, %v1259
      %v1261 = vpop.f32.mrf.mxu0
      %v1262 = vpop.f32.mrf.mxu0
      %v1263 = vadd.f32 %v1102, %v1262
      %v1264 = vpop.f32.mrf.mxu0
      %1265 = vmatprep.mubr.bf16.mxu0 %v633
      %1266 = vmatmul.mubr.bf16.gmra.mxu0 %v632
      %v1267 = vpop.f32.mrf.mxu0
      %v1268 = vadd.f32 %v1107, %v1267
      %v1269 = vpop.f32.mrf.mxu0
      %v1270 = vpop.f32.mrf.mxu0
      %v1271 = vadd.f32 %v1110, %v1270
      %v1272 = vpop.f32.mrf.mxu0
      %1273 = vmatprep.mubr.bf16.mxu0 %v638
      %1274 = vmatmul.mubr.bf16.gmra.mxu0 %v637
      %v1275 = vpop.f32.mrf.mxu0
      %v1276 = vadd.f32 %v1115, %v1275
      %v1277 = vpop.f32.mrf.mxu0
      %v1278 = vpop.f32.mrf.mxu0
      %v1279 = vadd.f32 %v1118, %v1278
      %v1280 = vpop.f32.mrf.mxu0
      %1281 = vmatprep.mubr.bf16.mxu0 %v643
      %1282 = vmatmul.mubr.bf16.gmra.mxu0 %v642
      %v1283 = vpop.f32.mrf.mxu0
      %v1284 = vadd.f32 %v1123, %v1283
      %v1285 = vpop.f32.mrf.mxu0
      %v1286 = vpop.f32.mrf.mxu0
      %v1287 = vadd.f32 %v1126, %v1286
      %v1288 = vpop.f32.mrf.mxu0
      %1289 = vmatprep.mubr.bf16.mxu0 %v648
      %1290 = vmatmul.mubr.bf16.gmra.mxu0 %v647
      %v1291 = vpop.f32.mrf.mxu0
      %v1292 = vadd.f32 %v1131, %v1291
      %v1293 = vpop.f32.mrf.mxu0
      %v1294 = vpop.f32.mrf.mxu0
      %v1295 = vadd.f32 %v1134, %v1294
      %v1296 = vpop.f32.mrf.mxu0
      %1297 = vmatprep.mubr.bf16.mxu0 %v653
      %1298 = vmatmul.mubr.bf16.gmra.mxu0 %v652
      %v1299 = vpop.f32.mrf.mxu0
      %v1300 = vadd.f32 %v1139, %v1299
      %v1301 = vpop.f32.mrf.mxu0
      %v1302 = vpop.f32.mrf.mxu0
      %v1303 = vadd.f32 %v1142, %v1302
      %v1304 = vpop.f32.mrf.mxu0
      %1305 = vdwg.mxu0
      %1306 = vmatprep.subr.bf16.mxu0 0
      %1307 = vmatpush1.bf16.msra.mxu0 0
      %1308 = vmatprep.subr.bf16.mxu0 0
      %1309 = vmatpush1.bf16.msra.mxu0 0
      %1310 = vmatprep.subr.bf16.mxu0 0
      %1311 = vmatpush1.bf16.msra.mxu0 0
      %1312 = vmatprep.subr.bf16.mxu0 0
      %1313 = vmatpush1.bf16.msra.mxu0 0
      %1314 = vmatprep.subr.bf16.mxu0 0
      %1315 = vmatpush1.bf16.msra.mxu0 %v898
      %1316 = vmatprep.subr.bf16.mxu0 0
      %1317 = vmatpush1.bf16.msra.mxu0 %v897
      %1318 = vmatprep.subr.bf16.mxu0 0
      %1319 = vmatpush1.bf16.msra.mxu0 %v896
      %1320 = vmatprep.subr.bf16.mxu0 0
      %1321 = vmatpush1.bf16.msra.mxu0 %v895
      %1322 = vmatprep.subr.bf16.mxu0 0
      %1323 = vmatpush2.bf16.msra.mxu0 0
      %1324 = vmatprep.subr.bf16.mxu0 0
      %1325 = vmatpush2.bf16.msra.mxu0 0
      %1326 = vmatprep.subr.bf16.mxu0 0
      %1327 = vmatpush2.bf16.msra.mxu0 0
      %1328 = vmatprep.subr.bf16.mxu0 0
      %1329 = vmatpush2.bf16.msra.mxu0 0
      %1330 = vmatprep.subr.bf16.mxu0 0
      %1331 = vmatpush2.bf16.msra.mxu0 0
      %1332 = vmatprep.subr.bf16.mxu0 0
      %1333 = vmatpush2.bf16.msra.mxu0 0
      %1334 = vmatprep.subr.bf16.mxu0 0
      %1335 = vmatpush2.bf16.msra.mxu0 0
      %1336 = vmatprep.subr.bf16.mxu0 0
      %1337 = vmatpush2.bf16.msra.mxu0 0
      %1338 = vmatprep.mubr.bf16.mxu0 0
      %1339 = vmatmul.mubr.bf16.gmra.mxu0 %v937
      %v1340 = vpop.f32.mrf.mxu0
      %v1341 = vadd.f32 %v1180, %v1340
      %v1342 = vpop.f32.mrf.mxu0
      %v1343 = vpop.f32.mrf.mxu0
      %v1344 = vadd.f32 %v1183, %v1343
      %v1345 = vpop.f32.mrf.mxu0
      %1346 = vmatprep.mubr.bf16.mxu0 0
      %1347 = vmatmul.mubr.bf16.gmra.mxu0 %v940
      %v1348 = vpop.f32.mrf.mxu0
      %v1349 = vadd.f32 %v1188, %v1348
      %v1350 = vpop.f32.mrf.mxu0
      %v1351 = vpop.f32.mrf.mxu0
      %v1352 = vadd.f32 %v1191, %v1351
      %v1353 = vpop.f32.mrf.mxu0
      %1354 = vmatprep.mubr.bf16.mxu0 0
      %1355 = vmatmul.mubr.bf16.gmra.mxu0 %v943
      %v1356 = vpop.f32.mrf.mxu0
      %v1357 = vadd.f32 %v1196, %v1356
      %v1358 = vpop.f32.mrf.mxu0
      %v1359 = vpop.f32.mrf.mxu0
      %v1360 = vadd.f32 %v1199, %v1359
      %v1361 = vpop.f32.mrf.mxu0
      %1362 = vmatprep.mubr.bf16.mxu0 0
      %1363 = vmatmul.mubr.bf16.gmra.mxu0 %v946
      %v1364 = vpop.f32.mrf.mxu0
      %v1365 = vadd.f32 %v1204, %v1364
      %v1366 = vpop.f32.mrf.mxu0
      %v1367 = vpop.f32.mrf.mxu0
      %v1368 = vadd.f32 %v1207, %v1367
      %v1369 = vpop.f32.mrf.mxu0
      %1370 = vmatprep.mubr.bf16.mxu0 0
      %1371 = vmatmul.mubr.bf16.gmra.mxu0 %v949
      %v1372 = vpop.f32.mrf.mxu0
      %v1373 = vadd.f32 %v1212, %v1372
      %v1374 = vpop.f32.mrf.mxu0
      %v1375 = vpop.f32.mrf.mxu0
      %v1376 = vadd.f32 %v1215, %v1375
      %v1377 = vpop.f32.mrf.mxu0
      %1378 = vmatprep.mubr.bf16.mxu0 0
      %1379 = vmatmul.mubr.bf16.gmra.mxu0 %v952
      %v1380 = vpop.f32.mrf.mxu0
      %v1381 = vadd.f32 %v1220, %v1380
      %v1382 = vpop.f32.mrf.mxu0
      %v1383 = vpop.f32.mrf.mxu0
      %v1384 = vadd.f32 %v1223, %v1383
      %v1385 = vpop.f32.mrf.mxu0
      %1386 = vmatprep.mubr.bf16.mxu0 0
      %1387 = vmatmul.mubr.bf16.gmra.mxu0 %v955
      %v1388 = vpop.f32.mrf.mxu0
      %v1389 = vadd.f32 %v1228, %v1388
      %v1390 = vpop.f32.mrf.mxu0
      %v1391 = vpop.f32.mrf.mxu0
      %v1392 = vadd.f32 %v1231, %v1391
      %v1393 = vpop.f32.mrf.mxu0
      %1394 = vmatprep.mubr.bf16.mxu0 0
      %1395 = vmatmul.mubr.bf16.gmra.mxu0 %v958
      %v1396 = vpop.f32.mrf.mxu0
      %v1397 = vadd.f32 %v1236, %v1396
      %v1398 = vpop.f32.mrf.mxu0
      %v1399 = vpop.f32.mrf.mxu0
      %v1400 = vadd.f32 %v1239, %v1399
      %v1401 = vpop.f32.mrf.mxu0
      %1402 = vmatprep.mubr.bf16.mxu0 0
      %1403 = vmatmul.mubr.bf16.gmra.mxu0 %v961
      %v1404 = vpop.f32.mrf.mxu0
      %v1405 = vadd.f32 %v1244, %v1404
      %v1406 = vpop.f32.mrf.mxu0
      %v1407 = vpop.f32.mrf.mxu0
      %v1408 = vadd.f32 %v1247, %v1407
      %v1409 = vpop.f32.mrf.mxu0
      %1410 = vmatprep.mubr.bf16.mxu0 0
      %1411 = vmatmul.mubr.bf16.gmra.mxu0 %v964
      %v1412 = vpop.f32.mrf.mxu0
      %v1413 = vadd.f32 %v1252, %v1412
      %v1414 = vpop.f32.mrf.mxu0
      %v1415 = vpop.f32.mrf.mxu0
      %v1416 = vadd.f32 %v1255, %v1415
      %v1417 = vpop.f32.mrf.mxu0
      %1418 = vmatprep.mubr.bf16.mxu0 0
      %1419 = vmatmul.mubr.bf16.gmra.mxu0 %v967
      %v1420 = vpop.f32.mrf.mxu0
      %v1421 = vadd.f32 %v1260, %v1420
      %v1422 = vpop.f32.mrf.mxu0
      %v1423 = vpop.f32.mrf.mxu0
      %v1424 = vadd.f32 %v1263, %v1423
      %v1425 = vpop.f32.mrf.mxu0
      %1426 = vmatprep.mubr.bf16.mxu0 0
      %1427 = vmatmul.mubr.bf16.gmra.mxu0 %v970
      %v1428 = vpop.f32.mrf.mxu0
      %v1429 = vadd.f32 %v1268, %v1428
      %v1430 = vpop.f32.mrf.mxu0
      %v1431 = vpop.f32.mrf.mxu0
      %v1432 = vadd.f32 %v1271, %v1431
      %v1433 = vpop.f32.mrf.mxu0
      %1434 = vmatprep.mubr.bf16.mxu0 0
      %1435 = vmatmul.mubr.bf16.gmra.mxu0 %v973
      %v1436 = vpop.f32.mrf.mxu0
      %v1437 = vadd.f32 %v1276, %v1436
      %v1438 = vpop.f32.mrf.mxu0
      %v1439 = vpop.f32.mrf.mxu0
      %v1440 = vadd.f32 %v1279, %v1439
      %v1441 = vpop.f32.mrf.mxu0
      %1442 = vmatprep.mubr.bf16.mxu0 0
      %1443 = vmatmul.mubr.bf16.gmra.mxu0 %v976
      %v1444 = vpop.f32.mrf.mxu0
      %v1445 = vadd.f32 %v1284, %v1444
      %v1446 = vpop.f32.mrf.mxu0
      %v1447 = vpop.f32.mrf.mxu0
      %v1448 = vadd.f32 %v1287, %v1447
      %v1449 = vpop.f32.mrf.mxu0
      %1450 = vmatprep.mubr.bf16.mxu0 0
      %1451 = vmatmul.mubr.bf16.gmra.mxu0 %v979
      %v1452 = vpop.f32.mrf.mxu0
      %v1453 = vadd.f32 %v1292, %v1452
      %v1454 = vpop.f32.mrf.mxu0
      %v1455 = vpop.f32.mrf.mxu0
      %v1456 = vadd.f32 %v1295, %v1455
      %v1457 = vpop.f32.mrf.mxu0
      %1458 = vmatprep.mubr.bf16.mxu0 0
      %1459 = vmatmul.mubr.bf16.gmra.mxu0 %v982
      %v1460 = vpop.f32.mrf.mxu0
      %v1461 = vadd.f32 %v1300, %v1460
      %v1462 = vpop.f32.mrf.mxu0
      %v1463 = vpop.f32.mrf.mxu0
      %v1464 = vadd.f32 %v1303, %v1463
      %v1465 = vpop.f32.mrf.mxu0
      %1466 = vdwg.mxu0
      %1467 = vst.msk [vmem:[%s148] sm:$0xff] %vm935, %v1341
      %1468 = vst.msk [vmem:[%s148 + $0x8] sm:$0xff] %vm935, %v1344
      %1469 = vst.msk [vmem:[%s148 + $0x10] sm:$0xff] %vm935, %v1349
      %1470 = vst.msk [vmem:[%s148 + $0x18] sm:$0xff] %vm935, %v1352
      %1471 = vst.msk [vmem:[%s148 + $0x20] sm:$0xff] %vm935, %v1357
      %1472 = vst.msk [vmem:[%s148 + $0x28] sm:$0xff] %vm935, %v1360
      %1473 = vst.msk [vmem:[%s148 + $0x30] sm:$0xff] %vm935, %v1365
      %1474 = vst.msk [vmem:[%s148 + $0x38] sm:$0xff] %vm935, %v1368
      %1475 = vst.msk [vmem:[%s148 + $0x40] sm:$0xff] %vm935, %v1373
      %1476 = vst.msk [vmem:[%s148 + $0x48] sm:$0xff] %vm935, %v1376
      %1477 = vst.msk [vmem:[%s148 + $0x50] sm:$0xff] %vm935, %v1381
      %1478 = vst.msk [vmem:[%s148 + $0x58] sm:$0xff] %vm935, %v1384
      %1479 = vst.msk [vmem:[%s148 + $0x60] sm:$0xff] %vm935, %v1389
      %1480 = vst.msk [vmem:[%s148 + $0x68] sm:$0xff] %vm935, %v1392
      %1481 = vst.msk [vmem:[%s148 + $0x70] sm:$0xff] %vm935, %v1397
      %1482 = vst.msk [vmem:[%s148 + $0x78] sm:$0xff] %vm935, %v1400
      %1483 = vst.msk [vmem:[%s148 + $0x80] sm:$0xff] %vm935, %v1405
      %1484 = vst.msk [vmem:[%s148 + $0x88] sm:$0xff] %vm935, %v1408
      %1485 = vst.msk [vmem:[%s148 + $0x90] sm:$0xff] %vm935, %v1413
      %1486 = vst.msk [vmem:[%s148 + $0x98] sm:$0xff] %vm935, %v1416
      %1487 = vst.msk [vmem:[%s148 + $0xa0] sm:$0xff] %vm935, %v1421
      %1488 = vst.msk [vmem:[%s148 + $0xa8] sm:$0xff] %vm935, %v1424
      %1489 = vst.msk [vmem:[%s148 + $0xb0] sm:$0xff] %vm935, %v1429
      %1490 = vst.msk [vmem:[%s148 + $0xb8] sm:$0xff] %vm935, %v1432
      %1491 = vst.msk [vmem:[%s148 + $0xc0] sm:$0xff] %vm935, %v1437
      %1492 = vst.msk [vmem:[%s148 + $0xc8] sm:$0xff] %vm935, %v1440
      %1493 = vst.msk [vmem:[%s148 + $0xd0] sm:$0xff] %vm935, %v1445
      %1494 = vst.msk [vmem:[%s148 + $0xd8] sm:$0xff] %vm935, %v1448
      %1495 = vst.msk [vmem:[%s148 + $0xe0] sm:$0xff] %vm935, %v1453
      %1496 = vst.msk [vmem:[%s148 + $0xe8] sm:$0xff] %vm935, %v1456
      %1497 = vst.msk [vmem:[%s148 + $0xf0] sm:$0xff] %vm935, %v1461
      %1498 = vst.msk [vmem:[%s148 + $0xf8] sm:$0xff] %vm935, %v1464
      %s1499 = smul.u32 32, %s13
      %p1500 = scmp.lt.s32.totalorder %s1499, 63
      %s1501 = scalar_select %p1500, %s1499, 63
      %s1502 = smul.addr %s1501, 8
      %s1503 = scalar_lea.vmem %s2, %s1502
      // Predicated region
      $region29: #{p4m_resnet_forward.16} parent=27 // pred_check
        %p1504 = pneg %p78
      $region30: #{p4m_resnet_forward.16} parent=27 // pred_check_branch
        %1506 = sbr.rel (%p1504) target = $region32
      $region31: #{p4m_resnet_forward.16} parent=27 // pred_region
        %s1507 = smul.u32 32, %s13
      $region32: #{p4m_resnet_forward.16} parent=27 // pred_fallthru
        _
    $region28: #{p4m_resnet_forward.16} parent=5 // pred_fallthru
      _
    %p1508 = scmp.le.s32.totalorder 2, %s8
    // Predicated region
    $region33: #{p4m_resnet_forward.16} parent=5 // pred_check
      %p1509 = pneg %p1508
    $region34: #{p4m_resnet_forward.16} parent=5 // pred_check_branch
      %1511 = sbr.rel (%p1509) target = $region36
    $region35: #{p4m_resnet_forward.16} parent=5 // pred_region
      %s1512 = ssub.s32 %s8, 2
      // Predicated region
      $region37: #{p4m_resnet_forward.16} parent=35 // pred_check
        %p1513 = pneg %p84
      $region38: #{p4m_resnet_forward.16} parent=35 // pred_check_branch
        %1515 = sbr.rel (%p1513) target = $region40
      $region39: #{p4m_resnet_forward.16} parent=35 // pred_region
        %s1516 = smul.u32 32, %s14
        %p1517 = scmp.lt.s32.totalorder %s1516, 63
        %s1518 = scalar_select %p1517, %s1516, 63
        %s1519 = smul.addr %s1518, 8
        %s1520 = scalar_lea.vmem %s2, %s1519
      $region40: #{p4m_resnet_forward.16} parent=35 // pred_fallthru
        _
    $region36: #{p4m_resnet_forward.16} parent=5 // pred_fallthru
      _
  $region6: #{p4m_resnet_forward.16} parent=0 // loop_footer
    %s12 = sadd.s32 1, %s8
  $region7: #{p4m_resnet_forward.16} parent=0 // loop_footer_branch
    %7 = sbr.rel target = $region3
  $region8: #{p4m_resnet_forward.16} parent=0 // loop_exit
    _

// kernel: tile.82
$region0: #{tile.82}
  #allocation0 [shape = 's32[1]{0}', space=sflag, size = 0x4, scoped, tag = 'scoped memory for tile.82']
  %s0 = inlined_call_operand.vmem [shape: f32[64], index: 0, kind: input, shape index: {}]
  %s1 = inlined_call_operand.vmem [shape: f32[8,64], index: 1, kind: output, shape index: {}]
  // Predicated region
  $region2: #{tile.82} parent=0 // pred_check
    _
  $region3: #{tile.82} parent=0 // pred_check_branch
    %3 = sbr.rel (0) target = $region5
  $region4: #{tile.82} parent=0 // pred_region
    _
  $region5: #{tile.82} parent=0 // pred_fallthru
    _
  %v4 = vld [vmem:[%s0] ss:$0 sm:$0xff]
  %5 = vst [vmem:[%s1] sm:$0xff] %v4

// kernel: tile.83
$region0: #{tile.83}
  %s0 = inlined_call_operand.vmem [shape: f32[8,64], index: 0, kind: input, shape index: {}]
  %s1 = inlined_call_operand.vmem [shape: f32[1,512], index: 1, kind: output, shape index: {}]
  $region1: #{tile.83} parent=0
    #allocation0 [shape = 'u8[16384]{0}', space=vmem, size = 0x4000, scoped, tag = 'scoped mem for output reshape']
    %v2 = vld [vmem:[%s0] ss:$2 sm:$0xf]
    %vm3 = vcmask 523264
    %4 = vst.msk [vmem:[#allocation0] ss:$8 sm:$0xf] %vm3, %v2
    %s5 = scalar_lea.vmem %s0, 1
    %v6 = vld [vmem:[%s5] ss:$2 sm:$0xf]
    %7 = vrot.lane.b32.xlu0 %v6, 64
    %v8 = vpop.permute.xlu0 %7
    %vm9 = vcmask 1048064
    %10 = vst.msk [vmem:[#allocation0] ss:$8 sm:$0xf] %vm9, %v8
    %s12 = sshll.u32 1, 1
    %s13 = ssub.s32 %s12, 1
    %v15 = vld [vmem:[#allocation0] sm:%s13]
    %s16 = sshll.u32 1, 1
    %s17 = ssub.s32 %s16, 1
    %18 = vst [vmem:[%s1] sm:%s17] %v15
    %s19 = scalar_lea.vmem [#allocation0], 8
    %v20 = vld [vmem:[%s19] sm:%s13]
    %s21 = sshll.u32 1, 1
    %s22 = ssub.s32 %s21, 1
    %s23 = scalar_lea.vmem %s1, 1
    %24 = vst [vmem:[%s23] sm:%s22] %v20
    %s25 = scalar_lea.vmem [#allocation0], 16
    %v26 = vld [vmem:[%s25] sm:%s13]
    %s27 = sshll.u32 1, 1
    %s28 = ssub.s32 %s27, 1
    %s29 = smul.addr 1, 2
    %s30 = scalar_lea.vmem %s1, %s29
    %31 = vst [vmem:[%s30] sm:%s28] %v26
    %s32 = scalar_lea.vmem [#allocation0], 24
    %v33 = vld [vmem:[%s32] sm:%s13]
    %s34 = sshll.u32 1, 1
    %s35 = ssub.s32 %s34, 1
    %s36 = smul.addr 1, 3
    %s37 = scalar_lea.vmem %s1, %s36
    %38 = vst [vmem:[%s37] sm:%s35] %v33

// kernel: p4m_resnet_forward.21
$region0: #{p4m_resnet_forward.21}
  #allocation0 [shape = 'u32[]', space=smem, size = 0x4, offset = 0x4, fixed_abs, tag = 'smem constant byte address 0x4 - core index']
  #allocation1 [shape = 'u32[144,128]{1,0:T(1,128)}', space=vmem, size = 0x12000, scoped, tag = 'internal scratch']
  %s0 = inlined_call_operand.vmem [shape: f32[16,512], index: 0, kind: input, shape index: {}]
  %s1 = inlined_call_operand.vmem [shape: f32[1,512], index: 1, kind: input, shape index: {}]
  %s2 = inlined_call_operand.vmem [shape: f32[1,512], index: 2, kind: input, shape index: {}]
  %s3 = inlined_call_operand.vmem [shape: bf16[16,512], index: 3, kind: output, shape index: {}]
  %s4 = sld [smem:[#allocation0]]
  $region22: #{p4m_resnet_forward.21} parent=0
    _
  %s6 = ssub.s32 1, %s4
  %s7 = scalar_select 0, %s6, %s4
  // Predicated region
  $region2: #{p4m_resnet_forward.21} parent=0 // pred_check
    _
  $region3: #{p4m_resnet_forward.21} parent=0 // pred_check_branch
    %9 = sbr.rel (0) target = $region5
  $region4: #{p4m_resnet_forward.21} parent=0 // pred_region
    _
  $region5: #{p4m_resnet_forward.21} parent=0 // pred_fallthru
    _
  // Predicated region
  $region6: #{p4m_resnet_forward.21} parent=0 // pred_check
    _
  $region7: #{p4m_resnet_forward.21} parent=0 // pred_check_branch
    %11 = sbr.rel (0) target = $region9
  $region8: #{p4m_resnet_forward.21} parent=0 // pred_region
    _
  $region9: #{p4m_resnet_forward.21} parent=0 // pred_fallthru
    _
  // Predicated region
  $region10: #{p4m_resnet_forward.21} parent=0 // pred_check
    _
  $region11: #{p4m_resnet_forward.21} parent=0 // pred_check_branch
    %13 = sbr.rel (0) target = $region13
  $region12: #{p4m_resnet_forward.21} parent=0 // pred_region
    _
  $region13: #{p4m_resnet_forward.21} parent=0 // pred_fallthru
    _
  %v14 = vld [vmem:[%s0] sm:$0xff]
  %v15 = vld [vmem:[%s0 + $0x8] sm:$0xff]
  %v16 = vld [vmem:[%s0 + $0x10] sm:$0xff]
  %v17 = vld [vmem:[%s0 + $0x18] sm:$0xff]
  %v18 = vld [vmem:[%s0 + $0x20] sm:$0xff]
  %v19 = vld [vmem:[%s0 + $0x28] sm:$0xff]
  %v20 = vld [vmem:[%s0 + $0x30] sm:$0xff]
  %v21 = vld [vmem:[%s0 + $0x38] sm:$0xff]
  %v22 = vld [vmem:[%s1] sm:$0xf]
  %v24 = vlaneseq
  %v25 = vshrl.u32 %v24, 7
  %v26 = vsub.s32 0, %v25
  %v27 = vrot.slane %v22, %v26
  %v28 = vlaneseq
  %v29 = vshrl.u32 %v28, 7
  %v30 = vsub.s32 1, %v29
  %v31 = vrot.slane %v22, %v30
  %v32 = vlaneseq
  %v33 = vshrl.u32 %v32, 7
  %v34 = vsub.s32 2, %v33
  %v35 = vrot.slane %v22, %v34
  %v36 = vlaneseq
  %v37 = vshrl.u32 %v36, 7
  %v38 = vsub.s32 3, %v37
  %v39 = vrot.slane %v22, %v38
  %v44 = vmul.f32 %v14, %v27
  %v45 = vmul.f32 %v15, %v31
  %v46 = vmul.f32 %v16, %v35
  %v47 = vmul.f32 %v17, %v39
  %v48 = vmul.f32 %v18, %v27
  %v49 = vmul.f32 %v19, %v31
  %v50 = vmul.f32 %v20, %v35
  %v51 = vmul.f32 %v21, %v39
  %v52 = vld [vmem:[%s2] sm:$0xf]
  %v54 = vlaneseq
  %v55 = vshrl.u32 %v54, 7
  %v56 = vsub.s32 0, %v55
  %v57 = vrot.slane %v52, %v56
  %v58 = vlaneseq
  %v59 = vshrl.u32 %v58, 7
  %v60 = vsub.s32 1, %v59
  %v61 = vrot.slane %v52, %v60
  %v62 = vlaneseq
  %v63 = vshrl.u32 %v62, 7
  %v64 = vsub.s32 2, %v63
  %v65 = vrot.slane %v52, %v64
  %v66 = vlaneseq
  %v67 = vshrl.u32 %v66, 7
  %v68 = vsub.s32 3, %v67
  %v69 = vrot.slane %v52, %v68
  %v74 = vadd.f32 %v44, %v57
  %v75 = vadd.f32 %v45, %v61
  %v76 = vadd.f32 %v46, %v65
  %v77 = vadd.f32 %v47, %v69
  %v78 = vadd.f32 %v48, %v57
  %v79 = vadd.f32 %v49, %v61
  %v80 = vadd.f32 %v50, %v65
  %v81 = vadd.f32 %v51, %v69
  %v82 = vmax.f32 %v74, 0.0
  %v83 = vmax.f32 %v75, 0.0
  %v84 = vmax.f32 %v76, 0.0
  %v85 = vmax.f32 %v77, 0.0
  %v86 = vmax.f32 %v78, 0.0
  %v87 = vmax.f32 %v79, 0.0
  %v88 = vmax.f32 %v80, 0.0
  %v89 = vmax.f32 %v81, 0.0
  %v90 = vpack.c.bf16 %v86, %v82
  %v91 = vpack.c.bf16 %v87, %v83
  %v92 = vpack.c.bf16 %v88, %v84
  %v93 = vpack.c.bf16 %v89, %v85
  %v98 = vunpack.c.l.b16 %v90
  %v99 = vunpack.c.l.b16 %v91
  %v100 = vunpack.c.l.b16 %v92
  %v101 = vunpack.c.l.b16 %v93
  %v102 = vunpack.c.h.b16 %v90
  %v103 = vunpack.c.h.b16 %v91
  %v104 = vunpack.c.h.b16 %v92
  %v105 = vunpack.c.h.b16 %v93
  %v106 = vpack.c.b16 %v99, %v98
  %v107 = vpack.c.b16 %v101, %v100
  %v108 = vpack.c.b16 %v103, %v102
  %v109 = vpack.c.b16 %v105, %v104
  %114 = vst [vmem:[%s3] sm:$0xff] %v106
  %115 = vst [vmem:[%s3 + $0x8] sm:$0xff] %v107
  %116 = vst [vmem:[%s3 + $0x10] sm:$0xff] %v108
  %117 = vst [vmem:[%s3 + $0x18] sm:$0xff] %v109
  // Predicated region
  $region14: #{p4m_resnet_forward.21} parent=0 // pred_check
    _
  $region15: #{p4m_resnet_forward.21} parent=0 // pred_check_branch
    %119 = sbr.rel (0) target = $region17
  $region16: #{p4m_resnet_forward.21} parent=0 // pred_region
    _
  $region17: #{p4m_resnet_forward.21} parent=0 // pred_fallthru
    _
  // Predicated region
  $region18: #{p4m_resnet_forward.21} parent=0 // pred_check
    _
  $region19: #{p4m_resnet_forward.21} parent=0 // pred_check_branch
    %121 = sbr.rel (0) target = $region21
  $region20: #{p4m_resnet_forward.21} parent=0 // pred_region
    _
  $region21: #{p4m_resnet_forward.21} parent=0 // pred_fallthru
    _

// kernel: p4m_resnet_forward.22
$region0: #{p4m_resnet_forward.22}
  #allocation0 [shape = 'u32[]', space=smem, size = 0x4, offset = 0x4, fixed_abs, tag = 'smem constant byte address 0x4 - core index']
  #allocation1 [shape = 'u32[144,128]{1,0:T(1,128)}', space=vmem, size = 0x12000, scoped, tag = 'internal scratch']
  %s0 = inlined_call_operand.vmem [shape: bf16[128,576], index: 0, kind: input, shape index: {}]
  %s1 = inlined_call_operand.vmem [shape: bf16[576,64], index: 1, kind: input, shape index: {}]
  %s2 = inlined_call_operand.vmem [shape: f32[128,64], index: 2, kind: output, shape index: {}]
  %s3 = sld [smem:[#allocation0]]
  $region18: #{p4m_resnet_forward.22} parent=0
    _
  %s5 = ssub.s32 1, %s3
  %s6 = scalar_select 0, %s5, %s3
  // Predicated region
  $region2: #{p4m_resnet_forward.22} parent=0 // pred_check
    _
  $region3: #{p4m_resnet_forward.22} parent=0 // pred_check_branch
    %8 = sbr.rel (0) target = $region5
  $region4: #{p4m_resnet_forward.22} parent=0 // pred_region
    _
  $region5: #{p4m_resnet_forward.22} parent=0 // pred_fallthru
    _
  // Predicated region
  $region6: #{p4m_resnet_forward.22} parent=0 // pred_check
    _
  $region7: #{p4m_resnet_forward.22} parent=0 // pred_check_branch
    %10 = sbr.rel (0) target = $region9
  $region8: #{p4m_resnet_forward.22} parent=0 // pred_region
    _
  $region9: #{p4m_resnet_forward.22} parent=0 // pred_fallthru
    _
  %v12 = vld [vmem:[%s0] sm:$0xff]
  %v13 = vld [vmem:[%s0 + $0x8] sm:$0xff]
  %v14 = vld [vmem:[%s0 + $0x10] sm:$0xf]
  %v15 = vld [vmem:[%s0 + $0x14] sm:$0xff]
  %v16 = vld [vmem:[%s0 + $0x1c] sm:$0xff]
  %v17 = vld [vmem:[%s0 + $0x24] sm:$0xf]
  %v18 = vld [vmem:[%s0 + $0x28] sm:$0xff]
  %v19 = vld [vmem:[%s0 + $0x30] sm:$0xff]
  %v20 = vld [vmem:[%s0 + $0x38] sm:$0xf]
  %v21 = vld [vmem:[%s0 + $0x3c] sm:$0xff]
  %v22 = vld [vmem:[%s0 + $0x44] sm:$0xff]
  %v23 = vld [vmem:[%s0 + $0x4c] sm:$0xf]
  %v24 = vld [vmem:[%s0 + $0x50] sm:$0xff]
  %v25 = vld [vmem:[%s0 + $0x58] sm:$0xff]
  %v26 = vld [vmem:[%s0 + $0x60] sm:$0xf]
  %v27 = vld [vmem:[%s0 + $0x64] sm:$0xff]
  %v28 = vld [vmem:[%s0 + $0x6c] sm:$0xff]
  %v29 = vld [vmem:[%s0 + $0x74] sm:$0xf]
  %v30 = vld [vmem:[%s0 + $0x78] sm:$0xff]
  %v31 = vld [vmem:[%s0 + $0x80] sm:$0xff]
  %v32 = vld [vmem:[%s0 + $0x88] sm:$0xf]
  %v33 = vld [vmem:[%s0 + $0x8c] sm:$0xff]
  %v34 = vld [vmem:[%s0 + $0x94] sm:$0xff]
  %v35 = vld [vmem:[%s0 + $0x9c] sm:$0xf]
  %v36 = vld [vmem:[%s0 + $0xa0] sm:$0xff]
  %v37 = vld [vmem:[%s0 + $0xa8] sm:$0xff]
  %v38 = vld [vmem:[%s0 + $0xb0] sm:$0xf]
  %v39 = vld [vmem:[%s0 + $0xb4] sm:$0xff]
  %v40 = vld [vmem:[%s0 + $0xbc] sm:$0xff]
  %v41 = vld [vmem:[%s0 + $0xc4] sm:$0xf]
  %v42 = vld [vmem:[%s0 + $0xc8] sm:$0xff]
  %v43 = vld [vmem:[%s0 + $0xd0] sm:$0xff]
  %v44 = vld [vmem:[%s0 + $0xd8] sm:$0xf]
  %v45 = vld [vmem:[%s0 + $0xdc] sm:$0xff]
  %v46 = vld [vmem:[%s0 + $0xe4] sm:$0xff]
  %v47 = vld [vmem:[%s0 + $0xec] sm:$0xf]
  %v48 = vld [vmem:[%s0 + $0xf0] sm:$0xff]
  %v49 = vld [vmem:[%s0 + $0xf8] sm:$0xff]
  %v50 = vld [vmem:[%s0 + $0x100] sm:$0xf]
  %v51 = vld [vmem:[%s0 + $0x104] sm:$0xff]
  %v52 = vld [vmem:[%s0 + $0x10c] sm:$0xff]
  %v53 = vld [vmem:[%s0 + $0x114] sm:$0xf]
  %v54 = vld [vmem:[%s0 + $0x118] sm:$0xff]
  %v55 = vld [vmem:[%s0 + $0x120] sm:$0xff]
  %v56 = vld [vmem:[%s0 + $0x128] sm:$0xf]
  %v57 = vld [vmem:[%s0 + $0x12c] sm:$0xff]
  %v58 = vld [vmem:[%s0 + $0x134] sm:$0xff]
  %v59 = vld [vmem:[%s0 + $0x13c] sm:$0xf]
  %v60 = vld [vmem:[%s1] sm:$0xf]
  %v61 = vld [vmem:[%s1 + $0x4] sm:$0xf]
  %v62 = vld [vmem:[%s1 + $0x8] sm:$0xf]
  %v63 = vld [vmem:[%s1 + $0xc] sm:$0xf]
  %v64 = vld [vmem:[%s1 + $0x10] sm:$0xf]
  %v65 = vld [vmem:[%s1 + $0x14] sm:$0xf]
  %v66 = vld [vmem:[%s1 + $0x18] sm:$0xf]
  %v67 = vld [vmem:[%s1 + $0x1c] sm:$0xf]
  %v68 = vld [vmem:[%s1 + $0x20] sm:$0xf]
  %v69 = vld [vmem:[%s1 + $0x24] sm:$0xf]
  %v70 = vld [vmem:[%s1 + $0x28] sm:$0xf]
  %v71 = vld [vmem:[%s1 + $0x2c] sm:$0xf]
  %v72 = vld [vmem:[%s1 + $0x30] sm:$0xf]
  %v73 = vld [vmem:[%s1 + $0x34] sm:$0xf]
  %v74 = vld [vmem:[%s1 + $0x38] sm:$0xf]
  %v75 = vld [vmem:[%s1 + $0x3c] sm:$0xf]
  %v76 = vld [vmem:[%s1 + $0x40] sm:$0xf]
  %v77 = vld [vmem:[%s1 + $0x44] sm:$0xf]
  %v78 = vld [vmem:[%s1 + $0x48] sm:$0xf]
  %v79 = vld [vmem:[%s1 + $0x4c] sm:$0xf]
  %v80 = vld [vmem:[%s1 + $0x50] sm:$0xf]
  %v81 = vld [vmem:[%s1 + $0x54] sm:$0xf]
  %v82 = vld [vmem:[%s1 + $0x58] sm:$0xf]
  %v83 = vld [vmem:[%s1 + $0x5c] sm:$0xf]
  %v84 = vld [vmem:[%s1 + $0x60] sm:$0xf]
  %v85 = vld [vmem:[%s1 + $0x64] sm:$0xf]
  %v86 = vld [vmem:[%s1 + $0x68] sm:$0xf]
  %v87 = vld [vmem:[%s1 + $0x6c] sm:$0xf]
  %v88 = vld [vmem:[%s1 + $0x70] sm:$0xf]
  %v89 = vld [vmem:[%s1 + $0x74] sm:$0xf]
  %v90 = vld [vmem:[%s1 + $0x78] sm:$0xf]
  %v91 = vld [vmem:[%s1 + $0x7c] sm:$0xf]
  %v92 = vld [vmem:[%s1 + $0x80] sm:$0xf]
  %v93 = vld [vmem:[%s1 + $0x84] sm:$0xf]
  %v94 = vld [vmem:[%s1 + $0x88] sm:$0xf]
  %v95 = vld [vmem:[%s1 + $0x8c] sm:$0xf]
  %v96 = vld [vmem:[%s1 + $0x90] sm:$0xf]
  %v97 = vld [vmem:[%s1 + $0x94] sm:$0xf]
  %v98 = vld [vmem:[%s1 + $0x98] sm:$0xf]
  %v99 = vld [vmem:[%s1 + $0x9c] sm:$0xf]
  %v100 = vld [vmem:[%s1 + $0xa0] sm:$0xf]
  %v101 = vld [vmem:[%s1 + $0xa4] sm:$0xf]
  %v102 = vld [vmem:[%s1 + $0xa8] sm:$0xf]
  %v103 = vld [vmem:[%s1 + $0xac] sm:$0xf]
  %v104 = vld [vmem:[%s1 + $0xb0] sm:$0xf]
  %v105 = vld [vmem:[%s1 + $0xb4] sm:$0xf]
  %v106 = vld [vmem:[%s1 + $0xb8] sm:$0xf]
  %v107 = vld [vmem:[%s1 + $0xbc] sm:$0xf]
  %v108 = vld [vmem:[%s1 + $0xc0] sm:$0xf]
  %v109 = vld [vmem:[%s1 + $0xc4] sm:$0xf]
  %v110 = vld [vmem:[%s1 + $0xc8] sm:$0xf]
  %v111 = vld [vmem:[%s1 + $0xcc] sm:$0xf]
  %v112 = vld [vmem:[%s1 + $0xd0] sm:$0xf]
  %v113 = vld [vmem:[%s1 + $0xd4] sm:$0xf]
  %v114 = vld [vmem:[%s1 + $0xd8] sm:$0xf]
  %v115 = vld [vmem:[%s1 + $0xdc] sm:$0xf]
  %v116 = vld [vmem:[%s1 + $0xe0] sm:$0xf]
  %v117 = vld [vmem:[%s1 + $0xe4] sm:$0xf]
  %v118 = vld [vmem:[%s1 + $0xe8] sm:$0xf]
  %v119 = vld [vmem:[%s1 + $0xec] sm:$0xf]
  %v120 = vld [vmem:[%s1 + $0xf0] sm:$0xf]
  %v121 = vld [vmem:[%s1 + $0xf4] sm:$0xf]
  %v122 = vld [vmem:[%s1 + $0xf8] sm:$0xf]
  %v123 = vld [vmem:[%s1 + $0xfc] sm:$0xf]
  %v124 = vld [vmem:[%s1 + $0x100] sm:$0xf]
  %v125 = vld [vmem:[%s1 + $0x104] sm:$0xf]
  %v126 = vld [vmem:[%s1 + $0x108] sm:$0xf]
  %v127 = vld [vmem:[%s1 + $0x10c] sm:$0xf]
  %v128 = vld [vmem:[%s1 + $0x110] sm:$0xf]
  %v129 = vld [vmem:[%s1 + $0x114] sm:$0xf]
  %v130 = vld [vmem:[%s1 + $0x118] sm:$0xf]
  %v131 = vld [vmem:[%s1 + $0x11c] sm:$0xf]
  %v180 = vunpack.c.l.b16 %v12
  %v181 = vunpack.c.h.b16 %v12
  %v182 = vunpack.c.l.b16 %v13
  %v183 = vunpack.c.h.b16 %v13
  %v184 = vunpack.c.l.b16 %v14
  %v185 = vunpack.c.l.b16 %v15
  %v186 = vunpack.c.h.b16 %v15
  %v187 = vunpack.c.l.b16 %v16
  %v188 = vunpack.c.h.b16 %v16
  %v189 = vunpack.c.l.b16 %v17
  %v190 = vunpack.c.l.b16 %v18
  %v191 = vunpack.c.h.b16 %v18
  %v192 = vunpack.c.l.b16 %v19
  %v193 = vunpack.c.h.b16 %v19
  %v194 = vunpack.c.l.b16 %v20
  %v195 = vunpack.c.l.b16 %v21
  %v196 = vunpack.c.h.b16 %v21
  %v197 = vunpack.c.l.b16 %v22
  %v198 = vunpack.c.h.b16 %v22
  %v199 = vunpack.c.l.b16 %v23
  %v200 = vunpack.c.l.b16 %v24
  %v201 = vunpack.c.h.b16 %v24
  %v202 = vunpack.c.l.b16 %v25
  %v203 = vunpack.c.h.b16 %v25
  %v204 = vunpack.c.l.b16 %v26
  %v205 = vunpack.c.l.b16 %v27
  %v206 = vunpack.c.h.b16 %v27
  %v207 = vunpack.c.l.b16 %v28
  %v208 = vunpack.c.h.b16 %v28
  %v209 = vunpack.c.l.b16 %v29
  %v210 = vunpack.c.l.b16 %v30
  %v211 = vunpack.c.h.b16 %v30
  %v212 = vunpack.c.l.b16 %v31
  %v213 = vunpack.c.h.b16 %v31
  %v214 = vunpack.c.l.b16 %v32
  %v215 = vunpack.c.l.b16 %v33
  %v216 = vunpack.c.h.b16 %v33
  %v217 = vunpack.c.l.b16 %v34
  %v218 = vunpack.c.h.b16 %v34
  %v219 = vunpack.c.l.b16 %v35
  %v220 = vunpack.c.l.b16 %v36
  %v221 = vunpack.c.h.b16 %v36
  %v222 = vunpack.c.l.b16 %v37
  %v223 = vunpack.c.h.b16 %v37
  %v224 = vunpack.c.l.b16 %v38
  %v225 = vunpack.c.l.b16 %v39
  %v226 = vunpack.c.h.b16 %v39
  %v227 = vunpack.c.l.b16 %v40
  %v228 = vunpack.c.h.b16 %v40
  %v229 = vunpack.c.l.b16 %v41
  %v230 = vunpack.c.l.b16 %v42
  %v231 = vunpack.c.h.b16 %v42
  %v232 = vunpack.c.l.b16 %v43
  %v233 = vunpack.c.h.b16 %v43
  %v234 = vunpack.c.l.b16 %v44
  %v235 = vunpack.c.l.b16 %v45
  %v236 = vunpack.c.h.b16 %v45
  %v237 = vunpack.c.l.b16 %v46
  %v238 = vunpack.c.h.b16 %v46
  %v239 = vunpack.c.l.b16 %v47
  %v240 = vunpack.c.l.b16 %v48
  %v241 = vunpack.c.h.b16 %v48
  %v242 = vunpack.c.l.b16 %v49
  %v243 = vunpack.c.h.b16 %v49
  %v244 = vunpack.c.l.b16 %v50
  %v245 = vunpack.c.l.b16 %v51
  %v246 = vunpack.c.h.b16 %v51
  %v247 = vunpack.c.l.b16 %v52
  %v248 = vunpack.c.h.b16 %v52
  %v249 = vunpack.c.l.b16 %v53
  %v250 = vunpack.c.l.b16 %v54
  %v251 = vunpack.c.h.b16 %v54
  %v252 = vunpack.c.l.b16 %v55
  %v253 = vunpack.c.h.b16 %v55
  %v254 = vunpack.c.l.b16 %v56
  %v255 = vunpack.c.l.b16 %v57
  %v256 = vunpack.c.h.b16 %v57
  %v257 = vunpack.c.l.b16 %v58
  %v258 = vunpack.c.h.b16 %v58
  %v259 = vunpack.c.l.b16 %v59
  %v260 = vpack.c.b16 %v185, %v180
  %v261 = vpack.c.b16 %v186, %v181
  %v262 = vpack.c.b16 %v187, %v182
  %v263 = vpack.c.b16 %v188, %v183
  %v264 = vpack.c.b16 %v189, %v184
  %v265 = vpack.c.b16 %v195, %v190
  %v266 = vpack.c.b16 %v196, %v191
  %v267 = vpack.c.b16 %v197, %v192
  %v268 = vpack.c.b16 %v198, %v193
  %v269 = vpack.c.b16 %v199, %v194
  %v270 = vpack.c.b16 %v205, %v200
  %v271 = vpack.c.b16 %v206, %v201
  %v272 = vpack.c.b16 %v207, %v202
  %v273 = vpack.c.b16 %v208, %v203
  %v274 = vpack.c.b16 %v209, %v204
  %v275 = vpack.c.b16 %v215, %v210
  %v276 = vpack.c.b16 %v216, %v211
  %v277 = vpack.c.b16 %v217, %v212
  %v278 = vpack.c.b16 %v218, %v213
  %v279 = vpack.c.b16 %v219, %v214
  %v280 = vpack.c.b16 %v225, %v220
  %v281 = vpack.c.b16 %v226, %v221
  %v282 = vpack.c.b16 %v227, %v222
  %v283 = vpack.c.b16 %v228, %v223
  %v284 = vpack.c.b16 %v229, %v224
  %v285 = vpack.c.b16 %v235, %v230
  %v286 = vpack.c.b16 %v236, %v231
  %v287 = vpack.c.b16 %v237, %v232
  %v288 = vpack.c.b16 %v238, %v233
  %v289 = vpack.c.b16 %v239, %v234
  %v290 = vpack.c.b16 %v245, %v240
  %v291 = vpack.c.b16 %v246, %v241
  %v292 = vpack.c.b16 %v247, %v242
  %v293 = vpack.c.b16 %v248, %v243
  %v294 = vpack.c.b16 %v249, %v244
  %v295 = vpack.c.b16 %v255, %v250
  %v296 = vpack.c.b16 %v256, %v251
  %v297 = vpack.c.b16 %v257, %v252
  %v298 = vpack.c.b16 %v258, %v253
  %v299 = vpack.c.b16 %v259, %v254
  %v404 = vunpack.c.l.b16 %v60
  %v405 = vunpack.c.l.b16 %v61
  %v406 = vunpack.c.l.b16 %v62
  %v407 = vunpack.c.l.b16 %v63
  %v408 = vunpack.c.l.b16 %v64
  %v409 = vunpack.c.l.b16 %v65
  %v410 = vunpack.c.l.b16 %v66
  %v411 = vunpack.c.l.b16 %v67
  %v412 = vunpack.c.l.b16 %v68
  %v413 = vunpack.c.l.b16 %v69
  %v414 = vunpack.c.l.b16 %v70
  %v415 = vunpack.c.l.b16 %v71
  %v416 = vunpack.c.l.b16 %v72
  %v417 = vunpack.c.l.b16 %v73
  %v418 = vunpack.c.l.b16 %v74
  %v419 = vunpack.c.l.b16 %v75
  %v420 = vunpack.c.l.b16 %v76
  %v421 = vunpack.c.l.b16 %v77
  %v422 = vunpack.c.l.b16 %v78
  %v423 = vunpack.c.l.b16 %v79
  %v424 = vunpack.c.l.b16 %v80
  %v425 = vunpack.c.l.b16 %v81
  %v426 = vunpack.c.l.b16 %v82
  %v427 = vunpack.c.l.b16 %v83
  %v428 = vunpack.c.l.b16 %v84
  %v429 = vunpack.c.l.b16 %v85
  %v430 = vunpack.c.l.b16 %v86
  %v431 = vunpack.c.l.b16 %v87
  %v432 = vunpack.c.l.b16 %v88
  %v433 = vunpack.c.l.b16 %v89
  %v434 = vunpack.c.l.b16 %v90
  %v435 = vunpack.c.l.b16 %v91
  %v436 = vunpack.c.l.b16 %v92
  %v437 = vunpack.c.l.b16 %v93
  %v438 = vunpack.c.l.b16 %v94
  %v439 = vunpack.c.l.b16 %v95
  %v440 = vunpack.c.l.b16 %v96
  %v441 = vunpack.c.l.b16 %v97
  %v442 = vunpack.c.l.b16 %v98
  %v443 = vunpack.c.l.b16 %v99
  %v444 = vunpack.c.l.b16 %v100
  %v445 = vunpack.c.l.b16 %v101
  %v446 = vunpack.c.l.b16 %v102
  %v447 = vunpack.c.l.b16 %v103
  %v448 = vunpack.c.l.b16 %v104
  %v449 = vunpack.c.l.b16 %v105
  %v450 = vunpack.c.l.b16 %v106
  %v451 = vunpack.c.l.b16 %v107
  %v452 = vunpack.c.l.b16 %v108
  %v453 = vunpack.c.l.b16 %v109
  %v454 = vunpack.c.l.b16 %v110
  %v455 = vunpack.c.l.b16 %v111
  %v456 = vunpack.c.l.b16 %v112
  %v457 = vunpack.c.l.b16 %v113
  %v458 = vunpack.c.l.b16 %v114
  %v459 = vunpack.c.l.b16 %v115
  %v460 = vunpack.c.l.b16 %v116
  %v461 = vunpack.c.l.b16 %v117
  %v462 = vunpack.c.l.b16 %v118
  %v463 = vunpack.c.l.b16 %v119
  %v464 = vunpack.c.l.b16 %v120
  %v465 = vunpack.c.l.b16 %v121
  %v466 = vunpack.c.l.b16 %v122
  %v467 = vunpack.c.l.b16 %v123
  %v468 = vunpack.c.l.b16 %v124
  %v469 = vunpack.c.l.b16 %v125
  %v470 = vunpack.c.l.b16 %v126
  %v471 = vunpack.c.l.b16 %v127
  %v472 = vunpack.c.l.b16 %v128
  %v473 = vunpack.c.l.b16 %v129
  %v474 = vunpack.c.l.b16 %v130
  %v475 = vunpack.c.l.b16 %v131
  %v476 = vpack.c.b16 %v405, %v404
  %v477 = vpack.c.b16 %v407, %v406
  %v478 = vpack.c.b16 %v409, %v408
  %v479 = vpack.c.b16 %v411, %v410
  %v480 = vpack.c.b16 %v413, %v412
  %v481 = vpack.c.b16 %v415, %v414
  %v482 = vpack.c.b16 %v417, %v416
  %v483 = vpack.c.b16 %v419, %v418
  %v484 = vpack.c.b16 %v421, %v420
  %v485 = vpack.c.b16 %v423, %v422
  %v486 = vpack.c.b16 %v425, %v424
  %v487 = vpack.c.b16 %v427, %v426
  %v488 = vpack.c.b16 %v429, %v428
  %v489 = vpack.c.b16 %v431, %v430
  %v490 = vpack.c.b16 %v433, %v432
  %v491 = vpack.c.b16 %v435, %v434
  %v492 = vpack.c.b16 %v437, %v436
  %v493 = vpack.c.b16 %v439, %v438
  %v494 = vpack.c.b16 %v441, %v440
  %v495 = vpack.c.b16 %v443, %v442
  %v496 = vpack.c.b16 %v445, %v444
  %v497 = vpack.c.b16 %v447, %v446
  %v498 = vpack.c.b16 %v449, %v448
  %v499 = vpack.c.b16 %v451, %v450
  %v500 = vpack.c.b16 %v453, %v452
  %v501 = vpack.c.b16 %v455, %v454
  %v502 = vpack.c.b16 %v457, %v456
  %v503 = vpack.c.b16 %v459, %v458
  %v504 = vpack.c.b16 %v461, %v460
  %v505 = vpack.c.b16 %v463, %v462
  %v506 = vpack.c.b16 %v465, %v464
  %v507 = vpack.c.b16 %v467, %v466
  %v508 = vpack.c.b16 %v469, %v468
  %v509 = vpack.c.b16 %v471, %v470
  %v510 = vpack.c.b16 %v473, %v472
  %v511 = vpack.c.b16 %v475, %v474
  %vm548 = vcmask 523264
  %v550 = vsel %vm548, %v264, 0
  %v553 = vsel %vm548, %v269, 0
  %v556 = vsel %vm548, %v274, 0
  %v559 = vsel %vm548, %v279, 0
  %v562 = vsel %vm548, %v284, 0
  %v565 = vsel %vm548, %v289, 0
  %v568 = vsel %vm548, %v294, 0
  %v571 = vsel %vm548, %v299, 0
  %573 = vmatprep.subr.bf16.mxu0 0
  %574 = vmatpush1.bf16.msra.mxu0 %v483
  %575 = vmatprep.subr.bf16.mxu0 0
  %576 = vmatpush1.bf16.msra.mxu0 %v482
  %577 = vmatprep.subr.bf16.mxu0 0
  %578 = vmatpush1.bf16.msra.mxu0 %v481
  %579 = vmatprep.subr.bf16.mxu0 0
  %580 = vmatpush1.bf16.msra.mxu0 %v480
  %581 = vmatprep.subr.bf16.mxu0 0
  %582 = vmatpush1.bf16.msra.mxu0 %v479
  %583 = vmatprep.subr.bf16.mxu0 0
  %584 = vmatpush1.bf16.msra.mxu0 %v478
  %585 = vmatprep.subr.bf16.mxu0 0
  %586 = vmatpush1.bf16.msra.mxu0 %v477
  %587 = vmatprep.subr.bf16.mxu0 0
  %588 = vmatpush1.bf16.msra.mxu0 %v476
  %589 = vmatprep.subr.bf16.mxu0 0
  %590 = vmatpush2.bf16.msra.mxu0 %v491
  %591 = vmatprep.subr.bf16.mxu0 0
  %592 = vmatpush2.bf16.msra.mxu0 %v490
  %593 = vmatprep.subr.bf16.mxu0 0
  %594 = vmatpush2.bf16.msra.mxu0 %v489
  %595 = vmatprep.subr.bf16.mxu0 0
  %596 = vmatpush2.bf16.msra.mxu0 %v488
  %597 = vmatprep.subr.bf16.mxu0 0
  %598 = vmatpush2.bf16.msra.mxu0 %v487
  %599 = vmatprep.subr.bf16.mxu0 0
  %600 = vmatpush2.bf16.msra.mxu0 %v486
  %601 = vmatprep.subr.bf16.mxu0 0
  %602 = vmatpush2.bf16.msra.mxu0 %v485
  %603 = vmatprep.subr.bf16.mxu0 0
  %604 = vmatpush2.bf16.msra.mxu0 %v484
  %605 = vmatprep.mubr.bf16.mxu0 %v261
  %606 = vmatmul.mubr.bf16.gmra.mxu0 %v260
  %v607 = vpop.f32.mrf.mxu0
  %v608 = vadd.f32 0.0, %v607
  %v609 = vpop.f32.mrf.mxu0
  %v610 = vpop.f32.mrf.mxu0
  %v611 = vadd.f32 0.0, %v610
  %v612 = vpop.f32.mrf.mxu0
  %613 = vmatprep.mubr.bf16.mxu0 %v266
  %614 = vmatmul.mubr.bf16.gmra.mxu0 %v265
  %v615 = vpop.f32.mrf.mxu0
  %v616 = vadd.f32 0.0, %v615
  %v617 = vpop.f32.mrf.mxu0
  %v618 = vpop.f32.mrf.mxu0
  %v619 = vadd.f32 0.0, %v618
  %v620 = vpop.f32.mrf.mxu0
  %621 = vmatprep.mubr.bf16.mxu0 %v271
  %622 = vmatmul.mubr.bf16.gmra.mxu0 %v270
  %v623 = vpop.f32.mrf.mxu0
  %v624 = vadd.f32 0.0, %v623
  %v625 = vpop.f32.mrf.mxu0
  %v626 = vpop.f32.mrf.mxu0
  %v627 = vadd.f32 0.0, %v626
  %v628 = vpop.f32.mrf.mxu0
  %629 = vmatprep.mubr.bf16.mxu0 %v276
  %630 = vmatmul.mubr.bf16.gmra.mxu0 %v275
  %v631 = vpop.f32.mrf.mxu0
  %v632 = vadd.f32 0.0, %v631
  %v633 = vpop.f32.mrf.mxu0
  %v634 = vpop.f32.mrf.mxu0
  %v635 = vadd.f32 0.0, %v634
  %v636 = vpop.f32.mrf.mxu0
  %637 = vmatprep.mubr.bf16.mxu0 %v281
  %638 = vmatmul.mubr.bf16.gmra.mxu0 %v280
  %v639 = vpop.f32.mrf.mxu0
  %v640 = vadd.f32 0.0, %v639
  %v641 = vpop.f32.mrf.mxu0
  %v642 = vpop.f32.mrf.mxu0
  %v643 = vadd.f32 0.0, %v642
  %v644 = vpop.f32.mrf.mxu0
  %645 = vmatprep.mubr.bf16.mxu0 %v286
  %646 = vmatmul.mubr.bf16.gmra.mxu0 %v285
  %v647 = vpop.f32.mrf.mxu0
  %v648 = vadd.f32 0.0, %v647
  %v649 = vpop.f32.mrf.mxu0
  %v650 = vpop.f32.mrf.mxu0
  %v651 = vadd.f32 0.0, %v650
  %v652 = vpop.f32.mrf.mxu0
  %653 = vmatprep.mubr.bf16.mxu0 %v291
  %654 = vmatmul.mubr.bf16.gmra.mxu0 %v290
  %v655 = vpop.f32.mrf.mxu0
  %v656 = vadd.f32 0.0, %v655
  %v657 = vpop.f32.mrf.mxu0
  %v658 = vpop.f32.mrf.mxu0
  %v659 = vadd.f32 0.0, %v658
  %v660 = vpop.f32.mrf.mxu0
  %661 = vmatprep.mubr.bf16.mxu0 %v296
  %662 = vmatmul.mubr.bf16.gmra.mxu0 %v295
  %v663 = vpop.f32.mrf.mxu0
  %v664 = vadd.f32 0.0, %v663
  %v665 = vpop.f32.mrf.mxu0
  %v666 = vpop.f32.mrf.mxu0
  %v667 = vadd.f32 0.0, %v666
  %v668 = vpop.f32.mrf.mxu0
  %669 = vdwg.mxu0
  %670 = vmatprep.subr.bf16.mxu0 0
  %671 = vmatpush1.bf16.msra.mxu0 %v499
  %672 = vmatprep.subr.bf16.mxu0 0
  %673 = vmatpush1.bf16.msra.mxu0 %v498
  %674 = vmatprep.subr.bf16.mxu0 0
  %675 = vmatpush1.bf16.msra.mxu0 %v497
  %676 = vmatprep.subr.bf16.mxu0 0
  %677 = vmatpush1.bf16.msra.mxu0 %v496
  %678 = vmatprep.subr.bf16.mxu0 0
  %679 = vmatpush1.bf16.msra.mxu0 %v495
  %680 = vmatprep.subr.bf16.mxu0 0
  %681 = vmatpush1.bf16.msra.mxu0 %v494
  %682 = vmatprep.subr.bf16.mxu0 0
  %683 = vmatpush1.bf16.msra.mxu0 %v493
  %684 = vmatprep.subr.bf16.mxu0 0
  %685 = vmatpush1.bf16.msra.mxu0 %v492
  %686 = vmatprep.subr.bf16.mxu0 0
  %687 = vmatpush2.bf16.msra.mxu0 %v507
  %688 = vmatprep.subr.bf16.mxu0 0
  %689 = vmatpush2.bf16.msra.mxu0 %v506
  %690 = vmatprep.subr.bf16.mxu0 0
  %691 = vmatpush2.bf16.msra.mxu0 %v505
  %692 = vmatprep.subr.bf16.mxu0 0
  %693 = vmatpush2.bf16.msra.mxu0 %v504
  %694 = vmatprep.subr.bf16.mxu0 0
  %695 = vmatpush2.bf16.msra.mxu0 %v503
  %696 = vmatprep.subr.bf16.mxu0 0
  %697 = vmatpush2.bf16.msra.mxu0 %v502
  %698 = vmatprep.subr.bf16.mxu0 0
  %699 = vmatpush2.bf16.msra.mxu0 %v501
  %700 = vmatprep.subr.bf16.mxu0 0
  %701 = vmatpush2.bf16.msra.mxu0 %v500
  %702 = vmatprep.mubr.bf16.mxu0 %v263
  %703 = vmatmul.mubr.bf16.gmra.mxu0 %v262
  %v704 = vpop.f32.mrf.mxu0
  %v705 = vadd.f32 %v608, %v704
  %v706 = vpop.f32.mrf.mxu0
  %v707 = vpop.f32.mrf.mxu0
  %v708 = vadd.f32 %v611, %v707
  %v709 = vpop.f32.mrf.mxu0
  %710 = vmatprep.mubr.bf16.mxu0 %v268
  %711 = vmatmul.mubr.bf16.gmra.mxu0 %v267
  %v712 = vpop.f32.mrf.mxu0
  %v713 = vadd.f32 %v616, %v712
  %v714 = vpop.f32.mrf.mxu0
  %v715 = vpop.f32.mrf.mxu0
  %v716 = vadd.f32 %v619, %v715
  %v717 = vpop.f32.mrf.mxu0
  %718 = vmatprep.mubr.bf16.mxu0 %v273
  %719 = vmatmul.mubr.bf16.gmra.mxu0 %v272
  %v720 = vpop.f32.mrf.mxu0
  %v721 = vadd.f32 %v624, %v720
  %v722 = vpop.f32.mrf.mxu0
  %v723 = vpop.f32.mrf.mxu0
  %v724 = vadd.f32 %v627, %v723
  %v725 = vpop.f32.mrf.mxu0
  %726 = vmatprep.mubr.bf16.mxu0 %v278
  %727 = vmatmul.mubr.bf16.gmra.mxu0 %v277
  %v728 = vpop.f32.mrf.mxu0
  %v729 = vadd.f32 %v632, %v728
  %v730 = vpop.f32.mrf.mxu0
  %v731 = vpop.f32.mrf.mxu0
  %v732 = vadd.f32 %v635, %v731
  %v733 = vpop.f32.mrf.mxu0
  %734 = vmatprep.mubr.bf16.mxu0 %v283
  %735 = vmatmul.mubr.bf16.gmra.mxu0 %v282
  %v736 = vpop.f32.mrf.mxu0
  %v737 = vadd.f32 %v640, %v736
  %v738 = vpop.f32.mrf.mxu0
  %v739 = vpop.f32.mrf.mxu0
  %v740 = vadd.f32 %v643, %v739
  %v741 = vpop.f32.mrf.mxu0
  %742 = vmatprep.mubr.bf16.mxu0 %v288
  %743 = vmatmul.mubr.bf16.gmra.mxu0 %v287
  %v744 = vpop.f32.mrf.mxu0
  %v745 = vadd.f32 %v648, %v744
  %v746 = vpop.f32.mrf.mxu0
  %v747 = vpop.f32.mrf.mxu0
  %v748 = vadd.f32 %v651, %v747
  %v749 = vpop.f32.mrf.mxu0
  %750 = vmatprep.mubr.bf16.mxu0 %v293
  %751 = vmatmul.mubr.bf16.gmra.mxu0 %v292
  %v752 = vpop.f32.mrf.mxu0
  %v753 = vadd.f32 %v656, %v752
  %v754 = vpop.f32.mrf.mxu0
  %v755 = vpop.f32.mrf.mxu0
  %v756 = vadd.f32 %v659, %v755
  %v757 = vpop.f32.mrf.mxu0
  %758 = vmatprep.mubr.bf16.mxu0 %v298
  %759 = vmatmul.mubr.bf16.gmra.mxu0 %v297
  %v760 = vpop.f32.mrf.mxu0
  %v761 = vadd.f32 %v664, %v760
  %v762 = vpop.f32.mrf.mxu0
  %v763 = vpop.f32.mrf.mxu0
  %v764 = vadd.f32 %v667, %v763
  %v765 = vpop.f32.mrf.mxu0
  %766 = vdwg.mxu0
  %767 = vmatprep.subr.bf16.mxu0 0
  %768 = vmatpush1.bf16.msra.mxu0 0
  %769 = vmatprep.subr.bf16.mxu0 0
  %770 = vmatpush1.bf16.msra.mxu0 0
  %771 = vmatprep.subr.bf16.mxu0 0
  %772 = vmatpush1.bf16.msra.mxu0 0
  %773 = vmatprep.subr.bf16.mxu0 0
  %774 = vmatpush1.bf16.msra.mxu0 0
  %775 = vmatprep.subr.bf16.mxu0 0
  %776 = vmatpush1.bf16.msra.mxu0 %v511
  %777 = vmatprep.subr.bf16.mxu0 0
  %778 = vmatpush1.bf16.msra.mxu0 %v510
  %779 = vmatprep.subr.bf16.mxu0 0
  %780 = vmatpush1.bf16.msra.mxu0 %v509
  %781 = vmatprep.subr.bf16.mxu0 0
  %782 = vmatpush1.bf16.msra.mxu0 %v508
  %783 = vmatprep.subr.bf16.mxu0 0
  %784 = vmatpush2.bf16.msra.mxu0 0
  %785 = vmatprep.subr.bf16.mxu0 0
  %786 = vmatpush2.bf16.msra.mxu0 0
  %787 = vmatprep.subr.bf16.mxu0 0
  %788 = vmatpush2.bf16.msra.mxu0 0
  %789 = vmatprep.subr.bf16.mxu0 0
  %790 = vmatpush2.bf16.msra.mxu0 0
  %791 = vmatprep.subr.bf16.mxu0 0
  %792 = vmatpush2.bf16.msra.mxu0 0
  %793 = vmatprep.subr.bf16.mxu0 0
  %794 = vmatpush2.bf16.msra.mxu0 0
  %795 = vmatprep.subr.bf16.mxu0 0
  %796 = vmatpush2.bf16.msra.mxu0 0
  %797 = vmatprep.subr.bf16.mxu0 0
  %798 = vmatpush2.bf16.msra.mxu0 0
  %799 = vmatprep.mubr.bf16.mxu0 0
  %800 = vmatmul.mubr.bf16.gmra.mxu0 %v550
  %v801 = vpop.f32.mrf.mxu0
  %v802 = vadd.f32 %v705, %v801
  %v803 = vpop.f32.mrf.mxu0
  %v804 = vpop.f32.mrf.mxu0
  %v805 = vadd.f32 %v708, %v804
  %v806 = vpop.f32.mrf.mxu0
  %807 = vmatprep.mubr.bf16.mxu0 0
  %808 = vmatmul.mubr.bf16.gmra.mxu0 %v553
  %v809 = vpop.f32.mrf.mxu0
  %v810 = vadd.f32 %v713, %v809
  %v811 = vpop.f32.mrf.mxu0
  %v812 = vpop.f32.mrf.mxu0
  %v813 = vadd.f32 %v716, %v812
  %v814 = vpop.f32.mrf.mxu0
  %815 = vmatprep.mubr.bf16.mxu0 0
  %816 = vmatmul.mubr.bf16.gmra.mxu0 %v556
  %v817 = vpop.f32.mrf.mxu0
  %v818 = vadd.f32 %v721, %v817
  %v819 = vpop.f32.mrf.mxu0
  %v820 = vpop.f32.mrf.mxu0
  %v821 = vadd.f32 %v724, %v820
  %v822 = vpop.f32.mrf.mxu0
  %823 = vmatprep.mubr.bf16.mxu0 0
  %824 = vmatmul.mubr.bf16.gmra.mxu0 %v559
  %v825 = vpop.f32.mrf.mxu0
  %v826 = vadd.f32 %v729, %v825
  %v827 = vpop.f32.mrf.mxu0
  %v828 = vpop.f32.mrf.mxu0
  %v829 = vadd.f32 %v732, %v828
  %v830 = vpop.f32.mrf.mxu0
  %831 = vmatprep.mubr.bf16.mxu0 0
  %832 = vmatmul.mubr.bf16.gmra.mxu0 %v562
  %v833 = vpop.f32.mrf.mxu0
  %v834 = vadd.f32 %v737, %v833
  %v835 = vpop.f32.mrf.mxu0
  %v836 = vpop.f32.mrf.mxu0
  %v837 = vadd.f32 %v740, %v836
  %v838 = vpop.f32.mrf.mxu0
  %839 = vmatprep.mubr.bf16.mxu0 0
  %840 = vmatmul.mubr.bf16.gmra.mxu0 %v565
  %v841 = vpop.f32.mrf.mxu0
  %v842 = vadd.f32 %v745, %v841
  %v843 = vpop.f32.mrf.mxu0
  %v844 = vpop.f32.mrf.mxu0
  %v845 = vadd.f32 %v748, %v844
  %v846 = vpop.f32.mrf.mxu0
  %847 = vmatprep.mubr.bf16.mxu0 0
  %848 = vmatmul.mubr.bf16.gmra.mxu0 %v568
  %v849 = vpop.f32.mrf.mxu0
  %v850 = vadd.f32 %v753, %v849
  %v851 = vpop.f32.mrf.mxu0
  %v852 = vpop.f32.mrf.mxu0
  %v853 = vadd.f32 %v756, %v852
  %v854 = vpop.f32.mrf.mxu0
  %855 = vmatprep.mubr.bf16.mxu0 0
  %856 = vmatmul.mubr.bf16.gmra.mxu0 %v571
  %v857 = vpop.f32.mrf.mxu0
  %v858 = vadd.f32 %v761, %v857
  %v859 = vpop.f32.mrf.mxu0
  %v860 = vpop.f32.mrf.mxu0
  %v861 = vadd.f32 %v764, %v860
  %v862 = vpop.f32.mrf.mxu0
  %863 = vdwg.mxu0
  %864 = vst.msk [vmem:[%s2] sm:$0xff] %vm548, %v802
  %865 = vst.msk [vmem:[%s2 + $0x8] sm:$0xff] %vm548, %v805
  %866 = vst.msk [vmem:[%s2 + $0x10] sm:$0xff] %vm548, %v810
  %867 = vst.msk [vmem:[%s2 + $0x18] sm:$0xff] %vm548, %v813
  %868 = vst.msk [vmem:[%s2 + $0x20] sm:$0xff] %vm548, %v818
  %869 = vst.msk [vmem:[%s2 + $0x28] sm:$0xff] %vm548, %v821
  %870 = vst.msk [vmem:[%s2 + $0x30] sm:$0xff] %vm548, %v826
  %871 = vst.msk [vmem:[%s2 + $0x38] sm:$0xff] %vm548, %v829
  %872 = vst.msk [vmem:[%s2 + $0x40] sm:$0xff] %vm548, %v834
  %873 = vst.msk [vmem:[%s2 + $0x48] sm:$0xff] %vm548, %v837
  %874 = vst.msk [vmem:[%s2 + $0x50] sm:$0xff] %vm548, %v842
  %875 = vst.msk [vmem:[%s2 + $0x58] sm:$0xff] %vm548, %v845
  %876 = vst.msk [vmem:[%s2 + $0x60] sm:$0xff] %vm548, %v850
  %877 = vst.msk [vmem:[%s2 + $0x68] sm:$0xff] %vm548, %v853
  %878 = vst.msk [vmem:[%s2 + $0x70] sm:$0xff] %vm548, %v858
  %879 = vst.msk [vmem:[%s2 + $0x78] sm:$0xff] %vm548, %v861
  // Predicated region
  $region10: #{p4m_resnet_forward.22} parent=0 // pred_check
    _
  $region11: #{p4m_resnet_forward.22} parent=0 // pred_check_branch
    %881 = sbr.rel (0) target = $region13
  $region12: #{p4m_resnet_forward.22} parent=0 // pred_region
    _
  $region13: #{p4m_resnet_forward.22} parent=0 // pred_fallthru
    _
  // Predicated region
  $region14: #{p4m_resnet_forward.22} parent=0 // pred_check
    _
  $region15: #{p4m_resnet_forward.22} parent=0 // pred_check_branch
    %883 = sbr.rel (0) target = $region17
  $region16: #{p4m_resnet_forward.22} parent=0 // pred_region
    _
  $region17: #{p4m_resnet_forward.22} parent=0 // pred_fallthru
    _

// kernel: p4m_resnet_forward.23
$region0: #{p4m_resnet_forward.23}
  #allocation0 [shape = 'u32[]', space=smem, size = 0x4, offset = 0x4, fixed_abs, tag = 'smem constant byte address 0x4 - core index']
  #allocation1 [shape = 'u32[144,128]{1,0:T(1,128)}', space=vmem, size = 0x12000, scoped, tag = 'internal scratch']
  %s0 = inlined_call_operand.vmem [shape: bf16[512,64], index: 0, kind: input, shape index: {}]
  %s1 = inlined_call_operand.vmem [shape: bf16[64,64], index: 1, kind: input, shape index: {}]
  %s2 = inlined_call_operand.vmem [shape: f32[512,64], index: 2, kind: output, shape index: {}]
  %s3 = sld [smem:[#allocation0]]
  $region41: #{p4m_resnet_forward.23} parent=0
    _
  %s5 = ssub.s32 1, %s3
  %s6 = scalar_select 0, %s5, %s3
  loop: start=0, step=1, limit=4
  $region2: #{p4m_resnet_forward.23} parent=0 // loop_pre_header
    _
  $region3: #{p4m_resnet_forward.23} parent=0 // loop_header
    %s8 = sphi 0, %s12
    %p9 = scmp.ge.s32.totalorder %s8, 4
    %s18 = sphi 0, %s20
    %s21 = sphi 0, %s18
    %s22 = sphi 0, %s21
    %s38 = sphi 0, %s22
    %s42 = sphi 0, %s42
    %s44 = sphi 0, %s42
    %s45 = sphi 0, %s44
    %s59 = sphi 0, %s45
    %s65 = sphi 0, %s67
    %s68 = sphi 0, %s65
    %s69 = sphi 0, %s68
    %s85 = sphi 0, %s69
  $region4: #{p4m_resnet_forward.23} parent=0 // loop_header_branch
    %11 = sbr.rel (%p9) target = $region8
  $region5: #{p4m_resnet_forward.23} parent=0 // loop_body
    %s13 = ssub.s32 %s8, 1
    %s14 = ssub.s32 %s8, 2
    %s15 = sadd.s32 %s8, 1
    %s16 = ssub.s32 %s8, %s15
    %p17 = scmp.eq.s32.totalorder %s16, 0
    %s19 = sadd.s32 %s18, 1
    %s20 = scalar_select %p17, %s18, %s19
    %p23 = pneg %p17
    %p24 = scmp.eq.s32.totalorder %s8, 1
    %p25 = por %p23, %p24
    %p26 = scmp.ne.s32.totalorder %s18, %s21
    %p27 = scmp.eq.s32.totalorder %s8, 0
    %p28 = por %p26, %p27
    %p29 = scmp.ne.s32.totalorder %s18, %s21
    %p30 = scmp.eq.s32.totalorder %s13, 1
    %p31 = por %p29, %p30
    %p32 = scmp.ne.s32.totalorder %s21, %s22
    %p33 = scmp.eq.s32.totalorder %s13, 0
    %p34 = por %p32, %p33
    %p35 = scmp.ne.s32.totalorder %s21, %s22
    %p36 = scmp.eq.s32.totalorder %s14, 1
    %p37 = por %p35, %p36
    %p39 = scmp.ne.s32.totalorder %s22, %s38
    %p40 = scmp.eq.s32.totalorder %s14, 0
    %p41 = por %p39, %p40
    %s43 = sadd.s32 %s42, 1
    %p46 = scmp.eq.s32.totalorder %s8, 1
    %p47 = scmp.ne.s32.totalorder %s42, %s44
    %p48 = scmp.eq.s32.totalorder %s8, 0
    %p49 = por %p47, %p48
    %p50 = scmp.ne.s32.totalorder %s42, %s44
    %p51 = scmp.eq.s32.totalorder %s13, 1
    %p52 = por %p50, %p51
    %p53 = scmp.ne.s32.totalorder %s44, %s45
    %p54 = scmp.eq.s32.totalorder %s13, 0
    %p55 = por %p53, %p54
    %p56 = scmp.ne.s32.totalorder %s44, %s45
    %p57 = scmp.eq.s32.totalorder %s14, 1
    %p58 = por %p56, %p57
    %p60 = scmp.ne.s32.totalorder %s45, %s59
    %p61 = scmp.eq.s32.totalorder %s14, 0
    %p62 = por %p60, %p61
    %s63 = ssub.s32 %s8, %s15
    %p64 = scmp.eq.s32.totalorder %s63, 0
    %s66 = sadd.s32 %s65, 1
    %s67 = scalar_select %p64, %s65, %s66
    %p70 = pneg %p64
    %p71 = scmp.eq.s32.totalorder %s8, 1
    %p72 = por %p70, %p71
    %p73 = scmp.ne.s32.totalorder %s65, %s68
    %p74 = scmp.eq.s32.totalorder %s8, 0
    %p75 = por %p73, %p74
    %p76 = scmp.ne.s32.totalorder %s65, %s68
    %p77 = scmp.eq.s32.totalorder %s13, 1
    %p78 = por %p76, %p77
    %p79 = scmp.ne.s32.totalorder %s68, %s69
    %p80 = scmp.eq.s32.totalorder %s13, 0
    %p81 = por %p79, %p80
    %p82 = scmp.ne.s32.totalorder %s68, %s69
    %p83 = scmp.eq.s32.totalorder %s14, 1
    %p84 = por %p82, %p83
    %p86 = scmp.ne.s32.totalorder %s69, %s85
    %p87 = scmp.eq.s32.totalorder %s14, 0
    %p88 = por %p86, %p87
    %p89 = scmp.le.s32.totalorder 1, %s8
    %p90 = scmp.lt.s32.totalorder %s8, 3
    %p91 = pnand %p89, %p90
    %p92 = pneg %p91
    // Predicated region
    $region9: #{p4m_resnet_forward.23} parent=5 // pred_check
      _
    $region10: #{p4m_resnet_forward.23} parent=5 // pred_check_branch
      %94 = sbr.rel (%p91) target = $region12
    $region11: #{p4m_resnet_forward.23} parent=5 // pred_region
      %s95 = ssub.s32 %s8, 1
      // Predicated region
      $region13: #{p4m_resnet_forward.23} parent=11 // pred_check
        %p96 = pneg %p55
      $region14: #{p4m_resnet_forward.23} parent=11 // pred_check_branch
        %98 = sbr.rel (%p96) target = $region16
      $region15: #{p4m_resnet_forward.23} parent=11 // pred_region
        _
      $region16: #{p4m_resnet_forward.23} parent=11 // pred_fallthru
        _
    $region12: #{p4m_resnet_forward.23} parent=5 // pred_fallthru
      _
    %p99 = scmp.lt.s32.totalorder %s8, 2
    // Predicated region
    $region17: #{p4m_resnet_forward.23} parent=5 // pred_check
      %p100 = pneg %p99
    $region18: #{p4m_resnet_forward.23} parent=5 // pred_check_branch
      %102 = sbr.rel (%p100) target = $region20
    $region19: #{p4m_resnet_forward.23} parent=5 // pred_region
      // Predicated region
      $region21: #{p4m_resnet_forward.23} parent=19 // pred_check
        %p103 = pneg %p28
      $region22: #{p4m_resnet_forward.23} parent=19 // pred_check_branch
        %105 = sbr.rel (%p103) target = $region24
      $region23: #{p4m_resnet_forward.23} parent=19 // pred_region
        %s106 = smul.u32 32, %s8
        %p107 = scmp.lt.s32.totalorder %s106, 63
        %s108 = scalar_select %p107, %s106, 63
        %s109 = smul.addr %s108, 4
        %s110 = scalar_lea.vmem %s0, %s109
        %s111 = smul.u32 32, %s8
      $region24: #{p4m_resnet_forward.23} parent=19 // pred_fallthru
        _
    $region20: #{p4m_resnet_forward.23} parent=5 // pred_fallthru
      _
    %p112 = scmp.le.s32.totalorder 1, %s8
    %p113 = scmp.lt.s32.totalorder %s8, 3
    %p114 = pnand %p112, %p113
    %p115 = pneg %p114
    // Predicated region
    $region25: #{p4m_resnet_forward.23} parent=5 // pred_check
      _
    $region26: #{p4m_resnet_forward.23} parent=5 // pred_check_branch
      %117 = sbr.rel (%p114) target = $region28
    $region27: #{p4m_resnet_forward.23} parent=5 // pred_region
      %s118 = ssub.s32 %s8, 1
      %s119 = smul.u32 32, %s13
      %p120 = scmp.lt.s32.totalorder %s119, 63
      %s121 = scalar_select %p120, %s119, 63
      %s122 = smul.addr %s121, 4
      %s123 = scalar_lea.vmem %s0, %s122
      %p124 = pneg %p34
      %p125 = pneg %p31
      %p126 = pneg %p55
      %p127 = pneg %p52
      %p128 = pneg %p81
      %p129 = pneg %p78
      %s130 = smul.u32 32, %s13
      %p131 = scmp.lt.s32.totalorder %s130, 63
      %s132 = scalar_select %p131, %s130, 63
      %s133 = smul.addr %s132, 8
      %s134 = scalar_lea.vmem %s2, %s133
      %s135 = smul.u32 32, %s13
      %p136 = scmp.lt.s32.totalorder %s135, 63
      %s137 = scalar_select %p136, %s135, 63
      %s138 = smul.addr %s137, 4
      %s139 = scalar_lea.vmem %s0, %s138
      %s140 = smul.u32 32, %s13
      %s141 = smul.u32 32, %s13
      %p142 = scmp.lt.s32.totalorder %s141, 63
      %s143 = scalar_select %p142, %s141, 63
      %s144 = smul.addr %s143, 8
      %s145 = scalar_lea.vmem %s2, %s144
      %s146 = smul.u32 32, %s13
      %v148 = vld [vmem:[%s139] sm:$0xf]
      %v149 = vld [vmem:[%s139 + $0x4] sm:$0xf]
      %v150 = vld [vmem:[%s139 + $0x8] sm:$0xf]
      %v151 = vld [vmem:[%s139 + $0xc] sm:$0xf]
      %v152 = vld [vmem:[%s139 + $0x10] sm:$0xf]
      %v153 = vld [vmem:[%s139 + $0x14] sm:$0xf]
      %v154 = vld [vmem:[%s139 + $0x18] sm:$0xf]
      %v155 = vld [vmem:[%s139 + $0x1c] sm:$0xf]
      %v156 = vld [vmem:[%s139 + $0x20] sm:$0xf]
      %v157 = vld [vmem:[%s139 + $0x24] sm:$0xf]
      %v158 = vld [vmem:[%s139 + $0x28] sm:$0xf]
      %v159 = vld [vmem:[%s139 + $0x2c] sm:$0xf]
      %v160 = vld [vmem:[%s139 + $0x30] sm:$0xf]
      %v161 = vld [vmem:[%s139 + $0x34] sm:$0xf]
      %v162 = vld [vmem:[%s139 + $0x38] sm:$0xf]
      %v163 = vld [vmem:[%s139 + $0x3c] sm:$0xf]
      %v164 = vld [vmem:[%s139 + $0x40] sm:$0xf]
      %v165 = vld [vmem:[%s139 + $0x44] sm:$0xf]
      %v166 = vld [vmem:[%s139 + $0x48] sm:$0xf]
      %v167 = vld [vmem:[%s139 + $0x4c] sm:$0xf]
      %v168 = vld [vmem:[%s139 + $0x50] sm:$0xf]
      %v169 = vld [vmem:[%s139 + $0x54] sm:$0xf]
      %v170 = vld [vmem:[%s139 + $0x58] sm:$0xf]
      %v171 = vld [vmem:[%s139 + $0x5c] sm:$0xf]
      %v172 = vld [vmem:[%s139 + $0x60] sm:$0xf]
      %v173 = vld [vmem:[%s139 + $0x64] sm:$0xf]
      %v174 = vld [vmem:[%s139 + $0x68] sm:$0xf]
      %v175 = vld [vmem:[%s139 + $0x6c] sm:$0xf]
      %v176 = vld [vmem:[%s139 + $0x70] sm:$0xf]
      %v177 = vld [vmem:[%s139 + $0x74] sm:$0xf]
      %v178 = vld [vmem:[%s139 + $0x78] sm:$0xf]
      %v179 = vld [vmem:[%s139 + $0x7c] sm:$0xf]
      %v180 = vld [vmem:[%s1] sm:$0xf]
      %v181 = vld [vmem:[%s1 + $0x4] sm:$0xf]
      %v182 = vld [vmem:[%s1 + $0x8] sm:$0xf]
      %v183 = vld [vmem:[%s1 + $0xc] sm:$0xf]
      %v184 = vld [vmem:[%s1 + $0x10] sm:$0xf]
      %v185 = vld [vmem:[%s1 + $0x14] sm:$0xf]
      %v186 = vld [vmem:[%s1 + $0x18] sm:$0xf]
      %v187 = vld [vmem:[%s1 + $0x1c] sm:$0xf]
      %v220 = vunpack.c.l.b16 %v148
      %v221 = vunpack.c.l.b16 %v149
      %v222 = vunpack.c.l.b16 %v150
      %v223 = vunpack.c.l.b16 %v151
      %v224 = vunpack.c.l.b16 %v152
      %v225 = vunpack.c.l.b16 %v153
      %v226 = vunpack.c.l.b16 %v154
      %v227 = vunpack.c.l.b16 %v155
      %v228 = vunpack.c.l.b16 %v156
      %v229 = vunpack.c.l.b16 %v157
      %v230 = vunpack.c.l.b16 %v158
      %v231 = vunpack.c.l.b16 %v159
      %v232 = vunpack.c.l.b16 %v160
      %v233 = vunpack.c.l.b16 %v161
      %v234 = vunpack.c.l.b16 %v162
      %v235 = vunpack.c.l.b16 %v163
      %v236 = vunpack.c.l.b16 %v164
      %v237 = vunpack.c.l.b16 %v165
      %v238 = vunpack.c.l.b16 %v166
      %v239 = vunpack.c.l.b16 %v167
      %v240 = vunpack.c.l.b16 %v168
      %v241 = vunpack.c.l.b16 %v169
      %v242 = vunpack.c.l.b16 %v170
      %v243 = vunpack.c.l.b16 %v171
      %v244 = vunpack.c.l.b16 %v172
      %v245 = vunpack.c.l.b16 %v173
      %v246 = vunpack.c.l.b16 %v174
      %v247 = vunpack.c.l.b16 %v175
      %v248 = vunpack.c.l.b16 %v176
      %v249 = vunpack.c.l.b16 %v177
      %v250 = vunpack.c.l.b16 %v178
      %v251 = vunpack.c.l.b16 %v179
      %v252 = vpack.c.b16 %v221, %v220
      %v253 = vpack.c.b16 %v223, %v222
      %v254 = vpack.c.b16 %v225, %v224
      %v255 = vpack.c.b16 %v227, %v226
      %v256 = vpack.c.b16 %v229, %v228
      %v257 = vpack.c.b16 %v231, %v230
      %v258 = vpack.c.b16 %v233, %v232
      %v259 = vpack.c.b16 %v235, %v234
      %v260 = vpack.c.b16 %v237, %v236
      %v261 = vpack.c.b16 %v239, %v238
      %v262 = vpack.c.b16 %v241, %v240
      %v263 = vpack.c.b16 %v243, %v242
      %v264 = vpack.c.b16 %v245, %v244
      %v265 = vpack.c.b16 %v247, %v246
      %v266 = vpack.c.b16 %v249, %v248
      %v267 = vpack.c.b16 %v251, %v250
      %v276 = vunpack.c.l.b16 %v180
      %v277 = vunpack.c.l.b16 %v181
      %v278 = vunpack.c.l.b16 %v182
      %v279 = vunpack.c.l.b16 %v183
      %v280 = vunpack.c.l.b16 %v184
      %v281 = vunpack.c.l.b16 %v185
      %v282 = vunpack.c.l.b16 %v186
      %v283 = vunpack.c.l.b16 %v187
      %v284 = vpack.c.b16 %v277, %v276
      %v285 = vpack.c.b16 %v279, %v278
      %v286 = vpack.c.b16 %v281, %v280
      %v287 = vpack.c.b16 %v283, %v282
      %vm292 = vcmask 523264
      %v294 = vsel %vm292, %v252, 0
      %v297 = vsel %vm292, %v253, 0
      %v300 = vsel %vm292, %v254, 0
      %v303 = vsel %vm292, %v255, 0
      %v306 = vsel %vm292, %v256, 0
      %v309 = vsel %vm292, %v257, 0
      %v312 = vsel %vm292, %v258, 0
      %v315 = vsel %vm292, %v259, 0
      %v318 = vsel %vm292, %v260, 0
      %v321 = vsel %vm292, %v261, 0
      %v324 = vsel %vm292, %v262, 0
      %v327 = vsel %vm292, %v263, 0
      %v330 = vsel %vm292, %v264, 0
      %v333 = vsel %vm292, %v265, 0
      %v336 = vsel %vm292, %v266, 0
      %v339 = vsel %vm292, %v267, 0
      %341 = vmatprep.subr.bf16.mxu0 0
      %342 = vmatpush1.bf16.msra.mxu0 0
      %343 = vmatprep.subr.bf16.mxu0 0
      %344 = vmatpush1.bf16.msra.mxu0 0
      %345 = vmatprep.subr.bf16.mxu0 0
      %346 = vmatpush1.bf16.msra.mxu0 0
      %347 = vmatprep.subr.bf16.mxu0 0
      %348 = vmatpush1.bf16.msra.mxu0 0
      %349 = vmatprep.subr.bf16.mxu0 0
      %350 = vmatpush1.bf16.msra.mxu0 %v287
      %351 = vmatprep.subr.bf16.mxu0 0
      %352 = vmatpush1.bf16.msra.mxu0 %v286
      %353 = vmatprep.subr.bf16.mxu0 0
      %354 = vmatpush1.bf16.msra.mxu0 %v285
      %355 = vmatprep.subr.bf16.mxu0 0
      %356 = vmatpush1.bf16.msra.mxu0 %v284
      %357 = vmatprep.subr.bf16.mxu0 0
      %358 = vmatpush2.bf16.msra.mxu0 0
      %359 = vmatprep.subr.bf16.mxu0 0
      %360 = vmatpush2.bf16.msra.mxu0 0
      %361 = vmatprep.subr.bf16.mxu0 0
      %362 = vmatpush2.bf16.msra.mxu0 0
      %363 = vmatprep.subr.bf16.mxu0 0
      %364 = vmatpush2.bf16.msra.mxu0 0
      %365 = vmatprep.subr.bf16.mxu0 0
      %366 = vmatpush2.bf16.msra.mxu0 0
      %367 = vmatprep.subr.bf16.mxu0 0
      %368 = vmatpush2.bf16.msra.mxu0 0
      %369 = vmatprep.subr.bf16.mxu0 0
      %370 = vmatpush2.bf16.msra.mxu0 0
      %371 = vmatprep.subr.bf16.mxu0 0
      %372 = vmatpush2.bf16.msra.mxu0 0
      %373 = vmatprep.mubr.bf16.mxu0 0
      %374 = vmatmul.mubr.bf16.gmra.mxu0 %v294
      %v375 = vpop.f32.mrf.mxu0
      %v376 = vadd.f32 0.0, %v375
      %v377 = vpop.f32.mrf.mxu0
      %v378 = vpop.f32.mrf.mxu0
      %v379 = vadd.f32 0.0, %v378
      %v380 = vpop.f32.mrf.mxu0
      %381 = vmatprep.mubr.bf16.mxu0 0
      %382 = vmatmul.mubr.bf16.gmra.mxu0 %v297
      %v383 = vpop.f32.mrf.mxu0
      %v384 = vadd.f32 0.0, %v383
      %v385 = vpop.f32.mrf.mxu0
      %v386 = vpop.f32.mrf.mxu0
      %v387 = vadd.f32 0.0, %v386
      %v388 = vpop.f32.mrf.mxu0
      %389 = vmatprep.mubr.bf16.mxu0 0
      %390 = vmatmul.mubr.bf16.gmra.mxu0 %v300
      %v391 = vpop.f32.mrf.mxu0
      %v392 = vadd.f32 0.0, %v391
      %v393 = vpop.f32.mrf.mxu0
      %v394 = vpop.f32.mrf.mxu0
      %v395 = vadd.f32 0.0, %v394
      %v396 = vpop.f32.mrf.mxu0
      %397 = vmatprep.mubr.bf16.mxu0 0
      %398 = vmatmul.mubr.bf16.gmra.mxu0 %v303
      %v399 = vpop.f32.mrf.mxu0
      %v400 = vadd.f32 0.0, %v399
      %v401 = vpop.f32.mrf.mxu0
      %v402 = vpop.f32.mrf.mxu0
      %v403 = vadd.f32 0.0, %v402
      %v404 = vpop.f32.mrf.mxu0
      %405 = vmatprep.mubr.bf16.mxu0 0
      %406 = vmatmul.mubr.bf16.gmra.mxu0 %v306
      %v407 = vpop.f32.mrf.mxu0
      %v408 = vadd.f32 0.0, %v407
      %v409 = vpop.f32.mrf.mxu0
      %v410 = vpop.f32.mrf.mxu0
      %v411 = vadd.f32 0.0, %v410
      %v412 = vpop.f32.mrf.mxu0
      %413 = vmatprep.mubr.bf16.mxu0 0
      %414 = vmatmul.mubr.bf16.gmra.mxu0 %v309
      %v415 = vpop.f32.mrf.mxu0
      %v416 = vadd.f32 0.0, %v415
      %v417 = vpop.f32.mrf.mxu0
      %v418 = vpop.f32.mrf.mxu0
      %v419 = vadd.f32 0.0, %v418
      %v420 = vpop.f32.mrf.mxu0
      %421 = vmatprep.mubr.bf16.mxu0 0
      %422 = vmatmul.mubr.bf16.gmra.mxu0 %v312
      %v423 = vpop.f32.mrf.mxu0
      %v424 = vadd.f32 0.0, %v423
      %v425 = vpop.f32.mrf.mxu0
      %v426 = vpop.f32.mrf.mxu0
      %v427 = vadd.f32 0.0, %v426
      %v428 = vpop.f32.mrf.mxu0
      %429 = vmatprep.mubr.bf16.mxu0 0
      %430 = vmatmul.mubr.bf16.gmra.mxu0 %v315
      %v431 = vpop.f32.mrf.mxu0
      %v432 = vadd.f32 0.0, %v431
      %v433 = vpop.f32.mrf.mxu0
      %v434 = vpop.f32.mrf.mxu0
      %v435 = vadd.f32 0.0, %v434
      %v436 = vpop.f32.mrf.mxu0
      %437 = vmatprep.mubr.bf16.mxu0 0
      %438 = vmatmul.mubr.bf16.gmra.mxu0 %v318
      %v439 = vpop.f32.mrf.mxu0
      %v440 = vadd.f32 0.0, %v439
      %v441 = vpop.f32.mrf.mxu0
      %v442 = vpop.f32.mrf.mxu0
      %v443 = vadd.f32 0.0, %v442
      %v444 = vpop.f32.mrf.mxu0
      %445 = vmatprep.mubr.bf16.mxu0 0
      %446 = vmatmul.mubr.bf16.gmra.mxu0 %v321
      %v447 = vpop.f32.mrf.mxu0
      %v448 = vadd.f32 0.0, %v447
      %v449 = vpop.f32.mrf.mxu0
      %v450 = vpop.f32.mrf.mxu0
      %v451 = vadd.f32 0.0, %v450
      %v452 = vpop.f32.mrf.mxu0
      %453 = vmatprep.mubr.bf16.mxu0 0
      %454 = vmatmul.mubr.bf16.gmra.mxu0 %v324
      %v455 = vpop.f32.mrf.mxu0
      %v456 = vadd.f32 0.0, %v455
      %v457 = vpop.f32.mrf.mxu0
      %v458 = vpop.f32.mrf.mxu0
      %v459 = vadd.f32 0.0, %v458
      %v460 = vpop.f32.mrf.mxu0
      %461 = vmatprep.mubr.bf16.mxu0 0
      %462 = vmatmul.mubr.bf16.gmra.mxu0 %v327
      %v463 = vpop.f32.mrf.mxu0
      %v464 = vadd.f32 0.0, %v463
      %v465 = vpop.f32.mrf.mxu0
      %v466 = vpop.f32.mrf.mxu0
      %v467 = vadd.f32 0.0, %v466
      %v468 = vpop.f32.mrf.mxu0
      %469 = vmatprep.mubr.bf16.mxu0 0
      %470 = vmatmul.mubr.bf16.gmra.mxu0 %v330
      %v471 = vpop.f32.mrf.mxu0
      %v472 = vadd.f32 0.0, %v471
      %v473 = vpop.f32.mrf.mxu0
      %v474 = vpop.f32.mrf.mxu0
      %v475 = vadd.f32 0.0, %v474
      %v476 = vpop.f32.mrf.mxu0
      %477 = vmatprep.mubr.bf16.mxu0 0
      %478 = vmatmul.mubr.bf16.gmra.mxu0 %v333
      %v479 = vpop.f32.mrf.mxu0
      %v480 = vadd.f32 0.0, %v479
      %v481 = vpop.f32.mrf.mxu0
      %v482 = vpop.f32.mrf.mxu0
      %v483 = vadd.f32 0.0, %v482
      %v484 = vpop.f32.mrf.mxu0
      %485 = vmatprep.mubr.bf16.mxu0 0
      %486 = vmatmul.mubr.bf16.gmra.mxu0 %v336
      %v487 = vpop.f32.mrf.mxu0
      %v488 = vadd.f32 0.0, %v487
      %v489 = vpop.f32.mrf.mxu0
      %v490 = vpop.f32.mrf.mxu0
      %v491 = vadd.f32 0.0, %v490
      %v492 = vpop.f32.mrf.mxu0
      %493 = vmatprep.mubr.bf16.mxu0 0
      %494 = vmatmul.mubr.bf16.gmra.mxu0 %v339
      %v495 = vpop.f32.mrf.mxu0
      %v496 = vadd.f32 0.0, %v495
      %v497 = vpop.f32.mrf.mxu0
      %v498 = vpop.f32.mrf.mxu0
      %v499 = vadd.f32 0.0, %v498
      %v500 = vpop.f32.mrf.mxu0
      %501 = vdwg.mxu0
      %502 = vst.msk [vmem:[%s145] sm:$0xff] %vm292, %v376
      %503 = vst.msk [vmem:[%s145 + $0x8] sm:$0xff] %vm292, %v379
      %504 = vst.msk [vmem:[%s145 + $0x10] sm:$0xff] %vm292, %v384
      %505 = vst.msk [vmem:[%s145 + $0x18] sm:$0xff] %vm292, %v387
      %506 = vst.msk [vmem:[%s145 + $0x20] sm:$0xff] %vm292, %v392
      %507 = vst.msk [vmem:[%s145 + $0x28] sm:$0xff] %vm292, %v395
      %508 = vst.msk [vmem:[%s145 + $0x30] sm:$0xff] %vm292, %v400
      %509 = vst.msk [vmem:[%s145 + $0x38] sm:$0xff] %vm292, %v403
      %510 = vst.msk [vmem:[%s145 + $0x40] sm:$0xff] %vm292, %v408
      %511 = vst.msk [vmem:[%s145 + $0x48] sm:$0xff] %vm292, %v411
      %512 = vst.msk [vmem:[%s145 + $0x50] sm:$0xff] %vm292, %v416
      %513 = vst.msk [vmem:[%s145 + $0x58] sm:$0xff] %vm292, %v419
      %514 = vst.msk [vmem:[%s145 + $0x60] sm:$0xff] %vm292, %v424
      %515 = vst.msk [vmem:[%s145 + $0x68] sm:$0xff] %vm292, %v427
      %516 = vst.msk [vmem:[%s145 + $0x70] sm:$0xff] %vm292, %v432
      %517 = vst.msk [vmem:[%s145 + $0x78] sm:$0xff] %vm292, %v435
      %518 = vst.msk [vmem:[%s145 + $0x80] sm:$0xff] %vm292, %v440
      %519 = vst.msk [vmem:[%s145 + $0x88] sm:$0xff] %vm292, %v443
      %520 = vst.msk [vmem:[%s145 + $0x90] sm:$0xff] %vm292, %v448
      %521 = vst.msk [vmem:[%s145 + $0x98] sm:$0xff] %vm292, %v451
      %522 = vst.msk [vmem:[%s145 + $0xa0] sm:$0xff] %vm292, %v456
      %523 = vst.msk [vmem:[%s145 + $0xa8] sm:$0xff] %vm292, %v459
      %524 = vst.msk [vmem:[%s145 + $0xb0] sm:$0xff] %vm292, %v464
      %525 = vst.msk [vmem:[%s145 + $0xb8] sm:$0xff] %vm292, %v467
      %526 = vst.msk [vmem:[%s145 + $0xc0] sm:$0xff] %vm292, %v472
      %527 = vst.msk [vmem:[%s145 + $0xc8] sm:$0xff] %vm292, %v475
      %528 = vst.msk [vmem:[%s145 + $0xd0] sm:$0xff] %vm292, %v480
      %529 = vst.msk [vmem:[%s145 + $0xd8] sm:$0xff] %vm292, %v483
      %530 = vst.msk [vmem:[%s145 + $0xe0] sm:$0xff] %vm292, %v488
      %531 = vst.msk [vmem:[%s145 + $0xe8] sm:$0xff] %vm292, %v491
      %532 = vst.msk [vmem:[%s145 + $0xf0] sm:$0xff] %vm292, %v496
      %533 = vst.msk [vmem:[%s145 + $0xf8] sm:$0xff] %vm292, %v499
      %s534 = smul.u32 32, %s13
      %p535 = scmp.lt.s32.totalorder %s534, 63
      %s536 = scalar_select %p535, %s534, 63
      %s537 = smul.addr %s536, 8
      %s538 = scalar_lea.vmem %s2, %s537
      // Predicated region
      $region29: #{p4m_resnet_forward.23} parent=27 // pred_check
        %p539 = pneg %p78
      $region30: #{p4m_resnet_forward.23} parent=27 // pred_check_branch
        %541 = sbr.rel (%p539) target = $region32
      $region31: #{p4m_resnet_forward.23} parent=27 // pred_region
        %s542 = smul.u32 32, %s13
      $region32: #{p4m_resnet_forward.23} parent=27 // pred_fallthru
        _
    $region28: #{p4m_resnet_forward.23} parent=5 // pred_fallthru
      _
    %p543 = scmp.le.s32.totalorder 2, %s8
    // Predicated region
    $region33: #{p4m_resnet_forward.23} parent=5 // pred_check
      %p544 = pneg %p543
    $region34: #{p4m_resnet_forward.23} parent=5 // pred_check_branch
      %546 = sbr.rel (%p544) target = $region36
    $region35: #{p4m_resnet_forward.23} parent=5 // pred_region
      %s547 = ssub.s32 %s8, 2
      // Predicated region
      $region37: #{p4m_resnet_forward.23} parent=35 // pred_check
        %p548 = pneg %p84
      $region38: #{p4m_resnet_forward.23} parent=35 // pred_check_branch
        %550 = sbr.rel (%p548) target = $region40
      $region39: #{p4m_resnet_forward.23} parent=35 // pred_region
        %s551 = smul.u32 32, %s14
        %p552 = scmp.lt.s32.totalorder %s551, 63
        %s553 = scalar_select %p552, %s551, 63
        %s554 = smul.addr %s553, 8
        %s555 = scalar_lea.vmem %s2, %s554
      $region40: #{p4m_resnet_forward.23} parent=35 // pred_fallthru
        _
    $region36: #{p4m_resnet_forward.23} parent=5 // pred_fallthru
      _
  $region6: #{p4m_resnet_forward.23} parent=0 // loop_footer
    %s12 = sadd.s32 1, %s8
  $region7: #{p4m_resnet_forward.23} parent=0 // loop_footer_branch
    %7 = sbr.rel target = $region3
  $region8: #{p4m_resnet_forward.23} parent=0 // loop_exit
    _

// kernel: tile.102
$region0: #{tile.102}
  #allocation0 [shape = 's32[1]{0}', space=sflag, size = 0x4, scoped, tag = 'scoped memory for tile.102']
  %s0 = inlined_call_operand.vmem [shape: f32[64], index: 0, kind: input, shape index: {}]
  %s1 = inlined_call_operand.vmem [shape: f32[4,64], index: 1, kind: output, shape index: {}]
  // Predicated region
  $region2: #{tile.102} parent=0 // pred_check
    _
  $region3: #{tile.102} parent=0 // pred_check_branch
    %3 = sbr.rel (0) target = $region5
  $region4: #{tile.102} parent=0 // pred_region
    _
  $region5: #{tile.102} parent=0 // pred_fallthru
    _
  %v4 = vld [vmem:[%s0] ss:$0 sm:$0xff]
  %5 = vst [vmem:[%s1] sm:$0xf] %v4

// kernel: tile.103
$region0: #{tile.103}
  %s0 = inlined_call_operand.vmem [shape: f32[4,64], index: 0, kind: input, shape index: {}]
  %s1 = inlined_call_operand.vmem [shape: f32[1,256], index: 1, kind: output, shape index: {}]
  $region1: #{tile.103} parent=0
    #allocation0 [shape = 'u8[8192]{0}', space=vmem, size = 0x2000, scoped, tag = 'scoped mem for output reshape']
    #allocation1 [shape = 'u8[4096]{0}', space=vmem, size = 0x1000, scoped, tag = 'scoped mem for input reshape']
    %s3 = sshll.u32 1, 4
    %s4 = ssub.s32 %s3, 1
    %v5 = vld [vmem:[%s0] sm:%s4]
    %6 = vst [vmem:[#allocation1] sm:%s4] %v5
    %s7 = smov 3
    %v8 = vld [vmem:[#allocation1] ss:$2 sm:%s7]
    %vm9 = vcmask 523264
    %10 = vst.msk [vmem:[#allocation0] ss:$8 sm:$0x3] %vm9, %v8
    %s11 = scalar_lea.vmem [#allocation1], 1
    %s12 = smov 3
    %v13 = vld [vmem:[%s11] ss:$2 sm:%s12]
    %14 = vrot.lane.b32.xlu0 %v13, 64
    %v15 = vpop.permute.xlu0 %14
    %vm16 = vcmask 1048064
    %17 = vst.msk [vmem:[#allocation0] ss:$8 sm:$0x3] %vm16, %v15
    %s19 = sshll.u32 1, 1
    %s20 = ssub.s32 %s19, 1
    %v22 = vld [vmem:[#allocation0] sm:%s20]
    %s23 = sshll.u32 1, 1
    %s24 = ssub.s32 %s23, 1
    %25 = vst [vmem:[%s1] sm:%s24] %v22
    %s26 = scalar_lea.vmem [#allocation0], 8
    %v27 = vld [vmem:[%s26] sm:%s20]
    %s28 = sshll.u32 1, 1
    %s29 = ssub.s32 %s28, 1
    %s30 = scalar_lea.vmem %s1, 1
    %31 = vst [vmem:[%s30] sm:%s29] %v27

// kernel: p4m_resnet_forward.26
$region0: #{p4m_resnet_forward.26}
  #allocation0 [shape = 'u32[]', space=smem, size = 0x4, offset = 0x4, fixed_abs, tag = 'smem constant byte address 0x4 - core index']
  #allocation1 [shape = 'u32[144,128]{1,0:T(1,128)}', space=vmem, size = 0x12000, scoped, tag = 'internal scratch']
  %s0 = inlined_call_operand.vmem [shape: f32[8,256], index: 0, kind: input, shape index: {}]
  %s1 = inlined_call_operand.vmem [shape: f32[1,256], index: 1, kind: input, shape index: {}]
  %s2 = inlined_call_operand.vmem [shape: f32[1,256], index: 2, kind: input, shape index: {}]
  %s3 = inlined_call_operand.vmem [shape: bf16[8,256], index: 3, kind: output, shape index: {}]
  %s4 = sld [smem:[#allocation0]]
  $region22: #{p4m_resnet_forward.26} parent=0
    _
  %s6 = ssub.s32 1, %s4
  %s7 = scalar_select 0, %s6, %s4
  // Predicated region
  $region2: #{p4m_resnet_forward.26} parent=0 // pred_check
    _
  $region3: #{p4m_resnet_forward.26} parent=0 // pred_check_branch
    %9 = sbr.rel (0) target = $region5
  $region4: #{p4m_resnet_forward.26} parent=0 // pred_region
    _
  $region5: #{p4m_resnet_forward.26} parent=0 // pred_fallthru
    _
  // Predicated region
  $region6: #{p4m_resnet_forward.26} parent=0 // pred_check
    _
  $region7: #{p4m_resnet_forward.26} parent=0 // pred_check_branch
    %11 = sbr.rel (0) target = $region9
  $region8: #{p4m_resnet_forward.26} parent=0 // pred_region
    _
  $region9: #{p4m_resnet_forward.26} parent=0 // pred_fallthru
    _
  // Predicated region
  $region10: #{p4m_resnet_forward.26} parent=0 // pred_check
    _
  $region11: #{p4m_resnet_forward.26} parent=0 // pred_check_branch
    %13 = sbr.rel (0) target = $region13
  $region12: #{p4m_resnet_forward.26} parent=0 // pred_region
    _
  $region13: #{p4m_resnet_forward.26} parent=0 // pred_fallthru
    _
  %v14 = vld [vmem:[%s0] sm:$0xff]
  %v15 = vld [vmem:[%s0 + $0x8] sm:$0xff]
  %v16 = vld [vmem:[%s1] sm:$0x3]
  %v18 = vlaneseq
  %v19 = vshrl.u32 %v18, 7
  %v20 = vsub.s32 0, %v19
  %v21 = vrot.slane %v16, %v20
  %v22 = vlaneseq
  %v23 = vshrl.u32 %v22, 7
  %v24 = vsub.s32 1, %v23
  %v25 = vrot.slane %v16, %v24
  %v28 = vmul.f32 %v14, %v21
  %v29 = vmul.f32 %v15, %v25
  %v30 = vld [vmem:[%s2] sm:$0x3]
  %v32 = vlaneseq
  %v33 = vshrl.u32 %v32, 7
  %v34 = vsub.s32 0, %v33
  %v35 = vrot.slane %v30, %v34
  %v36 = vlaneseq
  %v37 = vshrl.u32 %v36, 7
  %v38 = vsub.s32 1, %v37
  %v39 = vrot.slane %v30, %v38
  %v42 = vadd.f32 %v28, %v35
  %v43 = vadd.f32 %v29, %v39
  %v44 = vmax.f32 %v42, 0.0
  %v45 = vmax.f32 %v43, 0.0
  %v46 = vpack.c.bf16 %v44, %v44
  %v47 = vpack.c.bf16 %v45, %v45
  %v50 = vunpack.c.l.b16 %v46
  %v51 = vunpack.c.l.b16 %v47
  %v52 = vpack.c.b16 %v51, %v50
  %54 = vst [vmem:[%s3] sm:$0xff] %v52
  // Predicated region
  $region14: #{p4m_resnet_forward.26} parent=0 // pred_check
    _
  $region15: #{p4m_resnet_forward.26} parent=0 // pred_check_branch
    %56 = sbr.rel (0) target = $region17
  $region16: #{p4m_resnet_forward.26} parent=0 // pred_region
    _
  $region17: #{p4m_resnet_forward.26} parent=0 // pred_fallthru
    _
  // Predicated region
  $region18: #{p4m_resnet_forward.26} parent=0 // pred_check
    _
  $region19: #{p4m_resnet_forward.26} parent=0 // pred_check_branch
    %58 = sbr.rel (0) target = $region21
  $region20: #{p4m_resnet_forward.26} parent=0 // pred_region
    _
  $region21: #{p4m_resnet_forward.26} parent=0 // pred_fallthru
    _

// kernel: p4m_resnet_forward.28
$region0: #{p4m_resnet_forward.28}
  #allocation0 [shape = 'u32[]', space=smem, size = 0x4, offset = 0x4, fixed_abs, tag = 'smem constant byte address 0x4 - core index']
  #allocation1 [shape = 'u32[144,128]{1,0:T(1,128)}', space=vmem, size = 0x12000, scoped, tag = 'internal scratch']
  %s0 = inlined_call_operand.vmem [shape: bf16[128,64], index: 0, kind: input, shape index: {}]
  %s1 = inlined_call_operand.vmem [shape: bf16[64,64], index: 1, kind: input, shape index: {}]
  %s2 = inlined_call_operand.vmem [shape: f32[128,64], index: 2, kind: output, shape index: {}]
  %s3 = sld [smem:[#allocation0]]
  $region18: #{p4m_resnet_forward.28} parent=0
    _
  %s5 = ssub.s32 1, %s3
  %s6 = scalar_select 0, %s5, %s3
  // Predicated region
  $region2: #{p4m_resnet_forward.28} parent=0 // pred_check
    _
  $region3: #{p4m_resnet_forward.28} parent=0 // pred_check_branch
    %8 = sbr.rel (0) target = $region5
  $region4: #{p4m_resnet_forward.28} parent=0 // pred_region
    _
  $region5: #{p4m_resnet_forward.28} parent=0 // pred_fallthru
    _
  // Predicated region
  $region6: #{p4m_resnet_forward.28} parent=0 // pred_check
    _
  $region7: #{p4m_resnet_forward.28} parent=0 // pred_check_branch
    %10 = sbr.rel (0) target = $region9
  $region8: #{p4m_resnet_forward.28} parent=0 // pred_region
    _
  $region9: #{p4m_resnet_forward.28} parent=0 // pred_fallthru
    _
  %v12 = vld [vmem:[%s0] sm:$0xf]
  %v13 = vld [vmem:[%s0 + $0x4] sm:$0xf]
  %v14 = vld [vmem:[%s0 + $0x8] sm:$0xf]
  %v15 = vld [vmem:[%s0 + $0xc] sm:$0xf]
  %v16 = vld [vmem:[%s0 + $0x10] sm:$0xf]
  %v17 = vld [vmem:[%s0 + $0x14] sm:$0xf]
  %v18 = vld [vmem:[%s0 + $0x18] sm:$0xf]
  %v19 = vld [vmem:[%s0 + $0x1c] sm:$0xf]
  %v20 = vld [vmem:[%s0 + $0x20] sm:$0xf]
  %v21 = vld [vmem:[%s0 + $0x24] sm:$0xf]
  %v22 = vld [vmem:[%s0 + $0x28] sm:$0xf]
  %v23 = vld [vmem:[%s0 + $0x2c] sm:$0xf]
  %v24 = vld [vmem:[%s0 + $0x30] sm:$0xf]
  %v25 = vld [vmem:[%s0 + $0x34] sm:$0xf]
  %v26 = vld [vmem:[%s0 + $0x38] sm:$0xf]
  %v27 = vld [vmem:[%s0 + $0x3c] sm:$0xf]
  %v28 = vld [vmem:[%s1] sm:$0xf]
  %v29 = vld [vmem:[%s1 + $0x4] sm:$0xf]
  %v30 = vld [vmem:[%s1 + $0x8] sm:$0xf]
  %v31 = vld [vmem:[%s1 + $0xc] sm:$0xf]
  %v32 = vld [vmem:[%s1 + $0x10] sm:$0xf]
  %v33 = vld [vmem:[%s1 + $0x14] sm:$0xf]
  %v34 = vld [vmem:[%s1 + $0x18] sm:$0xf]
  %v35 = vld [vmem:[%s1 + $0x1c] sm:$0xf]
  %v52 = vunpack.c.l.b16 %v12
  %v53 = vunpack.c.l.b16 %v13
  %v54 = vunpack.c.l.b16 %v14
  %v55 = vunpack.c.l.b16 %v15
  %v56 = vunpack.c.l.b16 %v16
  %v57 = vunpack.c.l.b16 %v17
  %v58 = vunpack.c.l.b16 %v18
  %v59 = vunpack.c.l.b16 %v19
  %v60 = vunpack.c.l.b16 %v20
  %v61 = vunpack.c.l.b16 %v21
  %v62 = vunpack.c.l.b16 %v22
  %v63 = vunpack.c.l.b16 %v23
  %v64 = vunpack.c.l.b16 %v24
  %v65 = vunpack.c.l.b16 %v25
  %v66 = vunpack.c.l.b16 %v26
  %v67 = vunpack.c.l.b16 %v27
  %v68 = vpack.c.b16 %v53, %v52
  %v69 = vpack.c.b16 %v55, %v54
  %v70 = vpack.c.b16 %v57, %v56
  %v71 = vpack.c.b16 %v59, %v58
  %v72 = vpack.c.b16 %v61, %v60
  %v73 = vpack.c.b16 %v63, %v62
  %v74 = vpack.c.b16 %v65, %v64
  %v75 = vpack.c.b16 %v67, %v66
  %v84 = vunpack.c.l.b16 %v28
  %v85 = vunpack.c.l.b16 %v29
  %v86 = vunpack.c.l.b16 %v30
  %v87 = vunpack.c.l.b16 %v31
  %v88 = vunpack.c.l.b16 %v32
  %v89 = vunpack.c.l.b16 %v33
  %v90 = vunpack.c.l.b16 %v34
  %v91 = vunpack.c.l.b16 %v35
  %v92 = vpack.c.b16 %v85, %v84
  %v93 = vpack.c.b16 %v87, %v86
  %v94 = vpack.c.b16 %v89, %v88
  %v95 = vpack.c.b16 %v91, %v90
  %vm100 = vcmask 523264
  %v102 = vsel %vm100, %v68, 0
  %v105 = vsel %vm100, %v69, 0
  %v108 = vsel %vm100, %v70, 0
  %v111 = vsel %vm100, %v71, 0
  %v114 = vsel %vm100, %v72, 0
  %v117 = vsel %vm100, %v73, 0
  %v120 = vsel %vm100, %v74, 0
  %v123 = vsel %vm100, %v75, 0
  %125 = vmatprep.subr.bf16.mxu0 0
  %126 = vmatpush1.bf16.msra.mxu0 0
  %127 = vmatprep.subr.bf16.mxu0 0
  %128 = vmatpush1.bf16.msra.mxu0 0
  %129 = vmatprep.subr.bf16.mxu0 0
  %130 = vmatpush1.bf16.msra.mxu0 0
  %131 = vmatprep.subr.bf16.mxu0 0
  %132 = vmatpush1.bf16.msra.mxu0 0
  %133 = vmatprep.subr.bf16.mxu0 0
  %134 = vmatpush1.bf16.msra.mxu0 %v95
  %135 = vmatprep.subr.bf16.mxu0 0
  %136 = vmatpush1.bf16.msra.mxu0 %v94
  %137 = vmatprep.subr.bf16.mxu0 0
  %138 = vmatpush1.bf16.msra.mxu0 %v93
  %139 = vmatprep.subr.bf16.mxu0 0
  %140 = vmatpush1.bf16.msra.mxu0 %v92
  %141 = vmatprep.subr.bf16.mxu0 0
  %142 = vmatpush2.bf16.msra.mxu0 0
  %143 = vmatprep.subr.bf16.mxu0 0
  %144 = vmatpush2.bf16.msra.mxu0 0
  %145 = vmatprep.subr.bf16.mxu0 0
  %146 = vmatpush2.bf16.msra.mxu0 0
  %147 = vmatprep.subr.bf16.mxu0 0
  %148 = vmatpush2.bf16.msra.mxu0 0
  %149 = vmatprep.subr.bf16.mxu0 0
  %150 = vmatpush2.bf16.msra.mxu0 0
  %151 = vmatprep.subr.bf16.mxu0 0
  %152 = vmatpush2.bf16.msra.mxu0 0
  %153 = vmatprep.subr.bf16.mxu0 0
  %154 = vmatpush2.bf16.msra.mxu0 0
  %155 = vmatprep.subr.bf16.mxu0 0
  %156 = vmatpush2.bf16.msra.mxu0 0
  %157 = vmatprep.mubr.bf16.mxu0 0
  %158 = vmatmul.mubr.bf16.gmra.mxu0 %v102
  %v159 = vpop.f32.mrf.mxu0
  %v160 = vadd.f32 0.0, %v159
  %v161 = vpop.f32.mrf.mxu0
  %v162 = vpop.f32.mrf.mxu0
  %v163 = vadd.f32 0.0, %v162
  %v164 = vpop.f32.mrf.mxu0
  %165 = vmatprep.mubr.bf16.mxu0 0
  %166 = vmatmul.mubr.bf16.gmra.mxu0 %v105
  %v167 = vpop.f32.mrf.mxu0
  %v168 = vadd.f32 0.0, %v167
  %v169 = vpop.f32.mrf.mxu0
  %v170 = vpop.f32.mrf.mxu0
  %v171 = vadd.f32 0.0, %v170
  %v172 = vpop.f32.mrf.mxu0
  %173 = vmatprep.mubr.bf16.mxu0 0
  %174 = vmatmul.mubr.bf16.gmra.mxu0 %v108
  %v175 = vpop.f32.mrf.mxu0
  %v176 = vadd.f32 0.0, %v175
  %v177 = vpop.f32.mrf.mxu0
  %v178 = vpop.f32.mrf.mxu0
  %v179 = vadd.f32 0.0, %v178
  %v180 = vpop.f32.mrf.mxu0
  %181 = vmatprep.mubr.bf16.mxu0 0
  %182 = vmatmul.mubr.bf16.gmra.mxu0 %v111
  %v183 = vpop.f32.mrf.mxu0
  %v184 = vadd.f32 0.0, %v183
  %v185 = vpop.f32.mrf.mxu0
  %v186 = vpop.f32.mrf.mxu0
  %v187 = vadd.f32 0.0, %v186
  %v188 = vpop.f32.mrf.mxu0
  %189 = vmatprep.mubr.bf16.mxu0 0
  %190 = vmatmul.mubr.bf16.gmra.mxu0 %v114
  %v191 = vpop.f32.mrf.mxu0
  %v192 = vadd.f32 0.0, %v191
  %v193 = vpop.f32.mrf.mxu0
  %v194 = vpop.f32.mrf.mxu0
  %v195 = vadd.f32 0.0, %v194
  %v196 = vpop.f32.mrf.mxu0
  %197 = vmatprep.mubr.bf16.mxu0 0
  %198 = vmatmul.mubr.bf16.gmra.mxu0 %v117
  %v199 = vpop.f32.mrf.mxu0
  %v200 = vadd.f32 0.0, %v199
  %v201 = vpop.f32.mrf.mxu0
  %v202 = vpop.f32.mrf.mxu0
  %v203 = vadd.f32 0.0, %v202
  %v204 = vpop.f32.mrf.mxu0
  %205 = vmatprep.mubr.bf16.mxu0 0
  %206 = vmatmul.mubr.bf16.gmra.mxu0 %v120
  %v207 = vpop.f32.mrf.mxu0
  %v208 = vadd.f32 0.0, %v207
  %v209 = vpop.f32.mrf.mxu0
  %v210 = vpop.f32.mrf.mxu0
  %v211 = vadd.f32 0.0, %v210
  %v212 = vpop.f32.mrf.mxu0
  %213 = vmatprep.mubr.bf16.mxu0 0
  %214 = vmatmul.mubr.bf16.gmra.mxu0 %v123
  %v215 = vpop.f32.mrf.mxu0
  %v216 = vadd.f32 0.0, %v215
  %v217 = vpop.f32.mrf.mxu0
  %v218 = vpop.f32.mrf.mxu0
  %v219 = vadd.f32 0.0, %v218
  %v220 = vpop.f32.mrf.mxu0
  %221 = vdwg.mxu0
  %222 = vst.msk [vmem:[%s2] sm:$0xff] %vm100, %v160
  %223 = vst.msk [vmem:[%s2 + $0x8] sm:$0xff] %vm100, %v163
  %224 = vst.msk [vmem:[%s2 + $0x10] sm:$0xff] %vm100, %v168
  %225 = vst.msk [vmem:[%s2 + $0x18] sm:$0xff] %vm100, %v171
  %226 = vst.msk [vmem:[%s2 + $0x20] sm:$0xff] %vm100, %v176
  %227 = vst.msk [vmem:[%s2 + $0x28] sm:$0xff] %vm100, %v179
  %228 = vst.msk [vmem:[%s2 + $0x30] sm:$0xff] %vm100, %v184
  %229 = vst.msk [vmem:[%s2 + $0x38] sm:$0xff] %vm100, %v187
  %230 = vst.msk [vmem:[%s2 + $0x40] sm:$0xff] %vm100, %v192
  %231 = vst.msk [vmem:[%s2 + $0x48] sm:$0xff] %vm100, %v195
  %232 = vst.msk [vmem:[%s2 + $0x50] sm:$0xff] %vm100, %v200
  %233 = vst.msk [vmem:[%s2 + $0x58] sm:$0xff] %vm100, %v203
  %234 = vst.msk [vmem:[%s2 + $0x60] sm:$0xff] %vm100, %v208
  %235 = vst.msk [vmem:[%s2 + $0x68] sm:$0xff] %vm100, %v211
  %236 = vst.msk [vmem:[%s2 + $0x70] sm:$0xff] %vm100, %v216
  %237 = vst.msk [vmem:[%s2 + $0x78] sm:$0xff] %vm100, %v219
  // Predicated region
  $region10: #{p4m_resnet_forward.28} parent=0 // pred_check
    _
  $region11: #{p4m_resnet_forward.28} parent=0 // pred_check_branch
    %239 = sbr.rel (0) target = $region13
  $region12: #{p4m_resnet_forward.28} parent=0 // pred_region
    _
  $region13: #{p4m_resnet_forward.28} parent=0 // pred_fallthru
    _
  // Predicated region
  $region14: #{p4m_resnet_forward.28} parent=0 // pred_check
    _
  $region15: #{p4m_resnet_forward.28} parent=0 // pred_check_branch
    %241 = sbr.rel (0) target = $region17
  $region16: #{p4m_resnet_forward.28} parent=0 // pred_region
    _
  $region17: #{p4m_resnet_forward.28} parent=0 // pred_fallthru
    _

// kernel: p4m_resnet_forward.29
$region0: #{p4m_resnet_forward.29}
  #allocation0 [shape = 'u32[]', space=smem, size = 0x4, offset = 0x4, fixed_abs, tag = 'smem constant byte address 0x4 - core index']
  #allocation1 [shape = 'u32[144,128]{1,0:T(1,128)}', space=vmem, size = 0x12000, scoped, tag = 'internal scratch']
  %s0 = inlined_call_operand.vmem [shape: f32[8,256], index: 0, kind: input, shape index: {}]
  %s1 = inlined_call_operand.vmem [shape: f32[1,256], index: 1, kind: input, shape index: {}]
  %s2 = inlined_call_operand.vmem [shape: f32[1,256], index: 2, kind: input, shape index: {}]
  %s3 = inlined_call_operand.vmem [shape: f32[8,256], index: 3, kind: output, shape index: {}]
  %s4 = sld [smem:[#allocation0]]
  $region22: #{p4m_resnet_forward.29} parent=0
    _
  %s6 = ssub.s32 1, %s4
  %s7 = scalar_select 0, %s6, %s4
  // Predicated region
  $region2: #{p4m_resnet_forward.29} parent=0 // pred_check
    _
  $region3: #{p4m_resnet_forward.29} parent=0 // pred_check_branch
    %9 = sbr.rel (0) target = $region5
  $region4: #{p4m_resnet_forward.29} parent=0 // pred_region
    _
  $region5: #{p4m_resnet_forward.29} parent=0 // pred_fallthru
    _
  // Predicated region
  $region6: #{p4m_resnet_forward.29} parent=0 // pred_check
    _
  $region7: #{p4m_resnet_forward.29} parent=0 // pred_check_branch
    %11 = sbr.rel (0) target = $region9
  $region8: #{p4m_resnet_forward.29} parent=0 // pred_region
    _
  $region9: #{p4m_resnet_forward.29} parent=0 // pred_fallthru
    _
  // Predicated region
  $region10: #{p4m_resnet_forward.29} parent=0 // pred_check
    _
  $region11: #{p4m_resnet_forward.29} parent=0 // pred_check_branch
    %13 = sbr.rel (0) target = $region13
  $region12: #{p4m_resnet_forward.29} parent=0 // pred_region
    _
  $region13: #{p4m_resnet_forward.29} parent=0 // pred_fallthru
    _
  %v14 = vld [vmem:[%s0] sm:$0xff]
  %v15 = vld [vmem:[%s0 + $0x8] sm:$0xff]
  %v16 = vld [vmem:[%s1] sm:$0x3]
  %v18 = vlaneseq
  %v19 = vshrl.u32 %v18, 7
  %v20 = vsub.s32 0, %v19
  %v21 = vrot.slane %v16, %v20
  %v22 = vlaneseq
  %v23 = vshrl.u32 %v22, 7
  %v24 = vsub.s32 1, %v23
  %v25 = vrot.slane %v16, %v24
  %v28 = vmul.f32 %v14, %v21
  %v29 = vmul.f32 %v15, %v25
  %v30 = vld [vmem:[%s2] sm:$0x3]
  %v32 = vlaneseq
  %v33 = vshrl.u32 %v32, 7
  %v34 = vsub.s32 0, %v33
  %v35 = vrot.slane %v30, %v34
  %v36 = vlaneseq
  %v37 = vshrl.u32 %v36, 7
  %v38 = vsub.s32 1, %v37
  %v39 = vrot.slane %v30, %v38
  %v42 = vadd.f32 %v28, %v35
  %v43 = vadd.f32 %v29, %v39
  %v44 = vmax.f32 %v42, 0.0
  %v45 = vmax.f32 %v43, 0.0
  %46 = vst [vmem:[%s3] sm:$0xff] %v44
  %47 = vst [vmem:[%s3 + $0x8] sm:$0xff] %v45
  // Predicated region
  $region14: #{p4m_resnet_forward.29} parent=0 // pred_check
    _
  $region15: #{p4m_resnet_forward.29} parent=0 // pred_check_branch
    %49 = sbr.rel (0) target = $region17
  $region16: #{p4m_resnet_forward.29} parent=0 // pred_region
    _
  $region17: #{p4m_resnet_forward.29} parent=0 // pred_fallthru
    _
  // Predicated region
  $region18: #{p4m_resnet_forward.29} parent=0 // pred_check
    _
  $region19: #{p4m_resnet_forward.29} parent=0 // pred_check_branch
    %51 = sbr.rel (0) target = $region21
  $region20: #{p4m_resnet_forward.29} parent=0 // pred_region
    _
  $region21: #{p4m_resnet_forward.29} parent=0 // pred_fallthru
    _

// kernel: p4m_resnet_forward.27
$region0: #{p4m_resnet_forward.27}
  #allocation0 [shape = 'u32[]', space=smem, size = 0x4, offset = 0x4, fixed_abs, tag = 'smem constant byte address 0x4 - core index']
  #allocation1 [shape = 'u32[144,128]{1,0:T(1,128)}', space=vmem, size = 0x12000, scoped, tag = 'internal scratch']
  %s0 = inlined_call_operand.vmem [shape: bf16[32,576], index: 0, kind: input, shape index: {}]
  %s1 = inlined_call_operand.vmem [shape: bf16[576,64], index: 1, kind: input, shape index: {}]
  %s2 = inlined_call_operand.vmem [shape: f32[32,64], index: 2, kind: output, shape index: {}]
  %s3 = sld [smem:[#allocation0]]
  $region18: #{p4m_resnet_forward.27} parent=0
    _
  %s5 = ssub.s32 1, %s3
  %s6 = scalar_select 0, %s5, %s3
  // Predicated region
  $region2: #{p4m_resnet_forward.27} parent=0 // pred_check
    _
  $region3: #{p4m_resnet_forward.27} parent=0 // pred_check_branch
    %8 = sbr.rel (0) target = $region5
  $region4: #{p4m_resnet_forward.27} parent=0 // pred_region
    _
  $region5: #{p4m_resnet_forward.27} parent=0 // pred_fallthru
    _
  // Predicated region
  $region6: #{p4m_resnet_forward.27} parent=0 // pred_check
    _
  $region7: #{p4m_resnet_forward.27} parent=0 // pred_check_branch
    %10 = sbr.rel (0) target = $region9
  $region8: #{p4m_resnet_forward.27} parent=0 // pred_region
    _
  $region9: #{p4m_resnet_forward.27} parent=0 // pred_fallthru
    _
  %v12 = vld [vmem:[%s0] sm:$0xff]
  %v13 = vld [vmem:[%s0 + $0x8] sm:$0xff]
  %v14 = vld [vmem:[%s0 + $0x10] sm:$0xf]
  %v15 = vld [vmem:[%s0 + $0x14] sm:$0xff]
  %v16 = vld [vmem:[%s0 + $0x1c] sm:$0xff]
  %v17 = vld [vmem:[%s0 + $0x24] sm:$0xf]
  %v18 = vld [vmem:[%s0 + $0x28] sm:$0xff]
  %v19 = vld [vmem:[%s0 + $0x30] sm:$0xff]
  %v20 = vld [vmem:[%s0 + $0x38] sm:$0xf]
  %v21 = vld [vmem:[%s0 + $0x3c] sm:$0xff]
  %v22 = vld [vmem:[%s0 + $0x44] sm:$0xff]
  %v23 = vld [vmem:[%s0 + $0x4c] sm:$0xf]
  %v24 = vld [vmem:[%s1] sm:$0xf]
  %v25 = vld [vmem:[%s1 + $0x4] sm:$0xf]
  %v26 = vld [vmem:[%s1 + $0x8] sm:$0xf]
  %v27 = vld [vmem:[%s1 + $0xc] sm:$0xf]
  %v28 = vld [vmem:[%s1 + $0x10] sm:$0xf]
  %v29 = vld [vmem:[%s1 + $0x14] sm:$0xf]
  %v30 = vld [vmem:[%s1 + $0x18] sm:$0xf]
  %v31 = vld [vmem:[%s1 + $0x1c] sm:$0xf]
  %v32 = vld [vmem:[%s1 + $0x20] sm:$0xf]
  %v33 = vld [vmem:[%s1 + $0x24] sm:$0xf]
  %v34 = vld [vmem:[%s1 + $0x28] sm:$0xf]
  %v35 = vld [vmem:[%s1 + $0x2c] sm:$0xf]
  %v36 = vld [vmem:[%s1 + $0x30] sm:$0xf]
  %v37 = vld [vmem:[%s1 + $0x34] sm:$0xf]
  %v38 = vld [vmem:[%s1 + $0x38] sm:$0xf]
  %v39 = vld [vmem:[%s1 + $0x3c] sm:$0xf]
  %v40 = vld [vmem:[%s1 + $0x40] sm:$0xf]
  %v41 = vld [vmem:[%s1 + $0x44] sm:$0xf]
  %v42 = vld [vmem:[%s1 + $0x48] sm:$0xf]
  %v43 = vld [vmem:[%s1 + $0x4c] sm:$0xf]
  %v44 = vld [vmem:[%s1 + $0x50] sm:$0xf]
  %v45 = vld [vmem:[%s1 + $0x54] sm:$0xf]
  %v46 = vld [vmem:[%s1 + $0x58] sm:$0xf]
  %v47 = vld [vmem:[%s1 + $0x5c] sm:$0xf]
  %v48 = vld [vmem:[%s1 + $0x60] sm:$0xf]
  %v49 = vld [vmem:[%s1 + $0x64] sm:$0xf]
  %v50 = vld [vmem:[%s1 + $0x68] sm:$0xf]
  %v51 = vld [vmem:[%s1 + $0x6c] sm:$0xf]
  %v52 = vld [vmem:[%s1 + $0x70] sm:$0xf]
  %v53 = vld [vmem:[%s1 + $0x74] sm:$0xf]
  %v54 = vld [vmem:[%s1 + $0x78] sm:$0xf]
  %v55 = vld [vmem:[%s1 + $0x7c] sm:$0xf]
  %v56 = vld [vmem:[%s1 + $0x80] sm:$0xf]
  %v57 = vld [vmem:[%s1 + $0x84] sm:$0xf]
  %v58 = vld [vmem:[%s1 + $0x88] sm:$0xf]
  %v59 = vld [vmem:[%s1 + $0x8c] sm:$0xf]
  %v60 = vld [vmem:[%s1 + $0x90] sm:$0xf]
  %v61 = vld [vmem:[%s1 + $0x94] sm:$0xf]
  %v62 = vld [vmem:[%s1 + $0x98] sm:$0xf]
  %v63 = vld [vmem:[%s1 + $0x9c] sm:$0xf]
  %v64 = vld [vmem:[%s1 + $0xa0] sm:$0xf]
  %v65 = vld [vmem:[%s1 + $0xa4] sm:$0xf]
  %v66 = vld [vmem:[%s1 + $0xa8] sm:$0xf]
  %v67 = vld [vmem:[%s1 + $0xac] sm:$0xf]
  %v68 = vld [vmem:[%s1 + $0xb0] sm:$0xf]
  %v69 = vld [vmem:[%s1 + $0xb4] sm:$0xf]
  %v70 = vld [vmem:[%s1 + $0xb8] sm:$0xf]
  %v71 = vld [vmem:[%s1 + $0xbc] sm:$0xf]
  %v72 = vld [vmem:[%s1 + $0xc0] sm:$0xf]
  %v73 = vld [vmem:[%s1 + $0xc4] sm:$0xf]
  %v74 = vld [vmem:[%s1 + $0xc8] sm:$0xf]
  %v75 = vld [vmem:[%s1 + $0xcc] sm:$0xf]
  %v76 = vld [vmem:[%s1 + $0xd0] sm:$0xf]
  %v77 = vld [vmem:[%s1 + $0xd4] sm:$0xf]
  %v78 = vld [vmem:[%s1 + $0xd8] sm:$0xf]
  %v79 = vld [vmem:[%s1 + $0xdc] sm:$0xf]
  %v80 = vld [vmem:[%s1 + $0xe0] sm:$0xf]
  %v81 = vld [vmem:[%s1 + $0xe4] sm:$0xf]
  %v82 = vld [vmem:[%s1 + $0xe8] sm:$0xf]
  %v83 = vld [vmem:[%s1 + $0xec] sm:$0xf]
  %v84 = vld [vmem:[%s1 + $0xf0] sm:$0xf]
  %v85 = vld [vmem:[%s1 + $0xf4] sm:$0xf]
  %v86 = vld [vmem:[%s1 + $0xf8] sm:$0xf]
  %v87 = vld [vmem:[%s1 + $0xfc] sm:$0xf]
  %v88 = vld [vmem:[%s1 + $0x100] sm:$0xf]
  %v89 = vld [vmem:[%s1 + $0x104] sm:$0xf]
  %v90 = vld [vmem:[%s1 + $0x108] sm:$0xf]
  %v91 = vld [vmem:[%s1 + $0x10c] sm:$0xf]
  %v92 = vld [vmem:[%s1 + $0x110] sm:$0xf]
  %v93 = vld [vmem:[%s1 + $0x114] sm:$0xf]
  %v94 = vld [vmem:[%s1 + $0x118] sm:$0xf]
  %v95 = vld [vmem:[%s1 + $0x11c] sm:$0xf]
  %v108 = vunpack.c.l.b16 %v12
  %v109 = vunpack.c.h.b16 %v12
  %v110 = vunpack.c.l.b16 %v13
  %v111 = vunpack.c.h.b16 %v13
  %v112 = vunpack.c.l.b16 %v14
  %v113 = vunpack.c.l.b16 %v15
  %v114 = vunpack.c.h.b16 %v15
  %v115 = vunpack.c.l.b16 %v16
  %v116 = vunpack.c.h.b16 %v16
  %v117 = vunpack.c.l.b16 %v17
  %v118 = vunpack.c.l.b16 %v18
  %v119 = vunpack.c.h.b16 %v18
  %v120 = vunpack.c.l.b16 %v19
  %v121 = vunpack.c.h.b16 %v19
  %v122 = vunpack.c.l.b16 %v20
  %v123 = vunpack.c.l.b16 %v21
  %v124 = vunpack.c.h.b16 %v21
  %v125 = vunpack.c.l.b16 %v22
  %v126 = vunpack.c.h.b16 %v22
  %v127 = vunpack.c.l.b16 %v23
  %v128 = vpack.c.b16 %v113, %v108
  %v129 = vpack.c.b16 %v114, %v109
  %v130 = vpack.c.b16 %v115, %v110
  %v131 = vpack.c.b16 %v116, %v111
  %v132 = vpack.c.b16 %v117, %v112
  %v133 = vpack.c.b16 %v123, %v118
  %v134 = vpack.c.b16 %v124, %v119
  %v135 = vpack.c.b16 %v125, %v120
  %v136 = vpack.c.b16 %v126, %v121
  %v137 = vpack.c.b16 %v127, %v122
  %v218 = vunpack.c.l.b16 %v24
  %v219 = vunpack.c.l.b16 %v25
  %v220 = vunpack.c.l.b16 %v26
  %v221 = vunpack.c.l.b16 %v27
  %v222 = vunpack.c.l.b16 %v28
  %v223 = vunpack.c.l.b16 %v29
  %v224 = vunpack.c.l.b16 %v30
  %v225 = vunpack.c.l.b16 %v31
  %v226 = vunpack.c.l.b16 %v32
  %v227 = vunpack.c.l.b16 %v33
  %v228 = vunpack.c.l.b16 %v34
  %v229 = vunpack.c.l.b16 %v35
  %v230 = vunpack.c.l.b16 %v36
  %v231 = vunpack.c.l.b16 %v37
  %v232 = vunpack.c.l.b16 %v38
  %v233 = vunpack.c.l.b16 %v39
  %v234 = vunpack.c.l.b16 %v40
  %v235 = vunpack.c.l.b16 %v41
  %v236 = vunpack.c.l.b16 %v42
  %v237 = vunpack.c.l.b16 %v43
  %v238 = vunpack.c.l.b16 %v44
  %v239 = vunpack.c.l.b16 %v45
  %v240 = vunpack.c.l.b16 %v46
  %v241 = vunpack.c.l.b16 %v47
  %v242 = vunpack.c.l.b16 %v48
  %v243 = vunpack.c.l.b16 %v49
  %v244 = vunpack.c.l.b16 %v50
  %v245 = vunpack.c.l.b16 %v51
  %v246 = vunpack.c.l.b16 %v52
  %v247 = vunpack.c.l.b16 %v53
  %v248 = vunpack.c.l.b16 %v54
  %v249 = vunpack.c.l.b16 %v55
  %v250 = vunpack.c.l.b16 %v56
  %v251 = vunpack.c.l.b16 %v57
  %v252 = vunpack.c.l.b16 %v58
  %v253 = vunpack.c.l.b16 %v59
  %v254 = vunpack.c.l.b16 %v60
  %v255 = vunpack.c.l.b16 %v61
  %v256 = vunpack.c.l.b16 %v62
  %v257 = vunpack.c.l.b16 %v63
  %v258 = vunpack.c.l.b16 %v64
  %v259 = vunpack.c.l.b16 %v65
  %v260 = vunpack.c.l.b16 %v66
  %v261 = vunpack.c.l.b16 %v67
  %v262 = vunpack.c.l.b16 %v68
  %v263 = vunpack.c.l.b16 %v69
  %v264 = vunpack.c.l.b16 %v70
  %v265 = vunpack.c.l.b16 %v71
  %v266 = vunpack.c.l.b16 %v72
  %v267 = vunpack.c.l.b16 %v73
  %v268 = vunpack.c.l.b16 %v74
  %v269 = vunpack.c.l.b16 %v75
  %v270 = vunpack.c.l.b16 %v76
  %v271 = vunpack.c.l.b16 %v77
  %v272 = vunpack.c.l.b16 %v78
  %v273 = vunpack.c.l.b16 %v79
  %v274 = vunpack.c.l.b16 %v80
  %v275 = vunpack.c.l.b16 %v81
  %v276 = vunpack.c.l.b16 %v82
  %v277 = vunpack.c.l.b16 %v83
  %v278 = vunpack.c.l.b16 %v84
  %v279 = vunpack.c.l.b16 %v85
  %v280 = vunpack.c.l.b16 %v86
  %v281 = vunpack.c.l.b16 %v87
  %v282 = vunpack.c.l.b16 %v88
  %v283 = vunpack.c.l.b16 %v89
  %v284 = vunpack.c.l.b16 %v90
  %v285 = vunpack.c.l.b16 %v91
  %v286 = vunpack.c.l.b16 %v92
  %v287 = vunpack.c.l.b16 %v93
  %v288 = vunpack.c.l.b16 %v94
  %v289 = vunpack.c.l.b16 %v95
  %v290 = vpack.c.b16 %v219, %v218
  %v291 = vpack.c.b16 %v221, %v220
  %v292 = vpack.c.b16 %v223, %v222
  %v293 = vpack.c.b16 %v225, %v224
  %v294 = vpack.c.b16 %v227, %v226
  %v295 = vpack.c.b16 %v229, %v228
  %v296 = vpack.c.b16 %v231, %v230
  %v297 = vpack.c.b16 %v233, %v232
  %v298 = vpack.c.b16 %v235, %v234
  %v299 = vpack.c.b16 %v237, %v236
  %v300 = vpack.c.b16 %v239, %v238
  %v301 = vpack.c.b16 %v241, %v240
  %v302 = vpack.c.b16 %v243, %v242
  %v303 = vpack.c.b16 %v245, %v244
  %v304 = vpack.c.b16 %v247, %v246
  %v305 = vpack.c.b16 %v249, %v248
  %v306 = vpack.c.b16 %v251, %v250
  %v307 = vpack.c.b16 %v253, %v252
  %v308 = vpack.c.b16 %v255, %v254
  %v309 = vpack.c.b16 %v257, %v256
  %v310 = vpack.c.b16 %v259, %v258
  %v311 = vpack.c.b16 %v261, %v260
  %v312 = vpack.c.b16 %v263, %v262
  %v313 = vpack.c.b16 %v265, %v264
  %v314 = vpack.c.b16 %v267, %v266
  %v315 = vpack.c.b16 %v269, %v268
  %v316 = vpack.c.b16 %v271, %v270
  %v317 = vpack.c.b16 %v273, %v272
  %v318 = vpack.c.b16 %v275, %v274
  %v319 = vpack.c.b16 %v277, %v276
  %v320 = vpack.c.b16 %v279, %v278
  %v321 = vpack.c.b16 %v281, %v280
  %v322 = vpack.c.b16 %v283, %v282
  %v323 = vpack.c.b16 %v285, %v284
  %v324 = vpack.c.b16 %v287, %v286
  %v325 = vpack.c.b16 %v289, %v288
  %vm362 = vcmask 523264
  %v364 = vsel %vm362, %v132, 0
  %v367 = vsel %vm362, %v137, 0
  %369 = vmatprep.subr.bf16.mxu0 0
  %370 = vmatpush1.bf16.msra.mxu0 %v297
  %371 = vmatprep.subr.bf16.mxu0 0
  %372 = vmatpush1.bf16.msra.mxu0 %v296
  %373 = vmatprep.subr.bf16.mxu0 0
  %374 = vmatpush1.bf16.msra.mxu0 %v295
  %375 = vmatprep.subr.bf16.mxu0 0
  %376 = vmatpush1.bf16.msra.mxu0 %v294
  %377 = vmatprep.subr.bf16.mxu0 0
  %378 = vmatpush1.bf16.msra.mxu0 %v293
  %379 = vmatprep.subr.bf16.mxu0 0
  %380 = vmatpush1.bf16.msra.mxu0 %v292
  %381 = vmatprep.subr.bf16.mxu0 0
  %382 = vmatpush1.bf16.msra.mxu0 %v291
  %383 = vmatprep.subr.bf16.mxu0 0
  %384 = vmatpush1.bf16.msra.mxu0 %v290
  %385 = vmatprep.subr.bf16.mxu0 0
  %386 = vmatpush2.bf16.msra.mxu0 %v305
  %387 = vmatprep.subr.bf16.mxu0 0
  %388 = vmatpush2.bf16.msra.mxu0 %v304
  %389 = vmatprep.subr.bf16.mxu0 0
  %390 = vmatpush2.bf16.msra.mxu0 %v303
  %391 = vmatprep.subr.bf16.mxu0 0
  %392 = vmatpush2.bf16.msra.mxu0 %v302
  %393 = vmatprep.subr.bf16.mxu0 0
  %394 = vmatpush2.bf16.msra.mxu0 %v301
  %395 = vmatprep.subr.bf16.mxu0 0
  %396 = vmatpush2.bf16.msra.mxu0 %v300
  %397 = vmatprep.subr.bf16.mxu0 0
  %398 = vmatpush2.bf16.msra.mxu0 %v299
  %399 = vmatprep.subr.bf16.mxu0 0
  %400 = vmatpush2.bf16.msra.mxu0 %v298
  %401 = vmatprep.mubr.bf16.mxu0 %v129
  %402 = vmatmul.mubr.bf16.gmra.mxu0 %v128
  %v403 = vpop.f32.mrf.mxu0
  %v404 = vadd.f32 0.0, %v403
  %v405 = vpop.f32.mrf.mxu0
  %v406 = vpop.f32.mrf.mxu0
  %v407 = vadd.f32 0.0, %v406
  %v408 = vpop.f32.mrf.mxu0
  %409 = vmatprep.mubr.bf16.mxu0 %v134
  %410 = vmatmul.mubr.bf16.gmra.mxu0 %v133
  %v411 = vpop.f32.mrf.mxu0
  %v412 = vadd.f32 0.0, %v411
  %v413 = vpop.f32.mrf.mxu0
  %v414 = vpop.f32.mrf.mxu0
  %v415 = vadd.f32 0.0, %v414
  %v416 = vpop.f32.mrf.mxu0
  %417 = vdwg.mxu0
  %418 = vmatprep.subr.bf16.mxu0 0
  %419 = vmatpush1.bf16.msra.mxu0 %v313
  %420 = vmatprep.subr.bf16.mxu0 0
  %421 = vmatpush1.bf16.msra.mxu0 %v312
  %422 = vmatprep.subr.bf16.mxu0 0
  %423 = vmatpush1.bf16.msra.mxu0 %v311
  %424 = vmatprep.subr.bf16.mxu0 0
  %425 = vmatpush1.bf16.msra.mxu0 %v310
  %426 = vmatprep.subr.bf16.mxu0 0
  %427 = vmatpush1.bf16.msra.mxu0 %v309
  %428 = vmatprep.subr.bf16.mxu0 0
  %429 = vmatpush1.bf16.msra.mxu0 %v308
  %430 = vmatprep.subr.bf16.mxu0 0
  %431 = vmatpush1.bf16.msra.mxu0 %v307
  %432 = vmatprep.subr.bf16.mxu0 0
  %433 = vmatpush1.bf16.msra.mxu0 %v306
  %434 = vmatprep.subr.bf16.mxu0 0
  %435 = vmatpush2.bf16.msra.mxu0 %v321
  %436 = vmatprep.subr.bf16.mxu0 0
  %437 = vmatpush2.bf16.msra.mxu0 %v320
  %438 = vmatprep.subr.bf16.mxu0 0
  %439 = vmatpush2.bf16.msra.mxu0 %v319
  %440 = vmatprep.subr.bf16.mxu0 0
  %441 = vmatpush2.bf16.msra.mxu0 %v318
  %442 = vmatprep.subr.bf16.mxu0 0
  %443 = vmatpush2.bf16.msra.mxu0 %v317
  %444 = vmatprep.subr.bf16.mxu0 0
  %445 = vmatpush2.bf16.msra.mxu0 %v316
  %446 = vmatprep.subr.bf16.mxu0 0
  %447 = vmatpush2.bf16.msra.mxu0 %v315
  %448 = vmatprep.subr.bf16.mxu0 0
  %449 = vmatpush2.bf16.msra.mxu0 %v314
  %450 = vmatprep.mubr.bf16.mxu0 %v131
  %451 = vmatmul.mubr.bf16.gmra.mxu0 %v130
  %v452 = vpop.f32.mrf.mxu0
  %v453 = vadd.f32 %v404, %v452
  %v454 = vpop.f32.mrf.mxu0
  %v455 = vpop.f32.mrf.mxu0
  %v456 = vadd.f32 %v407, %v455
  %v457 = vpop.f32.mrf.mxu0
  %458 = vmatprep.mubr.bf16.mxu0 %v136
  %459 = vmatmul.mubr.bf16.gmra.mxu0 %v135
  %v460 = vpop.f32.mrf.mxu0
  %v461 = vadd.f32 %v412, %v460
  %v462 = vpop.f32.mrf.mxu0
  %v463 = vpop.f32.mrf.mxu0
  %v464 = vadd.f32 %v415, %v463
  %v465 = vpop.f32.mrf.mxu0
  %466 = vdwg.mxu0
  %467 = vmatprep.subr.bf16.mxu0 0
  %468 = vmatpush1.bf16.msra.mxu0 0
  %469 = vmatprep.subr.bf16.mxu0 0
  %470 = vmatpush1.bf16.msra.mxu0 0
  %471 = vmatprep.subr.bf16.mxu0 0
  %472 = vmatpush1.bf16.msra.mxu0 0
  %473 = vmatprep.subr.bf16.mxu0 0
  %474 = vmatpush1.bf16.msra.mxu0 0
  %475 = vmatprep.subr.bf16.mxu0 0
  %476 = vmatpush1.bf16.msra.mxu0 %v325
  %477 = vmatprep.subr.bf16.mxu0 0
  %478 = vmatpush1.bf16.msra.mxu0 %v324
  %479 = vmatprep.subr.bf16.mxu0 0
  %480 = vmatpush1.bf16.msra.mxu0 %v323
  %481 = vmatprep.subr.bf16.mxu0 0
  %482 = vmatpush1.bf16.msra.mxu0 %v322
  %483 = vmatprep.subr.bf16.mxu0 0
  %484 = vmatpush2.bf16.msra.mxu0 0
  %485 = vmatprep.subr.bf16.mxu0 0
  %486 = vmatpush2.bf16.msra.mxu0 0
  %487 = vmatprep.subr.bf16.mxu0 0
  %488 = vmatpush2.bf16.msra.mxu0 0
  %489 = vmatprep.subr.bf16.mxu0 0
  %490 = vmatpush2.bf16.msra.mxu0 0
  %491 = vmatprep.subr.bf16.mxu0 0
  %492 = vmatpush2.bf16.msra.mxu0 0
  %493 = vmatprep.subr.bf16.mxu0 0
  %494 = vmatpush2.bf16.msra.mxu0 0
  %495 = vmatprep.subr.bf16.mxu0 0
  %496 = vmatpush2.bf16.msra.mxu0 0
  %497 = vmatprep.subr.bf16.mxu0 0
  %498 = vmatpush2.bf16.msra.mxu0 0
  %499 = vmatprep.mubr.bf16.mxu0 0
  %500 = vmatmul.mubr.bf16.gmra.mxu0 %v364
  %v501 = vpop.f32.mrf.mxu0
  %v502 = vadd.f32 %v453, %v501
  %v503 = vpop.f32.mrf.mxu0
  %v504 = vpop.f32.mrf.mxu0
  %v505 = vadd.f32 %v456, %v504
  %v506 = vpop.f32.mrf.mxu0
  %507 = vmatprep.mubr.bf16.mxu0 0
  %508 = vmatmul.mubr.bf16.gmra.mxu0 %v367
  %v509 = vpop.f32.mrf.mxu0
  %v510 = vadd.f32 %v461, %v509
  %v511 = vpop.f32.mrf.mxu0
  %v512 = vpop.f32.mrf.mxu0
  %v513 = vadd.f32 %v464, %v512
  %v514 = vpop.f32.mrf.mxu0
  %515 = vdwg.mxu0
  %516 = vst.msk [vmem:[%s2] sm:$0xff] %vm362, %v502
  %517 = vst.msk [vmem:[%s2 + $0x8] sm:$0xff] %vm362, %v505
  %518 = vst.msk [vmem:[%s2 + $0x10] sm:$0xff] %vm362, %v510
  %519 = vst.msk [vmem:[%s2 + $0x18] sm:$0xff] %vm362, %v513
  // Predicated region
  $region10: #{p4m_resnet_forward.27} parent=0 // pred_check
    _
  $region11: #{p4m_resnet_forward.27} parent=0 // pred_check_branch
    %521 = sbr.rel (0) target = $region13
  $region12: #{p4m_resnet_forward.27} parent=0 // pred_region
    _
  $region13: #{p4m_resnet_forward.27} parent=0 // pred_fallthru
    _
  // Predicated region
  $region14: #{p4m_resnet_forward.27} parent=0 // pred_check
    _
  $region15: #{p4m_resnet_forward.27} parent=0 // pred_check_branch
    %523 = sbr.rel (0) target = $region17
  $region16: #{p4m_resnet_forward.27} parent=0 // pred_region
    _
  $region17: #{p4m_resnet_forward.27} parent=0 // pred_fallthru
    _

</llo_original>
